<compile_context>
chip_gen: v7x
topology: tpu7x:2x2x1
jax: 0.10.0
libtpu: 0.0.40
codegen_flags: <defaults>
</compile_context>

<pallas_src>
import functools

import jax
import jax.numpy as jnp
from jax.experimental import pallas as pl
from jax.experimental.pallas import tpu as pltpu


def _pick_time_block_steps(T, B, H, D_in):
    """Largest TT dividing T whose (TT*B, ...) working set fits a VMEM budget.

    Approx bytes/row: 2 x (block_rows,3H) f32 gx temporaries + double-buffered
    bf16 x blocks (both directions) + double-buffered bf16 out blocks.
    """
    bytes_per_row = 24 * H + 8 * D_in + 8 * H
    max_rows = max(8, min(512, (12 << 20) // max(1, bytes_per_row)))
    for tt in range(T, 0, -1):
        if T % tt:
            continue
        rows = tt * B
        if rows <= max_rows and (tt == T or rows % 8 == 0):
            return tt
    return T  # fall back to a single full-sequence block (always layout-valid)


# ----------------------------------------------------------------------------
# Fused bidirectional GRU layer: per time block, compute the input projection
# for both directions (off the serial path), then run the unrolled recurrence.
# ----------------------------------------------------------------------------
def _make_gru_layer_kernel(num_srcs):
    def kernel(*refs):
        xf_refs = refs[:num_srcs]                   # fwd-ordered (TT*B, D_src) bf16
        xb_refs = refs[num_srcs:2 * num_srcs]       # bwd-ordered (TT*B, D_src) bf16
        (w_ih_ref, b_ih_ref, whh_ref, bhn_ref,
         outf_ref, outb_ref, hf_ref, hb_ref) = refs[2 * num_srcs:]
        # w_ih_ref: (2, S, D_src, 3H) bf16   VMEM-resident, not double-buffered
        # b_ih_ref: (2, 1, 3H) f32           (b_hr/b_hz already folded in)
        # whh_ref : (2, H, 3H) bf16
        # bhn_ref : (2, 1, H) f32            hidden bias of the n-gate only
        # outf/outb: (TT*B, H) bf16 layer outputs, natural time order
        # hf/hb   : (B, H) f32 scratch carries, persist across time blocks
        B, H = hf_ref.shape
        TT = outf_ref.shape[0] // B

        @pl.when(pl.program_id(0) == 0)
        def _():
            hf_ref[...] = jnp.zeros_like(hf_ref)
            hb_ref[...] = jnp.zeros_like(hb_ref)

        # Hoisted per-block input projection (both directions).  This is the
        # throughput matmul; it has no dependence on the carries, so it
        # pipelines ahead of the serial cell loop below.
        def proj(x_refs, d):
            acc = jnp.dot(x_refs[0][...], w_ih_ref[d, 0],
                          preferred_element_type=jnp.float32)
            for s in range(1, num_srcs):
                acc = acc + jnp.dot(x_refs[s][...], w_ih_ref[d, s],
                                    preferred_element_type=jnp.float32)
            return acc + b_ih_ref[d]                # (TT*B, 3H) f32 value

        gxf = proj(xf_refs, 0)
        gxb = proj(xb_refs, 1)

        whh_f = whh_ref[0]
        whh_b = whh_ref[1]
        bhn_f = bhn_ref[0]
        bhn_b = bhn_ref[1]

        def cell(gx, h, whh, bhn):
            # PyTorch gate order [r | z | n]; b_hn stays inside r*(...).
            gh = jnp.dot(h.astype(jnp.bfloat16), whh,
                         preferred_element_type=jnp.float32)
            r = jax.nn.sigmoid(gx[:, 0:H] + gh[:, 0:H])
            z = jax.nn.sigmoid(gx[:, H:2 * H] + gh[:, H:2 * H])
            n = jnp.tanh(gx[:, 2 * H:3 * H] + r * (gh[:, 2 * H:3 * H] + bhn))
            return (1.0 - z) * n + z * h

        hf = hf_ref[...]
        hb = hb_ref[...]
        # Fully unrolled inner loop over the TT timesteps of this block.
        # Forward walks local times 0..TT-1; backward walks TT-1..0 (its x/out
        # blocks already come from the time-reversed block via the index_map).
        for i in range(TT):
            rf = i * B
            rb = (TT - 1 - i) * B
            hf = cell(gxf[rf:rf + B, :], hf, whh_f, bhn_f)
            hb = cell(gxb[rb:rb + B, :], hb, whh_b, bhn_b)
            outf_ref[rf:rf + B, :] = hf.astype(outf_ref.dtype)
            outb_ref[rb:rb + B, :] = hb.astype(outb_ref.dtype)
        hf_ref[...] = hf
        hb_ref[...] = hb
    return kernel


def gru_bidir_layer(srcs, layer_params, batch, block_rows):
    """srcs: list of S bf16 arrays (T*B, D_src).  Returns (out_f, out_b) bf16."""
    S = len(srcs)
    TB = srcs[0].shape[0]
    H = layer_params["w_hh"].shape[1]
    nblk = TB // block_rows

    def fwd_map(t):
        return (t, 0)

    def bwd_map(t, n=nblk):
        return (n - 1 - t, 0)

    x_fwd_specs = [pl.BlockSpec((block_rows, s.shape[1]), fwd_map) for s in srcs]
    x_bwd_specs = [pl.BlockSpec((block_rows, s.shape[1]), bwd_map) for s in srcs]
    # Weights/biases: whole-array VMEM residents (loaded once, no double buffer).
    resident = pl.BlockSpec(memory_space=pltpu.MemorySpace.VMEM)

    return pl.pallas_call(
        _make_gru_layer_kernel(S),
        out_shape=(jax.ShapeDtypeStruct((TB, H), jnp.bfloat16),
                   jax.ShapeDtypeStruct((TB, H), jnp.bfloat16)),
        grid_spec=pltpu.PrefetchScalarGridSpec(
            num_scalar_prefetch=0,
            grid=(nblk,),
            in_specs=x_fwd_specs + x_bwd_specs + [resident] * 4,
            out_specs=(pl.BlockSpec((block_rows, H), fwd_map),
                       pl.BlockSpec((block_rows, H), bwd_map)),
            scratch_shapes=[pltpu.VMEM((batch, H), jnp.float32),
                            pltpu.VMEM((batch, H), jnp.float32)],
        ),
        compiler_params=pltpu.CompilerParams(
            dimension_semantics=("arbitrary",),       # recurrence over time
            vmem_limit_bytes=48 * 1024 * 1024),
    )(*srcs, *srcs, layer_params["w_ih"], layer_params["b_ih"],
      layer_params["w_hh"], layer_params["b_hn"])


# ----------------------------------------------------------------------------
# Final classifier: cat(h_fwd, h_bwd) @ W_fc + b as a split-K matmul.
# ----------------------------------------------------------------------------
def _fc_kernel(hf_ref, hb_ref, w_ref, b_ref, o_ref):
    o_ref[...] = (
        jnp.dot(hf_ref[...].astype(jnp.bfloat16), w_ref[0],
                preferred_element_type=jnp.float32)
        + jnp.dot(hb_ref[...].astype(jnp.bfloat16), w_ref[1],
                  preferred_element_type=jnp.float32)
        + b_ref[...]
    )


def fc_layer(h_f, h_b, w, b):
    """h_f, h_b: (B, H) bf16; w: (2, H, C) bf16; b: (1, C) f32 -> (B, C) f32."""
    B = h_f.shape[0]
    C = w.shape[-1]
    vmem = pltpu.MemorySpace.VMEM
    return pl.pallas_call(
        _fc_kernel,
        out_shape=jax.ShapeDtypeStruct((B, C), jnp.float32),
        in_specs=[pl.BlockSpec(memory_space=vmem)] * 4,
        out_specs=pl.BlockSpec(memory_space=vmem),
    )(h_f, h_b, w, b)


# ----------------------------------------------------------------------------
# Model: parameter construction + forward pass
# ----------------------------------------------------------------------------
def init_params(key, vocab_size, embedding_dim, hidden_dim, n_classes, n_layers):
    keys = iter(jax.random.split(key, 3 + 8 * n_layers))

    params = {}
    # Embedding stored bf16: it is only ever consumed as a bf16 MXU operand.
    params["embedding"] = jax.random.normal(
        next(keys), (vocab_size, embedding_dim), dtype=jnp.float32
    ).astype(jnp.bfloat16)

    H = hidden_dim
    G = 3 * H
    bound = 1.0 / float(hidden_dim) ** 0.5
    gru = []
    for layer in range(n_layers):
        n_src = 1 if layer == 0 else 2             # source streams feeding this layer
        d_src = embedding_dim if layer == 0 else H
        d_in = n_src * d_src
        w_ih_dirs, w_hh_dirs, b_ih_dirs, b_hn_dirs = [], [], [], []
        for _direction in range(2):                # 0 = forward, 1 = backward
            w_ih = jax.random.uniform(next(keys), (G, d_in), jnp.float32, -bound, bound)
            w_hh = jax.random.uniform(next(keys), (G, H), jnp.float32, -bound, bound)
            b_ih = jax.random.uniform(next(keys), (G,), jnp.float32, -bound, bound)
            b_hh = jax.random.uniform(next(keys), (G,), jnp.float32, -bound, bound)
            # Transposed (D_in, 3H), input dim split by source stream [fwd; bwd].
            w_ih_dirs.append(w_ih.T.reshape(n_src, d_src, G))
            w_hh_dirs.append(w_hh.T)               # (H, 3H)
            # Fold b_hr, b_hz into b_ih (exact); keep only b_hn in-kernel.
            b_fold = b_ih + jnp.concatenate(
                [b_hh[:2 * H], jnp.zeros((H,), jnp.float32)])
            b_ih_dirs.append(b_fold[None, :])      # (1, 3H)
            b_hn_dirs.append(b_hh[2 * H:][None, :])  # (1, H)
        gru.append({
            "w_ih": jnp.stack(w_ih_dirs).astype(jnp.bfloat16),   # (2, S, D_src, 3H)
            "w_hh": jnp.stack(w_hh_dirs).astype(jnp.bfloat16),   # (2, H, 3H)
            "b_ih": jnp.stack(b_ih_dirs),                        # (2, 1, 3H) f32
            "b_hn": jnp.stack(b_hn_dirs),                        # (2, 1, H)  f32
        })
    params["gru"] = gru

    fc_bound = 1.0 / float(2 * hidden_dim) ** 0.5
    fc_w = jax.random.uniform(next(keys), (n_classes, 2 * H), jnp.float32,
                              -fc_bound, fc_bound)
    fc_b = jax.random.uniform(next(keys), (n_classes,), jnp.float32,
                              -fc_bound, fc_bound)
    params["fc_w"] = fc_w.T.reshape(2, H, n_classes).astype(jnp.bfloat16)  # (2, H, C)
    params["fc_b"] = fc_b[None, :]                                         # (1, C) f32
    return params


@functools.partial(jax.jit, static_argnames=("n_layers",))
def gru_classifier_forward(sentence, params, n_layers):
    """sentence: (B, T) int32 token ids -> (B, n_classes) logits (f32)."""
    B, T = sentence.shape
    emb = params["embedding"]
    E = emb.shape[1]

    # Embedding lookup (gather) kept in plain JAX glue; time-major rows (t*B + b).
    x = jnp.take(emb, sentence.T, axis=0).reshape(T * B, E)     # (T*B, E) bf16

    srcs = [x]
    h_f_final = h_b_final = None
    for layer in range(n_layers):
        p = params["gru"][layer]
        H = p["w_hh"].shape[1]
        d_in = sum(s.shape[1] for s in srcs)
        block_rows = _pick_time_block_steps(T, B, H, d_in) * B
        out_f, out_b = gru_bidir_layer(srcs, p, B, block_rows)
        h_f_final = out_f[(T - 1) * B:, :]   # forward final hidden  == hidden[-2]
        h_b_final = out_b[:B, :]             # backward final hidden == hidden[-1]
        # TODO(synk): inter-layer dropout (p=0.3) is train-only; eval forward omits it.
        srcs = [out_f, out_b]                # next layer consumes both streams directly

    # torch.cat((hidden[-2], hidden[-1]), dim=1) @ fc done as a split-K matmul.
    return fc_layer(h_f_final, h_b_final, params["fc_w"], params["fc_b"])


# ----------------------------------------------------------------------------
# Driver
# ----------------------------------------------------------------------------
if __name__ == "__main__":
    vocab_size = 50
    embedding_dim = 16
    hidden_dim = 32
    n_classes = 5
    n_layers = 2
    batch = 2
    seq_len = 8

    key = jax.random.PRNGKey(0)
    k_params, k_sent = jax.random.split(key)

    params = init_params(k_params, vocab_size, embedding_dim, hidden_dim,
                         n_classes, n_layers)
    sentence = jax.random.randint(k_sent, (batch, seq_len), 0, vocab_size,
                                  dtype=jnp.int32)

    logits = gru_classifier_forward(sentence, params, n_layers)
    jax.block_until_ready(logits)

    assert logits.shape == (batch, n_classes)
    assert bool(jnp.all(jnp.isfinite(logits)))
    print("KERNEL_OK")
</pallas_src>

<mosaic_0001>
module attributes {stable_mosaic.version = 11 : i64} {
  func.func @_fc_kernel(%arg0: memref<2x32xbf16, #tpu.memory_space<vmem>>, %arg1: memref<2x32xbf16, #tpu.memory_space<vmem>>, %arg2: memref<2x32x5xbf16, #tpu.memory_space<vmem>>, %arg3: memref<1x5xf32, #tpu.memory_space<vmem>>, %arg4: memref<2x5xf32, #tpu.memory_space<vmem>>) attributes {dimension_semantics = [], scalar_prefetch = 0 : i64, scratch_operands = 0 : i64, tpu.core_type = #tpu.core_type<tc>} {
    %c0 = arith.constant 0 : index
    %c0_0 = arith.constant 0 : index
    %0 = vector.load %arg0[%c0, %c0_0] : memref<2x32xbf16, #tpu.memory_space<vmem>>, vector<2x32xbf16>
    %c0_1 = arith.constant 0 : index
    %c0_2 = arith.constant 0 : index
    %c0_3 = arith.constant 0 : index
    %1 = vector.load %arg2[%c0_1, %c0_2, %c0_3] : memref<2x32x5xbf16, #tpu.memory_space<vmem>>, vector<1x32x5xbf16>
    %2 = vector.shape_cast %1 : vector<1x32x5xbf16> to vector<32x5xbf16>
    %cst = arith.constant dense<0.000000e+00> : vector<2x5xf32>
    %3 = tpu.matmul %0, %2, %cst {dimension_numbers = #tpu.dot_dimension_numbers<[1], [0], [0], [1], [0, 0, 1, 1], [], []>} : vector<2x32xbf16>, vector<32x5xbf16>, vector<2x5xf32> -> vector<2x5xf32>
    %c0_4 = arith.constant 0 : index
    %c0_5 = arith.constant 0 : index
    %4 = vector.load %arg1[%c0_4, %c0_5] : memref<2x32xbf16, #tpu.memory_space<vmem>>, vector<2x32xbf16>
    %c1 = arith.constant 1 : index
    %c0_6 = arith.constant 0 : index
    %c0_7 = arith.constant 0 : index
    %5 = vector.load %arg2[%c1, %c0_6, %c0_7] : memref<2x32x5xbf16, #tpu.memory_space<vmem>>, vector<1x32x5xbf16>
    %6 = vector.shape_cast %5 : vector<1x32x5xbf16> to vector<32x5xbf16>
    %cst_8 = arith.constant dense<0.000000e+00> : vector<2x5xf32>
    %7 = tpu.matmul %4, %6, %cst_8 {dimension_numbers = #tpu.dot_dimension_numbers<[1], [0], [0], [1], [0, 0, 1, 1], [], []>} : vector<2x32xbf16>, vector<32x5xbf16>, vector<2x5xf32> -> vector<2x5xf32>
    %8 = arith.addf %3, %7 : vector<2x5xf32>
    %c0_9 = arith.constant 0 : index
    %c0_10 = arith.constant 0 : index
    %9 = vector.load %arg3[%c0_9, %c0_10] : memref<1x5xf32, #tpu.memory_space<vmem>>, vector<1x5xf32>
    %10 = vector.broadcast %9 : vector<1x5xf32> to vector<2x5xf32>
    %11 = arith.addf %8, %10 : vector<2x5xf32>
    %c0_11 = arith.constant 0 : index
    %c0_12 = arith.constant 0 : index
    %12 = vector.load %arg4[%c0_11, %c0_12] : memref<2x5xf32, #tpu.memory_space<vmem>>, vector<2x5xf32>
    tpu.vector_store %arg4[%c0_11, %c0_12], %11 {strides = array<i32>} : memref<2x5xf32, #tpu.memory_space<vmem>>, vector<2x5xf32>,
    return
  }
}

module attributes {stable_mosaic.version = 11 : i64} {
  func.func @kernel(%arg0: i32, %arg1: memref<16x16xbf16, #tpu.memory_space<vmem>>, %arg2: memref<16x16xbf16, #tpu.memory_space<vmem>>, %arg3: memref<2x1x16x96xbf16, #tpu.memory_space<vmem>>, %arg4: memref<2x1x96xf32, #tpu.memory_space<vmem>>, %arg5: memref<2x32x96xbf16, #tpu.memory_space<vmem>>, %arg6: memref<2x1x32xf32, #tpu.memory_space<vmem>>, %arg7: memref<16x32xbf16, #tpu.memory_space<vmem>>, %arg8: memref<16x32xbf16, #tpu.memory_space<vmem>>, %arg9: memref<2x32xf32, #tpu.memory_space<vmem>>, %arg10: memref<2x32xf32, #tpu.memory_space<vmem>>) attributes {dimension_semantics = [#tpu.dimension_semantics<arbitrary>], iteration_bounds = array<i64: 1>, scalar_prefetch = 0 : i64, scratch_operands = 2 : i64, tpu.core_type = #tpu.core_type<tc>, window_params = [{transform_indices = @transform_0, window_bounds = array<i64: 16, 16>}, {transform_indices = @transform_1, window_bounds = array<i64: 16, 16>}, {pipeline_mode = #tpu.pipeline_mode<synchronous>, transform_indices = @transform_2, window_bounds = array<i64: 2, 1, 16, 96>}, {pipeline_mode = #tpu.pipeline_mode<synchronous>, transform_indices = @transform_3, window_bounds = array<i64: 2, 1, 96>}, {pipeline_mode = #tpu.pipeline_mode<synchronous>, transform_indices = @transform_4, window_bounds = array<i64: 2, 32, 96>}, {pipeline_mode = #tpu.pipeline_mode<synchronous>, transform_indices = @transform_5, window_bounds = array<i64: 2, 1, 32>}, {transform_indices = @transform_6, window_bounds = array<i64: 16, 32>}, {transform_indices = @transform_7, window_bounds = array<i64: 16, 32>}]} {
    %c0_i32 = arith.constant 0 : i32
    %0 = arith.cmpi eq, %arg0, %c0_i32 : i32
    %1 = arith.extui %0 : i1 to i32
    %c0_i32_0 = arith.constant 0 : i32
    %2 = arith.cmpi ne, %1, %c0_i32_0 : i32
    scf.if %2 {
      %cst_127 = arith.constant 0.000000e+00 : f32
      %559 = vector.broadcast %cst_127 : f32 to vector<2x32xf32>
      %c0_128 = arith.constant 0 : index
      %c0_129 = arith.constant 0 : index
      %560 = vector.load %arg9[%c0_128, %c0_129] : memref<2x32xf32, #tpu.memory_space<vmem>>, vector<2x32xf32>
      tpu.vector_store %arg9[%c0_128, %c0_129], %559 {strides = array<i32>} : memref<2x32xf32, #tpu.memory_space<vmem>>, vector<2x32xf32>,
      %cst_130 = arith.constant 0.000000e+00 : f32
      %561 = vector.broadcast %cst_130 : f32 to vector<2x32xf32>
      %c0_131 = arith.constant 0 : index
      %c0_132 = arith.constant 0 : index
      %562 = vector.load %arg10[%c0_131, %c0_132] : memref<2x32xf32, #tpu.memory_space<vmem>>, vector<2x32xf32>
      tpu.vector_store %arg10[%c0_131, %c0_132], %561 {strides = array<i32>} : memref<2x32xf32, #tpu.memory_space<vmem>>, vector<2x32xf32>,
    } else {
    }
    %c0 = arith.constant 0 : index
    %c0_1 = arith.constant 0 : index
    %3 = vector.load %arg1[%c0, %c0_1] : memref<16x16xbf16, #tpu.memory_space<vmem>>, vector<16x16xbf16>
    %c0_2 = arith.constant 0 : index
    %c0_3 = arith.constant 0 : index
    %c0_4 = arith.constant 0 : index
    %c0_5 = arith.constant 0 : index
    %4 = vector.load %arg3[%c0_2, %c0_3, %c0_4, %c0_5] : memref<2x1x16x96xbf16, #tpu.memory_space<vmem>>, vector<1x1x16x96xbf16>
    %5 = vector.shape_cast %4 : vector<1x1x16x96xbf16> to vector<16x96xbf16>
    %cst = arith.constant dense<0.000000e+00> : vector<16x96xf32>
    %6 = tpu.matmul %3, %5, %cst {dimension_numbers = #tpu.dot_dimension_numbers<[1], [0], [0], [1], [0, 0, 1, 1], [], []>} : vector<16x16xbf16>, vector<16x96xbf16>, vector<16x96xf32> -> vector<16x96xf32>
    %c0_6 = arith.constant 0 : index
    %c0_7 = arith.constant 0 : index
    %c0_8 = arith.constant 0 : index
    %7 = vector.load %arg4[%c0_6, %c0_7, %c0_8] : memref<2x1x96xf32, #tpu.memory_space<vmem>>, vector<1x1x96xf32>
    %8 = vector.shape_cast %7 : vector<1x1x96xf32> to vector<1x96xf32>
    %9 = vector.broadcast %8 : vector<1x96xf32> to vector<16x96xf32>
    %10 = arith.addf %6, %9 : vector<16x96xf32>
    %c0_9 = arith.constant 0 : index
    %c0_10 = arith.constant 0 : index
    %11 = vector.load %arg2[%c0_9, %c0_10] : memref<16x16xbf16, #tpu.memory_space<vmem>>, vector<16x16xbf16>
    %c1 = arith.constant 1 : index
    %c0_11 = arith.constant 0 : index
    %c0_12 = arith.constant 0 : index
    %c0_13 = arith.constant 0 : index
    %12 = vector.load %arg3[%c1, %c0_11, %c0_12, %c0_13] : memref<2x1x16x96xbf16, #tpu.memory_space<vmem>>, vector<1x1x16x96xbf16>
    %13 = vector.shape_cast %12 : vector<1x1x16x96xbf16> to vector<16x96xbf16>
    %cst_14 = arith.constant dense<0.000000e+00> : vector<16x96xf32>
    %14 = tpu.matmul %11, %13, %cst_14 {dimension_numbers = #tpu.dot_dimension_numbers<[1], [0], [0], [1], [0, 0, 1, 1], [], []>} : vector<16x16xbf16>, vector<16x96xbf16>, vector<16x96xf32> -> vector<16x96xf32>
    %c1_15 = arith.constant 1 : index
    %c0_16 = arith.constant 0 : index
    %c0_17 = arith.constant 0 : index
    %15 = vector.load %arg4[%c1_15, %c0_16, %c0_17] : memref<2x1x96xf32, #tpu.memory_space<vmem>>, vector<1x1x96xf32>
    %16 = vector.shape_cast %15 : vector<1x1x96xf32> to vector<1x96xf32>
    %17 = vector.broadcast %16 : vector<1x96xf32> to vector<16x96xf32>
    %18 = arith.addf %14, %17 : vector<16x96xf32>
    %c0_18 = arith.constant 0 : index
    %c0_19 = arith.constant 0 : index
    %c0_20 = arith.constant 0 : index
    %19 = vector.load %arg5[%c0_18, %c0_19, %c0_20] : memref<2x32x96xbf16, #tpu.memory_space<vmem>>, vector<1x32x96xbf16>
    %20 = vector.shape_cast %19 : vector<1x32x96xbf16> to vector<32x96xbf16>
    %c1_21 = arith.constant 1 : index
    %c0_22 = arith.constant 0 : index
    %c0_23 = arith.constant 0 : index
    %21 = vector.load %arg5[%c1_21, %c0_22, %c0_23] : memref<2x32x96xbf16, #tpu.memory_space<vmem>>, vector<1x32x96xbf16>
    %22 = vector.shape_cast %21 : vector<1x32x96xbf16> to vector<32x96xbf16>
    %c0_24 = arith.constant 0 : index
    %c0_25 = arith.constant 0 : index
    %c0_26 = arith.constant 0 : index
    %23 = vector.load %arg6[%c0_24, %c0_25, %c0_26] : memref<2x1x32xf32, #tpu.memory_space<vmem>>, vector<1x1x32xf32>
    %24 = vector.shape_cast %23 : vector<1x1x32xf32> to vector<1x32xf32>
    %c1_27 = arith.constant 1 : index
    %c0_28 = arith.constant 0 : index
    %c0_29 = arith.constant 0 : index
    %25 = vector.load %arg6[%c1_27, %c0_28, %c0_29] : memref<2x1x32xf32, #tpu.memory_space<vmem>>, vector<1x1x32xf32>
    %26 = vector.shape_cast %25 : vector<1x1x32xf32> to vector<1x32xf32>
    %c0_30 = arith.constant 0 : index
    %c0_31 = arith.constant 0 : index
    %27 = vector.load %arg9[%c0_30, %c0_31] : memref<2x32xf32, #tpu.memory_space<vmem>>, vector<2x32xf32>
    %c0_32 = arith.constant 0 : index
    %c0_33 = arith.constant 0 : index
    %28 = vector.load %arg10[%c0_32, %c0_33] : memref<2x32xf32, #tpu.memory_space<vmem>>, vector<2x32xf32>
    %29 = vector.extract_strided_slice %10 {offsets = [0, 0], sizes = [2, 96], strides = [1, 1]} : vector<16x96xf32> to vector<2x96xf32>
    %30 = arith.truncf %27 : vector<2x32xf32> to vector<2x32xbf16>
    %cst_34 = arith.constant dense<0.000000e+00> : vector<2x96xf32>
    %31 = tpu.matmul %30, %20, %cst_34 {dimension_numbers = #tpu.dot_dimension_numbers<[1], [0], [0], [1], [0, 0, 1, 1], [], []>} : vector<2x32xbf16>, vector<32x96xbf16>, vector<2x96xf32> -> vector<2x96xf32>
    %32 = vector.extract_strided_slice %29 {offsets = [0, 0], sizes = [2, 32], strides = [1, 1]} : vector<2x96xf32> to vector<2x32xf32>
    %33 = vector.extract_strided_slice %31 {offsets = [0, 0], sizes = [2, 32], strides = [1, 1]} : vector<2x96xf32> to vector<2x32xf32>
    %34 = arith.addf %32, %33 : vector<2x32xf32>
    %35 = arith.negf %34 : vector<2x32xf32>
    %36 = math.exp %35 : vector<2x32xf32>
    %cst_35 = arith.constant 1.000000e+00 : f32
    %37 = vector.broadcast %cst_35 : f32 to vector<2x32xf32>
    %38 = arith.addf %37, %36 : vector<2x32xf32>
    %39 = arith.divf %37, %38 : vector<2x32xf32>
    %40 = vector.extract_strided_slice %29 {offsets = [0, 32], sizes = [2, 32], strides = [1, 1]} : vector<2x96xf32> to vector<2x32xf32>
    %41 = vector.extract_strided_slice %31 {offsets = [0, 32], sizes = [2, 32], strides = [1, 1]} : vector<2x96xf32> to vector<2x32xf32>
    %42 = arith.addf %40, %41 : vector<2x32xf32>
    %43 = arith.negf %42 : vector<2x32xf32>
    %44 = math.exp %43 : vector<2x32xf32>
    %cst_36 = arith.constant 1.000000e+00 : f32
    %45 = vector.broadcast %cst_36 : f32 to vector<2x32xf32>
    %46 = arith.addf %45, %44 : vector<2x32xf32>
    %47 = arith.divf %45, %46 : vector<2x32xf32>
    %48 = vector.extract_strided_slice %29 {offsets = [0, 64], sizes = [2, 32], strides = [1, 1]} : vector<2x96xf32> to vector<2x32xf32>
    %49 = vector.extract_strided_slice %31 {offsets = [0, 64], sizes = [2, 32], strides = [1, 1]} : vector<2x96xf32> to vector<2x32xf32>
    %50 = vector.broadcast %24 : vector<1x32xf32> to vector<2x32xf32>
    %51 = arith.addf %49, %50 : vector<2x32xf32>
    %52 = arith.mulf %39, %51 : vector<2x32xf32>
    %53 = arith.addf %48, %52 : vector<2x32xf32>
    %54 = math.tanh %53 : vector<2x32xf32>
    %cst_37 = arith.constant 1.000000e+00 : f32
    %55 = vector.broadcast %cst_37 : f32 to vector<2x32xf32>
    %56 = arith.subf %55, %47 : vector<2x32xf32>
    %57 = arith.mulf %56, %54 : vector<2x32xf32>
    %58 = arith.mulf %47, %27 : vector<2x32xf32>
    %59 = arith.addf %57, %58 : vector<2x32xf32>
    %60 = vector.extract_strided_slice %18 {offsets = [14, 0], sizes = [2, 96], strides = [1, 1]} : vector<16x96xf32> to vector<2x96xf32>
    %61 = arith.truncf %28 : vector<2x32xf32> to vector<2x32xbf16>
    %cst_38 = arith.constant dense<0.000000e+00> : vector<2x96xf32>
    %62 = tpu.matmul %61, %22, %cst_38 {dimension_numbers = #tpu.dot_dimension_numbers<[1], [0], [0], [1], [0, 0, 1, 1], [], []>} : vector<2x32xbf16>, vector<32x96xbf16>, vector<2x96xf32> -> vector<2x96xf32>
    %63 = vector.extract_strided_slice %60 {offsets = [0, 0], sizes = [2, 32], strides = [1, 1]} : vector<2x96xf32> to vector<2x32xf32>
    %64 = vector.extract_strided_slice %62 {offsets = [0, 0], sizes = [2, 32], strides = [1, 1]} : vector<2x96xf32> to vector<2x32xf32>
    %65 = arith.addf %63, %64 : vector<2x32xf32>
    %66 = arith.negf %65 : vector<2x32xf32>
    %67 = math.exp %66 : vector<2x32xf32>
    %cst_39 = arith.constant 1.000000e+00 : f32
    %68 = vector.broadcast %cst_39 : f32 to vector<2x32xf32>
    %69 = arith.addf %68, %67 : vector<2x32xf32>
    %70 = arith.divf %68, %69 : vector<2x32xf32>
    %71 = vector.extract_strided_slice %60 {offsets = [0, 32], sizes = [2, 32], strides = [1, 1]} : vector<2x96xf32> to vector<2x32xf32>
    %72 = vector.extract_strided_slice %62 {offsets = [0, 32], sizes = [2, 32], strides = [1, 1]} : vector<2x96xf32> to vector<2x32xf32>
    %73 = arith.addf %71, %72 : vector<2x32xf32>
    %74 = arith.negf %73 : vector<2x32xf32>
    %75 = math.exp %74 : vector<2x32xf32>
    %cst_40 = arith.constant 1.000000e+00 : f32
    %76 = vector.broadcast %cst_40 : f32 to vector<2x32xf32>
    %77 = arith.addf %76, %75 : vector<2x32xf32>
    %78 = arith.divf %76, %77 : vector<2x32xf32>
    %79 = vector.extract_strided_slice %60 {offsets = [0, 64], sizes = [2, 32], strides = [1, 1]} : vector<2x96xf32> to vector<2x32xf32>
    %80 = vector.extract_strided_slice %62 {offsets = [0, 64], sizes = [2, 32], strides = [1, 1]} : vector<2x96xf32> to vector<2x32xf32>
    %81 = vector.broadcast %26 : vector<1x32xf32> to vector<2x32xf32>
    %82 = arith.addf %80, %81 : vector<2x32xf32>
    %83 = arith.mulf %70, %82 : vector<2x32xf32>
    %84 = arith.addf %79, %83 : vector<2x32xf32>
    %85 = math.tanh %84 : vector<2x32xf32>
    %cst_41 = arith.constant 1.000000e+00 : f32
    %86 = vector.broadcast %cst_41 : f32 to vector<2x32xf32>
    %87 = arith.subf %86, %78 : vector<2x32xf32>
    %88 = arith.mulf %87, %85 : vector<2x32xf32>
    %89 = arith.mulf %78, %28 : vector<2x32xf32>
    %90 = arith.addf %88, %89 : vector<2x32xf32>
    %91 = arith.truncf %59 : vector<2x32xf32> to vector<2x32xbf16>
    %c0_42 = arith.constant 0 : index
    %c0_43 = arith.constant 0 : index
    %92 = vector.load %arg7[%c0_42, %c0_43] : memref<16x32xbf16, #tpu.memory_space<vmem>>, vector<2x32xbf16>
    tpu.vector_store %arg7[%c0_42, %c0_43], %91 {strides = array<i32>} : memref<16x32xbf16, #tpu.memory_space<vmem>>, vector<2x32xbf16>,
    %93 = arith.truncf %90 : vector<2x32xf32> to vector<2x32xbf16>
    %c14 = arith.constant 14 : index
    %c0_44 = arith.constant 0 : index
    %94 = vector.load %arg8[%c14, %c0_44] : memref<16x32xbf16, #tpu.memory_space<vmem>>, vector<2x32xbf16>
    tpu.vector_store %arg8[%c14, %c0_44], %93 {strides = array<i32>} : memref<16x32xbf16, #tpu.memory_space<vmem>>, vector<2x32xbf16>,
    %95 = vector.extract_strided_slice %10 {offsets = [2, 0], sizes = [2, 96], strides = [1, 1]} : vector<16x96xf32> to vector<2x96xf32>
    %96 = arith.truncf %59 : vector<2x32xf32> to vector<2x32xbf16>
    %cst_45 = arith.constant dense<0.000000e+00> : vector<2x96xf32>
    %97 = tpu.matmul %96, %20, %cst_45 {dimension_numbers = #tpu.dot_dimension_numbers<[1], [0], [0], [1], [0, 0, 1, 1], [], []>} : vector<2x32xbf16>, vector<32x96xbf16>, vector<2x96xf32> -> vector<2x96xf32>
    %98 = vector.extract_strided_slice %95 {offsets = [0, 0], sizes = [2, 32], strides = [1, 1]} : vector<2x96xf32> to vector<2x32xf32>
    %99 = vector.extract_strided_slice %97 {offsets = [0, 0], sizes = [2, 32], strides = [1, 1]} : vector<2x96xf32> to vector<2x32xf32>
    %100 = arith.addf %98, %99 : vector<2x32xf32>
    %101 = arith.negf %100 : vector<2x32xf32>
    %102 = math.exp %101 : vector<2x32xf32>
    %cst_46 = arith.constant 1.000000e+00 : f32
    %103 = vector.broadcast %cst_46 : f32 to vector<2x32xf32>
    %104 = arith.addf %103, %102 : vector<2x32xf32>
    %105 = arith.divf %103, %104 : vector<2x32xf32>
    %106 = vector.extract_strided_slice %95 {offsets = [0, 32], sizes = [2, 32], strides = [1, 1]} : vector<2x96xf32> to vector<2x32xf32>
    %107 = vector.extract_strided_slice %97 {offsets = [0, 32], sizes = [2, 32], strides = [1, 1]} : vector<2x96xf32> to vector<2x32xf32>
    %108 = arith.addf %106, %107 : vector<2x32xf32>
    %109 = arith.negf %108 : vector<2x32xf32>
    %110 = math.exp %109 : vector<2x32xf32>
    %cst_47 = arith.constant 1.000000e+00 : f32
    %111 = vector.broadcast %cst_47 : f32 to vector<2x32xf32>
    %112 = arith.addf %111, %110 : vector<2x32xf32>
    %113 = arith.divf %111, %112 : vector<2x32xf32>
    %114 = vector.extract_strided_slice %95 {offsets = [0, 64], sizes = [2, 32], strides = [1, 1]} : vector<2x96xf32> to vector<2x32xf32>
    %115 = vector.extract_strided_slice %97 {offsets = [0, 64], sizes = [2, 32], strides = [1, 1]} : vector<2x96xf32> to vector<2x32xf32>
    %116 = vector.broadcast %24 : vector<1x32xf32> to vector<2x32xf32>
    %117 = arith.addf %115, %116 : vector<2x32xf32>
    %118 = arith.mulf %105, %117 : vector<2x32xf32>
    %119 = arith.addf %114, %118 : vector<2x32xf32>
    %120 = math.tanh %119 : vector<2x32xf32>
    %cst_48 = arith.constant 1.000000e+00 : f32
    %121 = vector.broadcast %cst_48 : f32 to vector<2x32xf32>
    %122 = arith.subf %121, %113 : vector<2x32xf32>
    %123 = arith.mulf %122, %120 : vector<2x32xf32>
    %124 = arith.mulf %113, %59 : vector<2x32xf32>
    %125 = arith.addf %123, %124 : vector<2x32xf32>
    %126 = vector.extract_strided_slice %18 {offsets = [12, 0], sizes = [2, 96], strides = [1, 1]} : vector<16x96xf32> to vector<2x96xf32>
    %127 = arith.truncf %90 : vector<2x32xf32> to vector<2x32xbf16>
    %cst_49 = arith.constant dense<0.000000e+00> : vector<2x96xf32>
    %128 = tpu.matmul %127, %22, %cst_49 {dimension_numbers = #tpu.dot_dimension_numbers<[1], [0], [0], [1], [0, 0, 1, 1], [], []>} : vector<2x32xbf16>, vector<32x96xbf16>, vector<2x96xf32> -> vector<2x96xf32>
    %129 = vector.extract_strided_slice %126 {offsets = [0, 0], sizes = [2, 32], strides = [1, 1]} : vector<2x96xf32> to vector<2x32xf32>
    %130 = vector.extract_strided_slice %128 {offsets = [0, 0], sizes = [2, 32], strides = [1, 1]} : vector<2x96xf32> to vector<2x32xf32>
    %131 = arith.addf %129, %130 : vector<2x32xf32>
    %132 = arith.negf %131 : vector<2x32xf32>
    %133 = math.exp %132 : vector<2x32xf32>
    %cst_50 = arith.constant 1.000000e+00 : f32
    %134 = vector.broadcast %cst_50 : f32 to vector<2x32xf32>
    %135 = arith.addf %134, %133 : vector<2x32xf32>
    %136 = arith.divf %134, %135 : vector<2x32xf32>
    %137 = vector.extract_strided_slice %126 {offsets = [0, 32], sizes = [2, 32], strides = [1, 1]} : vector<2x96xf32> to vector<2x32xf32>
    %138 = vector.extract_strided_slice %128 {offsets = [0, 32], sizes = [2, 32], strides = [1, 1]} : vector<2x96xf32> to vector<2x32xf32>
    %139 = arith.addf %137, %138 : vector<2x32xf32>
    %140 = arith.negf %139 : vector<2x32xf32>
    %141 = math.exp %140 : vector<2x32xf32>
    %cst_51 = arith.constant 1.000000e+00 : f32
    %142 = vector.broadcast %cst_51 : f32 to vector<2x32xf32>
    %143 = arith.addf %142, %141 : vector<2x32xf32>
    %144 = arith.divf %142, %143 : vector<2x32xf32>
    %145 = vector.extract_strided_slice %126 {offsets = [0, 64], sizes = [2, 32], strides = [1, 1]} : vector<2x96xf32> to vector<2x32xf32>
    %146 = vector.extract_strided_slice %128 {offsets = [0, 64], sizes = [2, 32], strides = [1, 1]} : vector<2x96xf32> to vector<2x32xf32>
    %147 = vector.broadcast %26 : vector<1x32xf32> to vector<2x32xf32>
    %148 = arith.addf %146, %147 : vector<2x32xf32>
    %149 = arith.mulf %136, %148 : vector<2x32xf32>
    %150 = arith.addf %145, %149 : vector<2x32xf32>
    %151 = math.tanh %150 : vector<2x32xf32>
    %cst_52 = arith.constant 1.000000e+00 : f32
    %152 = vector.broadcast %cst_52 : f32 to vector<2x32xf32>
    %153 = arith.subf %152, %144 : vector<2x32xf32>
    %154 = arith.mulf %153, %151 : vector<2x32xf32>
    %155 = arith.mulf %144, %90 : vector<2x32xf32>
    %156 = arith.addf %154, %155 : vector<2x32xf32>
    %157 = arith.truncf %125 : vector<2x32xf32> to vector<2x32xbf16>
    %c2 = arith.constant 2 : index
    %c0_53 = arith.constant 0 : index
    %158 = vector.load %arg7[%c2, %c0_53] : memref<16x32xbf16, #tpu.memory_space<vmem>>, vector<2x32xbf16>
    tpu.vector_store %arg7[%c2, %c0_53], %157 {strides = array<i32>} : memref<16x32xbf16, #tpu.memory_space<vmem>>, vector<2x32xbf16>,
    %159 = arith.truncf %156 : vector<2x32xf32> to vector<2x32xbf16>
    %c12 = arith.constant 12 : index
    %c0_54 = arith.constant 0 : index
    %160 = vector.load %arg8[%c12, %c0_54] : memref<16x32xbf16, #tpu.memory_space<vmem>>, vector<2x32xbf16>
    tpu.vector_store %arg8[%c12, %c0_54], %159 {strides = array<i32>} : memref<16x32xbf16, #tpu.memory_space<vmem>>, vector<2x32xbf16>,
    %161 = vector.extract_strided_slice %10 {offsets = [4, 0], sizes = [2, 96], strides = [1, 1]} : vector<16x96xf32> to vector<2x96xf32>
    %162 = arith.truncf %125 : vector<2x32xf32> to vector<2x32xbf16>
    %cst_55 = arith.constant dense<0.000000e+00> : vector<2x96xf32>
    %163 = tpu.matmul %162, %20, %cst_55 {dimension_numbers = #tpu.dot_dimension_numbers<[1], [0], [0], [1], [0, 0, 1, 1], [], []>} : vector<2x32xbf16>, vector<32x96xbf16>, vector<2x96xf32> -> vector<2x96xf32>
    %164 = vector.extract_strided_slice %161 {offsets = [0, 0], sizes = [2, 32], strides = [1, 1]} : vector<2x96xf32> to vector<2x32xf32>
    %165 = vector.extract_strided_slice %163 {offsets = [0, 0], sizes = [2, 32], strides = [1, 1]} : vector<2x96xf32> to vector<2x32xf32>
    %166 = arith.addf %164, %165 : vector<2x32xf32>
    %167 = arith.negf %166 : vector<2x32xf32>
    %168 = math.exp %167 : vector<2x32xf32>
    %cst_56 = arith.constant 1.000000e+00 : f32
    %169 = vector.broadcast %cst_56 : f32 to vector<2x32xf32>
    %170 = arith.addf %169, %168 : vector<2x32xf32>
    %171 = arith.divf %169, %170 : vector<2x32xf32>
    %172 = vector.extract_strided_slice %161 {offsets = [0, 32], sizes = [2, 32], strides = [1, 1]} : vector<2x96xf32> to vector<2x32xf32>
    %173 = vector.extract_strided_slice %163 {offsets = [0, 32], sizes = [2, 32], strides = [1, 1]} : vector<2x96xf32> to vector<2x32xf32>
    %174 = arith.addf %172, %173 : vector<2x32xf32>
    %175 = arith.negf %174 : vector<2x32xf32>
    %176 = math.exp %175 : vector<2x32xf32>
    %cst_57 = arith.constant 1.000000e+00 : f32
    %177 = vector.broadcast %cst_57 : f32 to vector<2x32xf32>
    %178 = arith.addf %177, %176 : vector<2x32xf32>
    %179 = arith.divf %177, %178 : vector<2x32xf32>
    %180 = vector.extract_strided_slice %161 {offsets = [0, 64], sizes = [2, 32], strides = [1, 1]} : vector<2x96xf32> to vector<2x32xf32>
    %181 = vector.extract_strided_slice %163 {offsets = [0, 64], sizes = [2, 32], strides = [1, 1]} : vector<2x96xf32> to vector<2x32xf32>
    %182 = vector.broadcast %24 : vector<1x32xf32> to vector<2x32xf32>
    %183 = arith.addf %181, %182 : vector<2x32xf32>
    %184 = arith.mulf %171, %183 : vector<2x32xf32>
    %185 = arith.addf %180, %184 : vector<2x32xf32>
    %186 = math.tanh %185 : vector<2x32xf32>
    %cst_58 = arith.constant 1.000000e+00 : f32
    %187 = vector.broadcast %cst_58 : f32 to vector<2x32xf32>
    %188 = arith.subf %187, %179 : vector<2x32xf32>
    %189 = arith.mulf %188, %186 : vector<2x32xf32>
    %190 = arith.mulf %179, %125 : vector<2x32xf32>
    %191 = arith.addf %189, %190 : vector<2x32xf32>
    %192 = vector.extract_strided_slice %18 {offsets = [10, 0], sizes = [2, 96], strides = [1, 1]} : vector<16x96xf32> to vector<2x96xf32>
    %193 = arith.truncf %156 : vector<2x32xf32> to vector<2x32xbf16>
    %cst_59 = arith.constant dense<0.000000e+00> : vector<2x96xf32>
    %194 = tpu.matmul %193, %22, %cst_59 {dimension_numbers = #tpu.dot_dimension_numbers<[1], [0], [0], [1], [0, 0, 1, 1], [], []>} : vector<2x32xbf16>, vector<32x96xbf16>, vector<2x96xf32> -> vector<2x96xf32>
    %195 = vector.extract_strided_slice %192 {offsets = [0, 0], sizes = [2, 32], strides = [1, 1]} : vector<2x96xf32> to vector<2x32xf32>
    %196 = vector.extract_strided_slice %194 {offsets = [0, 0], sizes = [2, 32], strides = [1, 1]} : vector<2x96xf32> to vector<2x32xf32>
    %197 = arith.addf %195, %196 : vector<2x32xf32>
    %198 = arith.negf %197 : vector<2x32xf32>
    %199 = math.exp %198 : vector<2x32xf32>
    %cst_60 = arith.constant 1.000000e+00 : f32
    %200 = vector.broadcast %cst_60 : f32 to vector<2x32xf32>
    %201 = arith.addf %200, %199 : vector<2x32xf32>
    %202 = arith.divf %200, %201 : vector<2x32xf32>
    %203 = vector.extract_strided_slice %192 {offsets = [0, 32], sizes = [2, 32], strides = [1, 1]} : vector<2x96xf32> to vector<2x32xf32>
    %204 = vector.extract_strided_slice %194 {offsets = [0, 32], sizes = [2, 32], strides = [1, 1]} : vector<2x96xf32> to vector<2x32xf32>
    %205 = arith.addf %203, %204 : vector<2x32xf32>
    %206 = arith.negf %205 : vector<2x32xf32>
    %207 = math.exp %206 : vector<2x32xf32>
    %cst_61 = arith.constant 1.000000e+00 : f32
    %208 = vector.broadcast %cst_61 : f32 to vector<2x32xf32>
    %209 = arith.addf %208, %207 : vector<2x32xf32>
    %210 = arith.divf %208, %209 : vector<2x32xf32>
    %211 = vector.extract_strided_slice %192 {offsets = [0, 64], sizes = [2, 32], strides = [1, 1]} : vector<2x96xf32> to vector<2x32xf32>
    %212 = vector.extract_strided_slice %194 {offsets = [0, 64], sizes = [2, 32], strides = [1, 1]} : vector<2x96xf32> to vector<2x32xf32>
    %213 = vector.broadcast %26 : vector<1x32xf32> to vector<2x32xf32>
    %214 = arith.addf %212, %213 : vector<2x32xf32>
    %215 = arith.mulf %202, %214 : vector<2x32xf32>
    %216 = arith.addf %211, %215 : vector<2x32xf32>
    %217 = math.tanh %216 : vector<2x32xf32>
    %cst_62 = arith.constant 1.000000e+00 : f32
    %218 = vector.broadcast %cst_62 : f32 to vector<2x32xf32>
    %219 = arith.subf %218, %210 : vector<2x32xf32>
    %220 = arith.mulf %219, %217 : vector<2x32xf32>
    %221 = arith.mulf %210, %156 : vector<2x32xf32>
    %222 = arith.addf %220, %221 : vector<2x32xf32>
    %223 = arith.truncf %191 : vector<2x32xf32> to vector<2x32xbf16>
    %c4 = arith.constant 4 : index
    %c0_63 = arith.constant 0 : index
    %224 = vector.load %arg7[%c4, %c0_63] : memref<16x32xbf16, #tpu.memory_space<vmem>>, vector<2x32xbf16>
    tpu.vector_store %arg7[%c4, %c0_63], %223 {strides = array<i32>} : memref<16x32xbf16, #tpu.memory_space<vmem>>, vector<2x32xbf16>,
    %225 = arith.truncf %222 : vector<2x32xf32> to vector<2x32xbf16>
    %c10 = arith.constant 10 : index
    %c0_64 = arith.constant 0 : index
    %226 = vector.load %arg8[%c10, %c0_64] : memref<16x32xbf16, #tpu.memory_space<vmem>>, vector<2x32xbf16>
    tpu.vector_store %arg8[%c10, %c0_64], %225 {strides = array<i32>} : memref<16x32xbf16, #tpu.memory_space<vmem>>, vector<2x32xbf16>,
    %227 = vector.extract_strided_slice %10 {offsets = [6, 0], sizes = [2, 96], strides = [1, 1]} : vector<16x96xf32> to vector<2x96xf32>
    %228 = arith.truncf %191 : vector<2x32xf32> to vector<2x32xbf16>
    %cst_65 = arith.constant dense<0.000000e+00> : vector<2x96xf32>
    %229 = tpu.matmul %228, %20, %cst_65 {dimension_numbers = #tpu.dot_dimension_numbers<[1], [0], [0], [1], [0, 0, 1, 1], [], []>} : vector<2x32xbf16>, vector<32x96xbf16>, vector<2x96xf32> -> vector<2x96xf32>
    %230 = vector.extract_strided_slice %227 {offsets = [0, 0], sizes = [2, 32], strides = [1, 1]} : vector<2x96xf32> to vector<2x32xf32>
    %231 = vector.extract_strided_slice %229 {offsets = [0, 0], sizes = [2, 32], strides = [1, 1]} : vector<2x96xf32> to vector<2x32xf32>
    %232 = arith.addf %230, %231 : vector<2x32xf32>
    %233 = arith.negf %232 : vector<2x32xf32>
    %234 = math.exp %233 : vector<2x32xf32>
    %cst_66 = arith.constant 1.000000e+00 : f32
    %235 = vector.broadcast %cst_66 : f32 to vector<2x32xf32>
    %236 = arith.addf %235, %234 : vector<2x32xf32>
    %237 = arith.divf %235, %236 : vector<2x32xf32>
    %238 = vector.extract_strided_slice %227 {offsets = [0, 32], sizes = [2, 32], strides = [1, 1]} : vector<2x96xf32> to vector<2x32xf32>
    %239 = vector.extract_strided_slice %229 {offsets = [0, 32], sizes = [2, 32], strides = [1, 1]} : vector<2x96xf32> to vector<2x32xf32>
    %240 = arith.addf %238, %239 : vector<2x32xf32>
    %241 = arith.negf %240 : vector<2x32xf32>
    %242 = math.exp %241 : vector<2x32xf32>
    %cst_67 = arith.constant 1.000000e+00 : f32
    %243 = vector.broadcast %cst_67 : f32 to vector<2x32xf32>
    %244 = arith.addf %243, %242 : vector<2x32xf32>
    %245 = arith.divf %243, %244 : vector<2x32xf32>
    %246 = vector.extract_strided_slice %227 {offsets = [0, 64], sizes = [2, 32], strides = [1, 1]} : vector<2x96xf32> to vector<2x32xf32>
    %247 = vector.extract_strided_slice %229 {offsets = [0, 64], sizes = [2, 32], strides = [1, 1]} : vector<2x96xf32> to vector<2x32xf32>
    %248 = vector.broadcast %24 : vector<1x32xf32> to vector<2x32xf32>
    %249 = arith.addf %247, %248 : vector<2x32xf32>
    %250 = arith.mulf %237, %249 : vector<2x32xf32>
    %251 = arith.addf %246, %250 : vector<2x32xf32>
    %252 = math.tanh %251 : vector<2x32xf32>
    %cst_68 = arith.constant 1.000000e+00 : f32
    %253 = vector.broadcast %cst_68 : f32 to vector<2x32xf32>
    %254 = arith.subf %253, %245 : vector<2x32xf32>
    %255 = arith.mulf %254, %252 : vector<2x32xf32>
    %256 = arith.mulf %245, %191 : vector<2x32xf32>
    %257 = arith.addf %255, %256 : vector<2x32xf32>
    %258 = vector.extract_strided_slice %18 {offsets = [8, 0], sizes = [2, 96], strides = [1, 1]} : vector<16x96xf32> to vector<2x96xf32>
    %259 = arith.truncf %222 : vector<2x32xf32> to vector<2x32xbf16>
    %cst_69 = arith.constant dense<0.000000e+00> : vector<2x96xf32>
    %260 = tpu.matmul %259, %22, %cst_69 {dimension_numbers = #tpu.dot_dimension_numbers<[1], [0], [0], [1], [0, 0, 1, 1], [], []>} : vector<2x32xbf16>, vector<32x96xbf16>, vector<2x96xf32> -> vector<2x96xf32>
    %261 = vector.extract_strided_slice %258 {offsets = [0, 0], sizes = [2, 32], strides = [1, 1]} : vector<2x96xf32> to vector<2x32xf32>
    %262 = vector.extract_strided_slice %260 {offsets = [0, 0], sizes = [2, 32], strides = [1, 1]} : vector<2x96xf32> to vector<2x32xf32>
    %263 = arith.addf %261, %262 : vector<2x32xf32>
    %264 = arith.negf %263 : vector<2x32xf32>
    %265 = math.exp %264 : vector<2x32xf32>
    %cst_70 = arith.constant 1.000000e+00 : f32
    %266 = vector.broadcast %cst_70 : f32 to vector<2x32xf32>
    %267 = arith.addf %266, %265 : vector<2x32xf32>
    %268 = arith.divf %266, %267 : vector<2x32xf32>
    %269 = vector.extract_strided_slice %258 {offsets = [0, 32], sizes = [2, 32], strides = [1, 1]} : vector<2x96xf32> to vector<2x32xf32>
    %270 = vector.extract_strided_slice %260 {offsets = [0, 32], sizes = [2, 32], strides = [1, 1]} : vector<2x96xf32> to vector<2x32xf32>
    %271 = arith.addf %269, %270 : vector<2x32xf32>
    %272 = arith.negf %271 : vector<2x32xf32>
    %273 = math.exp %272 : vector<2x32xf32>
    %cst_71 = arith.constant 1.000000e+00 : f32
    %274 = vector.broadcast %cst_71 : f32 to vector<2x32xf32>
    %275 = arith.addf %274, %273 : vector<2x32xf32>
    %276 = arith.divf %274, %275 : vector<2x32xf32>
    %277 = vector.extract_strided_slice %258 {offsets = [0, 64], sizes = [2, 32], strides = [1, 1]} : vector<2x96xf32> to vector<2x32xf32>
    %278 = vector.extract_strided_slice %260 {offsets = [0, 64], sizes = [2, 32], strides = [1, 1]} : vector<2x96xf32> to vector<2x32xf32>
    %279 = vector.broadcast %26 : vector<1x32xf32> to vector<2x32xf32>
    %280 = arith.addf %278, %279 : vector<2x32xf32>
    %281 = arith.mulf %268, %280 : vector<2x32xf32>
    %282 = arith.addf %277, %281 : vector<2x32xf32>
    %283 = math.tanh %282 : vector<2x32xf32>
    %cst_72 = arith.constant 1.000000e+00 : f32
    %284 = vector.broadcast %cst_72 : f32 to vector<2x32xf32>
    %285 = arith.subf %284, %276 : vector<2x32xf32>
    %286 = arith.mulf %285, %283 : vector<2x32xf32>
    %287 = arith.mulf %276, %222 : vector<2x32xf32>
    %288 = arith.addf %286, %287 : vector<2x32xf32>
    %289 = arith.truncf %257 : vector<2x32xf32> to vector<2x32xbf16>
    %c6 = arith.constant 6 : index
    %c0_73 = arith.constant 0 : index
    %290 = vector.load %arg7[%c6, %c0_73] : memref<16x32xbf16, #tpu.memory_space<vmem>>, vector<2x32xbf16>
    tpu.vector_store %arg7[%c6, %c0_73], %289 {strides = array<i32>} : memref<16x32xbf16, #tpu.memory_space<vmem>>, vector<2x32xbf16>,
    %291 = arith.truncf %288 : vector<2x32xf32> to vector<2x32xbf16>
    %c8 = arith.constant 8 : index
    %c0_74 = arith.constant 0 : index
    %292 = vector.load %arg8[%c8, %c0_74] : memref<16x32xbf16, #tpu.memory_space<vmem>>, vector<2x32xbf16>
    tpu.vector_store %arg8[%c8, %c0_74], %291 {strides = array<i32>} : memref<16x32xbf16, #tpu.memory_space<vmem>>, vector<2x32xbf16>,
    %293 = vector.extract_strided_slice %10 {offsets = [8, 0], sizes = [2, 96], strides = [1, 1]} : vector<16x96xf32> to vector<2x96xf32>
    %294 = arith.truncf %257 : vector<2x32xf32> to vector<2x32xbf16>
    %cst_75 = arith.constant dense<0.000000e+00> : vector<2x96xf32>
    %295 = tpu.matmul %294, %20, %cst_75 {dimension_numbers = #tpu.dot_dimension_numbers<[1], [0], [0], [1], [0, 0, 1, 1], [], []>} : vector<2x32xbf16>, vector<32x96xbf16>, vector<2x96xf32> -> vector<2x96xf32>
    %296 = vector.extract_strided_slice %293 {offsets = [0, 0], sizes = [2, 32], strides = [1, 1]} : vector<2x96xf32> to vector<2x32xf32>
    %297 = vector.extract_strided_slice %295 {offsets = [0, 0], sizes = [2, 32], strides = [1, 1]} : vector<2x96xf32> to vector<2x32xf32>
    %298 = arith.addf %296, %297 : vector<2x32xf32>
    %299 = arith.negf %298 : vector<2x32xf32>
    %300 = math.exp %299 : vector<2x32xf32>
    %cst_76 = arith.constant 1.000000e+00 : f32
    %301 = vector.broadcast %cst_76 : f32 to vector<2x32xf32>
    %302 = arith.addf %301, %300 : vector<2x32xf32>
    %303 = arith.divf %301, %302 : vector<2x32xf32>
    %304 = vector.extract_strided_slice %293 {offsets = [0, 32], sizes = [2, 32], strides = [1, 1]} : vector<2x96xf32> to vector<2x32xf32>
    %305 = vector.extract_strided_slice %295 {offsets = [0, 32], sizes = [2, 32], strides = [1, 1]} : vector<2x96xf32> to vector<2x32xf32>
    %306 = arith.addf %304, %305 : vector<2x32xf32>
    %307 = arith.negf %306 : vector<2x32xf32>
    %308 = math.exp %307 : vector<2x32xf32>
    %cst_77 = arith.constant 1.000000e+00 : f32
    %309 = vector.broadcast %cst_77 : f32 to vector<2x32xf32>
    %310 = arith.addf %309, %308 : vector<2x32xf32>
    %311 = arith.divf %309, %310 : vector<2x32xf32>
    %312 = vector.extract_strided_slice %293 {offsets = [0, 64], sizes = [2, 32], strides = [1, 1]} : vector<2x96xf32> to vector<2x32xf32>
    %313 = vector.extract_strided_slice %295 {offsets = [0, 64], sizes = [2, 32], strides = [1, 1]} : vector<2x96xf32> to vector<2x32xf32>
    %314 = vector.broadcast %24 : vector<1x32xf32> to vector<2x32xf32>
    %315 = arith.addf %313, %314 : vector<2x32xf32>
    %316 = arith.mulf %303, %315 : vector<2x32xf32>
    %317 = arith.addf %312, %316 : vector<2x32xf32>
    %318 = math.tanh %317 : vector<2x32xf32>
    %cst_78 = arith.constant 1.000000e+00 : f32
    %319 = vector.broadcast %cst_78 : f32 to vector<2x32xf32>
    %320 = arith.subf %319, %311 : vector<2x32xf32>
    %321 = arith.mulf %320, %318 : vector<2x32xf32>
    %322 = arith.mulf %311, %257 : vector<2x32xf32>
    %323 = arith.addf %321, %322 : vector<2x32xf32>
    %324 = vector.extract_strided_slice %18 {offsets = [6, 0], sizes = [2, 96], strides = [1, 1]} : vector<16x96xf32> to vector<2x96xf32>
    %325 = arith.truncf %288 : vector<2x32xf32> to vector<2x32xbf16>
    %cst_79 = arith.constant dense<0.000000e+00> : vector<2x96xf32>
    %326 = tpu.matmul %325, %22, %cst_79 {dimension_numbers = #tpu.dot_dimension_numbers<[1], [0], [0], [1], [0, 0, 1, 1], [], []>} : vector<2x32xbf16>, vector<32x96xbf16>, vector<2x96xf32> -> vector<2x96xf32>
    %327 = vector.extract_strided_slice %324 {offsets = [0, 0], sizes = [2, 32], strides = [1, 1]} : vector<2x96xf32> to vector<2x32xf32>
    %328 = vector.extract_strided_slice %326 {offsets = [0, 0], sizes = [2, 32], strides = [1, 1]} : vector<2x96xf32> to vector<2x32xf32>
    %329 = arith.addf %327, %328 : vector<2x32xf32>
    %330 = arith.negf %329 : vector<2x32xf32>
    %331 = math.exp %330 : vector<2x32xf32>
    %cst_80 = arith.constant 1.000000e+00 : f32
    %332 = vector.broadcast %cst_80 : f32 to vector<2x32xf32>
    %333 = arith.addf %332, %331 : vector<2x32xf32>
    %334 = arith.divf %332, %333 : vector<2x32xf32>
    %335 = vector.extract_strided_slice %324 {offsets = [0, 32], sizes = [2, 32], strides = [1, 1]} : vector<2x96xf32> to vector<2x32xf32>
    %336 = vector.extract_strided_slice %326 {offsets = [0, 32], sizes = [2, 32], strides = [1, 1]} : vector<2x96xf32> to vector<2x32xf32>
    %337 = arith.addf %335, %336 : vector<2x32xf32>
    %338 = arith.negf %337 : vector<2x32xf32>
    %339 = math.exp %338 : vector<2x32xf32>
    %cst_81 = arith.constant 1.000000e+00 : f32
    %340 = vector.broadcast %cst_81 : f32 to vector<2x32xf32>
    %341 = arith.addf %340, %339 : vector<2x32xf32>
    %342 = arith.divf %340, %341 : vector<2x32xf32>
    %343 = vector.extract_strided_slice %324 {offsets = [0, 64], sizes = [2, 32], strides = [1, 1]} : vector<2x96xf32> to vector<2x32xf32>
    %344 = vector.extract_strided_slice %326 {offsets = [0, 64], sizes = [2, 32], strides = [1, 1]} : vector<2x96xf32> to vector<2x32xf32>
    %345 = vector.broadcast %26 : vector<1x32xf32> to vector<2x32xf32>
    %346 = arith.addf %344, %345 : vector<2x32xf32>
    %347 = arith.mulf %334, %346 : vector<2x32xf32>
    %348 = arith.addf %343, %347 : vector<2x32xf32>
    %349 = math.tanh %348 : vector<2x32xf32>
    %cst_82 = arith.constant 1.000000e+00 : f32
    %350 = vector.broadcast %cst_82 : f32 to vector<2x32xf32>
    %351 = arith.subf %350, %342 : vector<2x32xf32>
    %352 = arith.mulf %351, %349 : vector<2x32xf32>
    %353 = arith.mulf %342, %288 : vector<2x32xf32>
    %354 = arith.addf %352, %353 : vector<2x32xf32>
    %355 = arith.truncf %323 : vector<2x32xf32> to vector<2x32xbf16>
    %c8_83 = arith.constant 8 : index
    %c0_84 = arith.constant 0 : index
    %356 = vector.load %arg7[%c8_83, %c0_84] : memref<16x32xbf16, #tpu.memory_space<vmem>>, vector<2x32xbf16>
    tpu.vector_store %arg7[%c8_83, %c0_84], %355 {strides = array<i32>} : memref<16x32xbf16, #tpu.memory_space<vmem>>, vector<2x32xbf16>,
    %357 = arith.truncf %354 : vector<2x32xf32> to vector<2x32xbf16>
    %c6_85 = arith.constant 6 : index
    %c0_86 = arith.constant 0 : index
    %358 = vector.load %arg8[%c6_85, %c0_86] : memref<16x32xbf16, #tpu.memory_space<vmem>>, vector<2x32xbf16>
    tpu.vector_store %arg8[%c6_85, %c0_86], %357 {strides = array<i32>} : memref<16x32xbf16, #tpu.memory_space<vmem>>, vector<2x32xbf16>,
    %359 = vector.extract_strided_slice %10 {offsets = [10, 0], sizes = [2, 96], strides = [1, 1]} : vector<16x96xf32> to vector<2x96xf32>
    %360 = arith.truncf %323 : vector<2x32xf32> to vector<2x32xbf16>
    %cst_87 = arith.constant dense<0.000000e+00> : vector<2x96xf32>
    %361 = tpu.matmul %360, %20, %cst_87 {dimension_numbers = #tpu.dot_dimension_numbers<[1], [0], [0], [1], [0, 0, 1, 1], [], []>} : vector<2x32xbf16>, vector<32x96xbf16>, vector<2x96xf32> -> vector<2x96xf32>
    %362 = vector.extract_strided_slice %359 {offsets = [0, 0], sizes = [2, 32], strides = [1, 1]} : vector<2x96xf32> to vector<2x32xf32>
    %363 = vector.extract_strided_slice %361 {offsets = [0, 0], sizes = [2, 32], strides = [1, 1]} : vector<2x96xf32> to vector<2x32xf32>
    %364 = arith.addf %362, %363 : vector<2x32xf32>
    %365 = arith.negf %364 : vector<2x32xf32>
    %366 = math.exp %365 : vector<2x32xf32>
    %cst_88 = arith.constant 1.000000e+00 : f32
    %367 = vector.broadcast %cst_88 : f32 to vector<2x32xf32>
    %368 = arith.addf %367, %366 : vector<2x32xf32>
    %369 = arith.divf %367, %368 : vector<2x32xf32>
    %370 = vector.extract_strided_slice %359 {offsets = [0, 32], sizes = [2, 32], strides = [1, 1]} : vector<2x96xf32> to vector<2x32xf32>
    %371 = vector.extract_strided_slice %361 {offsets = [0, 32], sizes = [2, 32], strides = [1, 1]} : vector<2x96xf32> to vector<2x32xf32>
    %372 = arith.addf %370, %371 : vector<2x32xf32>
    %373 = arith.negf %372 : vector<2x32xf32>
    %374 = math.exp %373 : vector<2x32xf32>
    %cst_89 = arith.constant 1.000000e+00 : f32
    %375 = vector.broadcast %cst_89 : f32 to vector<2x32xf32>
    %376 = arith.addf %375, %374 : vector<2x32xf32>
    %377 = arith.divf %375, %376 : vector<2x32xf32>
    %378 = vector.extract_strided_slice %359 {offsets = [0, 64], sizes = [2, 32], strides = [1, 1]} : vector<2x96xf32> to vector<2x32xf32>
    %379 = vector.extract_strided_slice %361 {offsets = [0, 64], sizes = [2, 32], strides = [1, 1]} : vector<2x96xf32> to vector<2x32xf32>
    %380 = vector.broadcast %24 : vector<1x32xf32> to vector<2x32xf32>
    %381 = arith.addf %379, %380 : vector<2x32xf32>
    %382 = arith.mulf %369, %381 : vector<2x32xf32>
    %383 = arith.addf %378, %382 : vector<2x32xf32>
    %384 = math.tanh %383 : vector<2x32xf32>
    %cst_90 = arith.constant 1.000000e+00 : f32
    %385 = vector.broadcast %cst_90 : f32 to vector<2x32xf32>
    %386 = arith.subf %385, %377 : vector<2x32xf32>
    %387 = arith.mulf %386, %384 : vector<2x32xf32>
    %388 = arith.mulf %377, %323 : vector<2x32xf32>
    %389 = arith.addf %387, %388 : vector<2x32xf32>
    %390 = vector.extract_strided_slice %18 {offsets = [4, 0], sizes = [2, 96], strides = [1, 1]} : vector<16x96xf32> to vector<2x96xf32>
    %391 = arith.truncf %354 : vector<2x32xf32> to vector<2x32xbf16>
    %cst_91 = arith.constant dense<0.000000e+00> : vector<2x96xf32>
    %392 = tpu.matmul %391, %22, %cst_91 {dimension_numbers = #tpu.dot_dimension_numbers<[1], [0], [0], [1], [0, 0, 1, 1], [], []>} : vector<2x32xbf16>, vector<32x96xbf16>, vector<2x96xf32> -> vector<2x96xf32>
    %393 = vector.extract_strided_slice %390 {offsets = [0, 0], sizes = [2, 32], strides = [1, 1]} : vector<2x96xf32> to vector<2x32xf32>
    %394 = vector.extract_strided_slice %392 {offsets = [0, 0], sizes = [2, 32], strides = [1, 1]} : vector<2x96xf32> to vector<2x32xf32>
    %395 = arith.addf %393, %394 : vector<2x32xf32>
    %396 = arith.negf %395 : vector<2x32xf32>
    %397 = math.exp %396 : vector<2x32xf32>
    %cst_92 = arith.constant 1.000000e+00 : f32
    %398 = vector.broadcast %cst_92 : f32 to vector<2x32xf32>
    %399 = arith.addf %398, %397 : vector<2x32xf32>
    %400 = arith.divf %398, %399 : vector<2x32xf32>
    %401 = vector.extract_strided_slice %390 {offsets = [0, 32], sizes = [2, 32], strides = [1, 1]} : vector<2x96xf32> to vector<2x32xf32>
    %402 = vector.extract_strided_slice %392 {offsets = [0, 32], sizes = [2, 32], strides = [1, 1]} : vector<2x96xf32> to vector<2x32xf32>
    %403 = arith.addf %401, %402 : vector<2x32xf32>
    %404 = arith.negf %403 : vector<2x32xf32>
    %405 = math.exp %404 : vector<2x32xf32>
    %cst_93 = arith.constant 1.000000e+00 : f32
    %406 = vector.broadcast %cst_93 : f32 to vector<2x32xf32>
    %407 = arith.addf %406, %405 : vector<2x32xf32>
    %408 = arith.divf %406, %407 : vector<2x32xf32>
    %409 = vector.extract_strided_slice %390 {offsets = [0, 64], sizes = [2, 32], strides = [1, 1]} : vector<2x96xf32> to vector<2x32xf32>
    %410 = vector.extract_strided_slice %392 {offsets = [0, 64], sizes = [2, 32], strides = [1, 1]} : vector<2x96xf32> to vector<2x32xf32>
    %411 = vector.broadcast %26 : vector<1x32xf32> to vector<2x32xf32>
    %412 = arith.addf %410, %411 : vector<2x32xf32>
    %413 = arith.mulf %400, %412 : vector<2x32xf32>
    %414 = arith.addf %409, %413 : vector<2x32xf32>
    %415 = math.tanh %414 : vector<2x32xf32>
    %cst_94 = arith.constant 1.000000e+00 : f32
    %416 = vector.broadcast %cst_94 : f32 to vector<2x32xf32>
    %417 = arith.subf %416, %408 : vector<2x32xf32>
    %418 = arith.mulf %417, %415 : vector<2x32xf32>
    %419 = arith.mulf %408, %354 : vector<2x32xf32>
    %420 = arith.addf %418, %419 : vector<2x32xf32>
    %421 = arith.truncf %389 : vector<2x32xf32> to vector<2x32xbf16>
    %c10_95 = arith.constant 10 : index
    %c0_96 = arith.constant 0 : index
    %422 = vector.load %arg7[%c10_95, %c0_96] : memref<16x32xbf16, #tpu.memory_space<vmem>>, vector<2x32xbf16>
    tpu.vector_store %arg7[%c10_95, %c0_96], %421 {strides = array<i32>} : memref<16x32xbf16, #tpu.memory_space<vmem>>, vector<2x32xbf16>,
    %423 = arith.truncf %420 : vector<2x32xf32> to vector<2x32xbf16>
    %c4_97 = arith.constant 4 : index
    %c0_98 = arith.constant 0 : index
    %424 = vector.load %arg8[%c4_97, %c0_98] : memref<16x32xbf16, #tpu.memory_space<vmem>>, vector<2x32xbf16>
    tpu.vector_store %arg8[%c4_97, %c0_98], %423 {strides = array<i32>} : memref<16x32xbf16, #tpu.memory_space<vmem>>, vector<2x32xbf16>,
    %425 = vector.extract_strided_slice %10 {offsets = [12, 0], sizes = [2, 96], strides = [1, 1]} : vector<16x96xf32> to vector<2x96xf32>
    %426 = arith.truncf %389 : vector<2x32xf32> to vector<2x32xbf16>
    %cst_99 = arith.constant dense<0.000000e+00> : vector<2x96xf32>
    %427 = tpu.matmul %426, %20, %cst_99 {dimension_numbers = #tpu.dot_dimension_numbers<[1], [0], [0], [1], [0, 0, 1, 1], [], []>} : vector<2x32xbf16>, vector<32x96xbf16>, vector<2x96xf32> -> vector<2x96xf32>
    %428 = vector.extract_strided_slice %425 {offsets = [0, 0], sizes = [2, 32], strides = [1, 1]} : vector<2x96xf32> to vector<2x32xf32>
    %429 = vector.extract_strided_slice %427 {offsets = [0, 0], sizes = [2, 32], strides = [1, 1]} : vector<2x96xf32> to vector<2x32xf32>
    %430 = arith.addf %428, %429 : vector<2x32xf32>
    %431 = arith.negf %430 : vector<2x32xf32>
    %432 = math.exp %431 : vector<2x32xf32>
    %cst_100 = arith.constant 1.000000e+00 : f32
    %433 = vector.broadcast %cst_100 : f32 to vector<2x32xf32>
    %434 = arith.addf %433, %432 : vector<2x32xf32>
    %435 = arith.divf %433, %434 : vector<2x32xf32>
    %436 = vector.extract_strided_slice %425 {offsets = [0, 32], sizes = [2, 32], strides = [1, 1]} : vector<2x96xf32> to vector<2x32xf32>
    %437 = vector.extract_strided_slice %427 {offsets = [0, 32], sizes = [2, 32], strides = [1, 1]} : vector<2x96xf32> to vector<2x32xf32>
    %438 = arith.addf %436, %437 : vector<2x32xf32>
    %439 = arith.negf %438 : vector<2x32xf32>
    %440 = math.exp %439 : vector<2x32xf32>
    %cst_101 = arith.constant 1.000000e+00 : f32
    %441 = vector.broadcast %cst_101 : f32 to vector<2x32xf32>
    %442 = arith.addf %441, %440 : vector<2x32xf32>
    %443 = arith.divf %441, %442 : vector<2x32xf32>
    %444 = vector.extract_strided_slice %425 {offsets = [0, 64], sizes = [2, 32], strides = [1, 1]} : vector<2x96xf32> to vector<2x32xf32>
    %445 = vector.extract_strided_slice %427 {offsets = [0, 64], sizes = [2, 32], strides = [1, 1]} : vector<2x96xf32> to vector<2x32xf32>
    %446 = vector.broadcast %24 : vector<1x32xf32> to vector<2x32xf32>
    %447 = arith.addf %445, %446 : vector<2x32xf32>
    %448 = arith.mulf %435, %447 : vector<2x32xf32>
    %449 = arith.addf %444, %448 : vector<2x32xf32>
    %450 = math.tanh %449 : vector<2x32xf32>
    %cst_102 = arith.constant 1.000000e+00 : f32
    %451 = vector.broadcast %cst_102 : f32 to vector<2x32xf32>
    %452 = arith.subf %451, %443 : vector<2x32xf32>
    %453 = arith.mulf %452, %450 : vector<2x32xf32>
    %454 = arith.mulf %443, %389 : vector<2x32xf32>
    %455 = arith.addf %453, %454 : vector<2x32xf32>
    %456 = vector.extract_strided_slice %18 {offsets = [2, 0], sizes = [2, 96], strides = [1, 1]} : vector<16x96xf32> to vector<2x96xf32>
    %457 = arith.truncf %420 : vector<2x32xf32> to vector<2x32xbf16>
    %cst_103 = arith.constant dense<0.000000e+00> : vector<2x96xf32>
    %458 = tpu.matmul %457, %22, %cst_103 {dimension_numbers = #tpu.dot_dimension_numbers<[1], [0], [0], [1], [0, 0, 1, 1], [], []>} : vector<2x32xbf16>, vector<32x96xbf16>, vector<2x96xf32> -> vector<2x96xf32>
    %459 = vector.extract_strided_slice %456 {offsets = [0, 0], sizes = [2, 32], strides = [1, 1]} : vector<2x96xf32> to vector<2x32xf32>
    %460 = vector.extract_strided_slice %458 {offsets = [0, 0], sizes = [2, 32], strides = [1, 1]} : vector<2x96xf32> to vector<2x32xf32>
    %461 = arith.addf %459, %460 : vector<2x32xf32>
    %462 = arith.negf %461 : vector<2x32xf32>
    %463 = math.exp %462 : vector<2x32xf32>
    %cst_104 = arith.constant 1.000000e+00 : f32
    %464 = vector.broadcast %cst_104 : f32 to vector<2x32xf32>
    %465 = arith.addf %464, %463 : vector<2x32xf32>
    %466 = arith.divf %464, %465 : vector<2x32xf32>
    %467 = vector.extract_strided_slice %456 {offsets = [0, 32], sizes = [2, 32], strides = [1, 1]} : vector<2x96xf32> to vector<2x32xf32>
    %468 = vector.extract_strided_slice %458 {offsets = [0, 32], sizes = [2, 32], strides = [1, 1]} : vector<2x96xf32> to vector<2x32xf32>
    %469 = arith.addf %467, %468 : vector<2x32xf32>
    %470 = arith.negf %469 : vector<2x32xf32>
    %471 = math.exp %470 : vector<2x32xf32>
    %cst_105 = arith.constant 1.000000e+00 : f32
    %472 = vector.broadcast %cst_105 : f32 to vector<2x32xf32>
    %473 = arith.addf %472, %471 : vector<2x32xf32>
    %474 = arith.divf %472, %473 : vector<2x32xf32>
    %475 = vector.extract_strided_slice %456 {offsets = [0, 64], sizes = [2, 32], strides = [1, 1]} : vector<2x96xf32> to vector<2x32xf32>
    %476 = vector.extract_strided_slice %458 {offsets = [0, 64], sizes = [2, 32], strides = [1, 1]} : vector<2x96xf32> to vector<2x32xf32>
    %477 = vector.broadcast %26 : vector<1x32xf32> to vector<2x32xf32>
    %478 = arith.addf %476, %477 : vector<2x32xf32>
    %479 = arith.mulf %466, %478 : vector<2x32xf32>
    %480 = arith.addf %475, %479 : vector<2x32xf32>
    %481 = math.tanh %480 : vector<2x32xf32>
    %cst_106 = arith.constant 1.000000e+00 : f32
    %482 = vector.broadcast %cst_106 : f32 to vector<2x32xf32>
    %483 = arith.subf %482, %474 : vector<2x32xf32>
    %484 = arith.mulf %483, %481 : vector<2x32xf32>
    %485 = arith.mulf %474, %420 : vector<2x32xf32>
    %486 = arith.addf %484, %485 : vector<2x32xf32>
    %487 = arith.truncf %455 : vector<2x32xf32> to vector<2x32xbf16>
    %c12_107 = arith.constant 12 : index
    %c0_108 = arith.constant 0 : index
    %488 = vector.load %arg7[%c12_107, %c0_108] : memref<16x32xbf16, #tpu.memory_space<vmem>>, vector<2x32xbf16>
    tpu.vector_store %arg7[%c12_107, %c0_108], %487 {strides = array<i32>} : memref<16x32xbf16, #tpu.memory_space<vmem>>, vector<2x32xbf16>,
    %489 = arith.truncf %486 : vector<2x32xf32> to vector<2x32xbf16>
    %c2_109 = arith.constant 2 : index
    %c0_110 = arith.constant 0 : index
    %490 = vector.load %arg8[%c2_109, %c0_110] : memref<16x32xbf16, #tpu.memory_space<vmem>>, vector<2x32xbf16>
    tpu.vector_store %arg8[%c2_109, %c0_110], %489 {strides = array<i32>} : memref<16x32xbf16, #tpu.memory_space<vmem>>, vector<2x32xbf16>,
    %491 = vector.extract_strided_slice %10 {offsets = [14, 0], sizes = [2, 96], strides = [1, 1]} : vector<16x96xf32> to vector<2x96xf32>
    %492 = arith.truncf %455 : vector<2x32xf32> to vector<2x32xbf16>
    %cst_111 = arith.constant dense<0.000000e+00> : vector<2x96xf32>
    %493 = tpu.matmul %492, %20, %cst_111 {dimension_numbers = #tpu.dot_dimension_numbers<[1], [0], [0], [1], [0, 0, 1, 1], [], []>} : vector<2x32xbf16>, vector<32x96xbf16>, vector<2x96xf32> -> vector<2x96xf32>
    %494 = vector.extract_strided_slice %491 {offsets = [0, 0], sizes = [2, 32], strides = [1, 1]} : vector<2x96xf32> to vector<2x32xf32>
    %495 = vector.extract_strided_slice %493 {offsets = [0, 0], sizes = [2, 32], strides = [1, 1]} : vector<2x96xf32> to vector<2x32xf32>
    %496 = arith.addf %494, %495 : vector<2x32xf32>
    %497 = arith.negf %496 : vector<2x32xf32>
    %498 = math.exp %497 : vector<2x32xf32>
    %cst_112 = arith.constant 1.000000e+00 : f32
    %499 = vector.broadcast %cst_112 : f32 to vector<2x32xf32>
    %500 = arith.addf %499, %498 : vector<2x32xf32>
    %501 = arith.divf %499, %500 : vector<2x32xf32>
    %502 = vector.extract_strided_slice %491 {offsets = [0, 32], sizes = [2, 32], strides = [1, 1]} : vector<2x96xf32> to vector<2x32xf32>
    %503 = vector.extract_strided_slice %493 {offsets = [0, 32], sizes = [2, 32], strides = [1, 1]} : vector<2x96xf32> to vector<2x32xf32>
    %504 = arith.addf %502, %503 : vector<2x32xf32>
    %505 = arith.negf %504 : vector<2x32xf32>
    %506 = math.exp %505 : vector<2x32xf32>
    %cst_113 = arith.constant 1.000000e+00 : f32
    %507 = vector.broadcast %cst_113 : f32 to vector<2x32xf32>
    %508 = arith.addf %507, %506 : vector<2x32xf32>
    %509 = arith.divf %507, %508 : vector<2x32xf32>
    %510 = vector.extract_strided_slice %491 {offsets = [0, 64], sizes = [2, 32], strides = [1, 1]} : vector<2x96xf32> to vector<2x32xf32>
    %511 = vector.extract_strided_slice %493 {offsets = [0, 64], sizes = [2, 32], strides = [1, 1]} : vector<2x96xf32> to vector<2x32xf32>
    %512 = vector.broadcast %24 : vector<1x32xf32> to vector<2x32xf32>
    %513 = arith.addf %511, %512 : vector<2x32xf32>
    %514 = arith.mulf %501, %513 : vector<2x32xf32>
    %515 = arith.addf %510, %514 : vector<2x32xf32>
    %516 = math.tanh %515 : vector<2x32xf32>
    %cst_114 = arith.constant 1.000000e+00 : f32
    %517 = vector.broadcast %cst_114 : f32 to vector<2x32xf32>
    %518 = arith.subf %517, %509 : vector<2x32xf32>
    %519 = arith.mulf %518, %516 : vector<2x32xf32>
    %520 = arith.mulf %509, %455 : vector<2x32xf32>
    %521 = arith.addf %519, %520 : vector<2x32xf32>
    %522 = vector.extract_strided_slice %18 {offsets = [0, 0], sizes = [2, 96], strides = [1, 1]} : vector<16x96xf32> to vector<2x96xf32>
    %523 = arith.truncf %486 : vector<2x32xf32> to vector<2x32xbf16>
    %cst_115 = arith.constant dense<0.000000e+00> : vector<2x96xf32>
    %524 = tpu.matmul %523, %22, %cst_115 {dimension_numbers = #tpu.dot_dimension_numbers<[1], [0], [0], [1], [0, 0, 1, 1], [], []>} : vector<2x32xbf16>, vector<32x96xbf16>, vector<2x96xf32> -> vector<2x96xf32>
    %525 = vector.extract_strided_slice %522 {offsets = [0, 0], sizes = [2, 32], strides = [1, 1]} : vector<2x96xf32> to vector<2x32xf32>
    %526 = vector.extract_strided_slice %524 {offsets = [0, 0], sizes = [2, 32], strides = [1, 1]} : vector<2x96xf32> to vector<2x32xf32>
    %527 = arith.addf %525, %526 : vector<2x32xf32>
    %528 = arith.negf %527 : vector<2x32xf32>
    %529 = math.exp %528 : vector<2x32xf32>
    %cst_116 = arith.constant 1.000000e+00 : f32
    %530 = vector.broadcast %cst_116 : f32 to vector<2x32xf32>
    %531 = arith.addf %530, %529 : vector<2x32xf32>
    %532 = arith.divf %530, %531 : vector<2x32xf32>
    %533 = vector.extract_strided_slice %522 {offsets = [0, 32], sizes = [2, 32], strides = [1, 1]} : vector<2x96xf32> to vector<2x32xf32>
    %534 = vector.extract_strided_slice %524 {offsets = [0, 32], sizes = [2, 32], strides = [1, 1]} : vector<2x96xf32> to vector<2x32xf32>
    %535 = arith.addf %533, %534 : vector<2x32xf32>
    %536 = arith.negf %535 : vector<2x32xf32>
    %537 = math.exp %536 : vector<2x32xf32>
    %cst_117 = arith.constant 1.000000e+00 : f32
    %538 = vector.broadcast %cst_117 : f32 to vector<2x32xf32>
    %539 = arith.addf %538, %537 : vector<2x32xf32>
    %540 = arith.divf %538, %539 : vector<2x32xf32>
    %541 = vector.extract_strided_slice %522 {offsets = [0, 64], sizes = [2, 32], strides = [1, 1]} : vector<2x96xf32> to vector<2x32xf32>
    %542 = vector.extract_strided_slice %524 {offsets = [0, 64], sizes = [2, 32], strides = [1, 1]} : vector<2x96xf32> to vector<2x32xf32>
    %543 = vector.broadcast %26 : vector<1x32xf32> to vector<2x32xf32>
    %544 = arith.addf %542, %543 : vector<2x32xf32>
    %545 = arith.mulf %532, %544 : vector<2x32xf32>
    %546 = arith.addf %541, %545 : vector<2x32xf32>
    %547 = math.tanh %546 : vector<2x32xf32>
    %cst_118 = arith.constant 1.000000e+00 : f32
    %548 = vector.broadcast %cst_118 : f32 to vector<2x32xf32>
    %549 = arith.subf %548, %540 : vector<2x32xf32>
    %550 = arith.mulf %549, %547 : vector<2x32xf32>
    %551 = arith.mulf %540, %486 : vector<2x32xf32>
    %552 = arith.addf %550, %551 : vector<2x32xf32>
    %553 = arith.truncf %521 : vector<2x32xf32> to vector<2x32xbf16>
    %c14_119 = arith.constant 14 : index
    %c0_120 = arith.constant 0 : index
    %554 = vector.load %arg7[%c14_119, %c0_120] : memref<16x32xbf16, #tpu.memory_space<vmem>>, vector<2x32xbf16>
    tpu.vector_store %arg7[%c14_119, %c0_120], %553 {strides = array<i32>} : memref<16x32xbf16, #tpu.memory_space<vmem>>, vector<2x32xbf16>,
    %555 = arith.truncf %552 : vector<2x32xf32> to vector<2x32xbf16>
    %c0_121 = arith.constant 0 : index
    %c0_122 = arith.constant 0 : index
    %556 = vector.load %arg8[%c0_121, %c0_122] : memref<16x32xbf16, #tpu.memory_space<vmem>>, vector<2x32xbf16>
    tpu.vector_store %arg8[%c0_121, %c0_122], %555 {strides = array<i32>} : memref<16x32xbf16, #tpu.memory_space<vmem>>, vector<2x32xbf16>,
    %c0_123 = arith.constant 0 : index
    %c0_124 = arith.constant 0 : index
    %557 = vector.load %arg9[%c0_123, %c0_124] : memref<2x32xf32, #tpu.memory_space<vmem>>, vector<2x32xf32>
    tpu.vector_store %arg9[%c0_123, %c0_124], %521 {strides = array<i32>} : memref<2x32xf32, #tpu.memory_space<vmem>>, vector<2x32xf32>,
    %c0_125 = arith.constant 0 : index
    %c0_126 = arith.constant 0 : index
    %558 = vector.load %arg10[%c0_125, %c0_126] : memref<2x32xf32, #tpu.memory_space<vmem>>, vector<2x32xf32>
    tpu.vector_store %arg10[%c0_125, %c0_126], %552 {strides = array<i32>} : memref<2x32xf32, #tpu.memory_space<vmem>>, vector<2x32xf32>,
    return
  }
  func.func @transform_0(%arg0: i32) -> (i32, i32) {
    %c0_i32 = arith.constant 0 : i32
    %c0_i32_0 = arith.constant 0 : i32
    return %arg0, %c0_i32 : i32, i32
  }
  func.func @transform_1(%arg0: i32) -> (i32, i32) {
    %c0_i32 = arith.constant 0 : i32
    %0 = arith.subi %c0_i32, %arg0 : i32
    %c0_i32_0 = arith.constant 0 : i32
    %c0_i32_1 = arith.constant 0 : i32
    return %0, %c0_i32_0 : i32, i32
  }
  func.func @transform_2(%arg0: i32) -> (i32, i32, i32, i32) {
    %c0_i32 = arith.constant 0 : i32
    %c0_i32_0 = arith.constant 0 : i32
    %c0_i32_1 = arith.constant 0 : i32
    %c0_i32_2 = arith.constant 0 : i32
    %c0_i32_3 = arith.constant 0 : i32
    return %c0_i32, %c0_i32_0, %c0_i32_1, %c0_i32_2 : i32, i32, i32, i32
  }
  func.func @transform_3(%arg0: i32) -> (i32, i32, i32) {
    %c0_i32 = arith.constant 0 : i32
    %c0_i32_0 = arith.constant 0 : i32
    %c0_i32_1 = arith.constant 0 : i32
    %c0_i32_2 = arith.constant 0 : i32
    return %c0_i32, %c0_i32_0, %c0_i32_1 : i32, i32, i32
  }
  func.func @transform_4(%arg0: i32) -> (i32, i32, i32) {
    %c0_i32 = arith.constant 0 : i32
    %c0_i32_0 = arith.constant 0 : i32
    %c0_i32_1 = arith.constant 0 : i32
    %c0_i32_2 = arith.constant 0 : i32
    return %c0_i32, %c0_i32_0, %c0_i32_1 : i32, i32, i32
  }
  func.func @transform_5(%arg0: i32) -> (i32, i32, i32) {
    %c0_i32 = arith.constant 0 : i32
    %c0_i32_0 = arith.constant 0 : i32
    %c0_i32_1 = arith.constant 0 : i32
    %c0_i32_2 = arith.constant 0 : i32
    return %c0_i32, %c0_i32_0, %c0_i32_1 : i32, i32, i32
  }
  func.func @transform_6(%arg0: i32) -> (i32, i32) {
    %c0_i32 = arith.constant 0 : i32
    %c0_i32_0 = arith.constant 0 : i32
    return %arg0, %c0_i32 : i32, i32
  }
  func.func @transform_7(%arg0: i32) -> (i32, i32) {
    %c0_i32 = arith.constant 0 : i32
    %0 = arith.subi %c0_i32, %arg0 : i32
    %c0_i32_0 = arith.constant 0 : i32
    %c0_i32_1 = arith.constant 0 : i32
    return %0, %c0_i32_0 : i32, i32
  }
}

module attributes {stable_mosaic.version = 11 : i64} {
  func.func @kernel(%arg0: i32, %arg1: memref<16x32xbf16, #tpu.memory_space<vmem>>, %arg2: memref<16x32xbf16, #tpu.memory_space<vmem>>, %arg3: memref<16x32xbf16, #tpu.memory_space<vmem>>, %arg4: memref<16x32xbf16, #tpu.memory_space<vmem>>, %arg5: memref<2x2x32x96xbf16, #tpu.memory_space<vmem>>, %arg6: memref<2x1x96xf32, #tpu.memory_space<vmem>>, %arg7: memref<2x32x96xbf16, #tpu.memory_space<vmem>>, %arg8: memref<2x1x32xf32, #tpu.memory_space<vmem>>, %arg9: memref<16x32xbf16, #tpu.memory_space<vmem>>, %arg10: memref<16x32xbf16, #tpu.memory_space<vmem>>, %arg11: memref<2x32xf32, #tpu.memory_space<vmem>>, %arg12: memref<2x32xf32, #tpu.memory_space<vmem>>) attributes {dimension_semantics = [#tpu.dimension_semantics<arbitrary>], iteration_bounds = array<i64: 1>, scalar_prefetch = 0 : i64, scratch_operands = 2 : i64, tpu.core_type = #tpu.core_type<tc>, window_params = [{transform_indices = @transform_0, window_bounds = array<i64: 16, 32>}, {transform_indices = @transform_1, window_bounds = array<i64: 16, 32>}, {transform_indices = @transform_2, window_bounds = array<i64: 16, 32>}, {transform_indices = @transform_3, window_bounds = array<i64: 16, 32>}, {pipeline_mode = #tpu.pipeline_mode<synchronous>, transform_indices = @transform_4, window_bounds = array<i64: 2, 2, 32, 96>}, {pipeline_mode = #tpu.pipeline_mode<synchronous>, transform_indices = @transform_5, window_bounds = array<i64: 2, 1, 96>}, {pipeline_mode = #tpu.pipeline_mode<synchronous>, transform_indices = @transform_6, window_bounds = array<i64: 2, 32, 96>}, {pipeline_mode = #tpu.pipeline_mode<synchronous>, transform_indices = @transform_7, window_bounds = array<i64: 2, 1, 32>}, {transform_indices = @transform_8, window_bounds = array<i64: 16, 32>}, {transform_indices = @transform_9, window_bounds = array<i64: 16, 32>}]} {
    %c0_i32 = arith.constant 0 : i32
    %0 = arith.cmpi eq, %arg0, %c0_i32 : i32
    %1 = arith.extui %0 : i1 to i32
    %c0_i32_0 = arith.constant 0 : i32
    %2 = arith.cmpi ne, %1, %c0_i32_0 : i32
    scf.if %2 {
      %cst_141 = arith.constant 0.000000e+00 : f32
      %569 = vector.broadcast %cst_141 : f32 to vector<2x32xf32>
      %c0_142 = arith.constant 0 : index
      %c0_143 = arith.constant 0 : index
      %570 = vector.load %arg11[%c0_142, %c0_143] : memref<2x32xf32, #tpu.memory_space<vmem>>, vector<2x32xf32>
      tpu.vector_store %arg11[%c0_142, %c0_143], %569 {strides = array<i32>} : memref<2x32xf32, #tpu.memory_space<vmem>>, vector<2x32xf32>,
      %cst_144 = arith.constant 0.000000e+00 : f32
      %571 = vector.broadcast %cst_144 : f32 to vector<2x32xf32>
      %c0_145 = arith.constant 0 : index
      %c0_146 = arith.constant 0 : index
      %572 = vector.load %arg12[%c0_145, %c0_146] : memref<2x32xf32, #tpu.memory_space<vmem>>, vector<2x32xf32>
      tpu.vector_store %arg12[%c0_145, %c0_146], %571 {strides = array<i32>} : memref<2x32xf32, #tpu.memory_space<vmem>>, vector<2x32xf32>,
    } else {
    }
    %c0 = arith.constant 0 : index
    %c0_1 = arith.constant 0 : index
    %3 = vector.load %arg1[%c0, %c0_1] : memref<16x32xbf16, #tpu.memory_space<vmem>>, vector<16x32xbf16>
    %c0_2 = arith.constant 0 : index
    %c0_3 = arith.constant 0 : index
    %c0_4 = arith.constant 0 : index
    %c0_5 = arith.constant 0 : index
    %4 = vector.load %arg5[%c0_2, %c0_3, %c0_4, %c0_5] : memref<2x2x32x96xbf16, #tpu.memory_space<vmem>>, vector<1x1x32x96xbf16>
    %5 = vector.shape_cast %4 : vector<1x1x32x96xbf16> to vector<32x96xbf16>
    %cst = arith.constant dense<0.000000e+00> : vector<16x96xf32>
    %6 = tpu.matmul %3, %5, %cst {dimension_numbers = #tpu.dot_dimension_numbers<[1], [0], [0], [1], [0, 0, 1, 1], [], []>} : vector<16x32xbf16>, vector<32x96xbf16>, vector<16x96xf32> -> vector<16x96xf32>
    %c0_6 = arith.constant 0 : index
    %c0_7 = arith.constant 0 : index
    %7 = vector.load %arg2[%c0_6, %c0_7] : memref<16x32xbf16, #tpu.memory_space<vmem>>, vector<16x32xbf16>
    %c0_8 = arith.constant 0 : index
    %c1 = arith.constant 1 : index
    %c0_9 = arith.constant 0 : index
    %c0_10 = arith.constant 0 : index
    %8 = vector.load %arg5[%c0_8, %c1, %c0_9, %c0_10] : memref<2x2x32x96xbf16, #tpu.memory_space<vmem>>, vector<1x1x32x96xbf16>
    %9 = vector.shape_cast %8 : vector<1x1x32x96xbf16> to vector<32x96xbf16>
    %cst_11 = arith.constant dense<0.000000e+00> : vector<16x96xf32>
    %10 = tpu.matmul %7, %9, %cst_11 {dimension_numbers = #tpu.dot_dimension_numbers<[1], [0], [0], [1], [0, 0, 1, 1], [], []>} : vector<16x32xbf16>, vector<32x96xbf16>, vector<16x96xf32> -> vector<16x96xf32>
    %11 = arith.addf %6, %10 : vector<16x96xf32>
    %c0_12 = arith.constant 0 : index
    %c0_13 = arith.constant 0 : index
    %c0_14 = arith.constant 0 : index
    %12 = vector.load %arg6[%c0_12, %c0_13, %c0_14] : memref<2x1x96xf32, #tpu.memory_space<vmem>>, vector<1x1x96xf32>
    %13 = vector.shape_cast %12 : vector<1x1x96xf32> to vector<1x96xf32>
    %14 = vector.broadcast %13 : vector<1x96xf32> to vector<16x96xf32>
    %15 = arith.addf %11, %14 : vector<16x96xf32>
    %c0_15 = arith.constant 0 : index
    %c0_16 = arith.constant 0 : index
    %16 = vector.load %arg3[%c0_15, %c0_16] : memref<16x32xbf16, #tpu.memory_space<vmem>>, vector<16x32xbf16>
    %c1_17 = arith.constant 1 : index
    %c0_18 = arith.constant 0 : index
    %c0_19 = arith.constant 0 : index
    %c0_20 = arith.constant 0 : index
    %17 = vector.load %arg5[%c1_17, %c0_18, %c0_19, %c0_20] : memref<2x2x32x96xbf16, #tpu.memory_space<vmem>>, vector<1x1x32x96xbf16>
    %18 = vector.shape_cast %17 : vector<1x1x32x96xbf16> to vector<32x96xbf16>
    %cst_21 = arith.constant dense<0.000000e+00> : vector<16x96xf32>
    %19 = tpu.matmul %16, %18, %cst_21 {dimension_numbers = #tpu.dot_dimension_numbers<[1], [0], [0], [1], [0, 0, 1, 1], [], []>} : vector<16x32xbf16>, vector<32x96xbf16>, vector<16x96xf32> -> vector<16x96xf32>
    %c0_22 = arith.constant 0 : index
    %c0_23 = arith.constant 0 : index
    %20 = vector.load %arg4[%c0_22, %c0_23] : memref<16x32xbf16, #tpu.memory_space<vmem>>, vector<16x32xbf16>
    %c1_24 = arith.constant 1 : index
    %c1_25 = arith.constant 1 : index
    %c0_26 = arith.constant 0 : index
    %c0_27 = arith.constant 0 : index
    %21 = vector.load %arg5[%c1_24, %c1_25, %c0_26, %c0_27] : memref<2x2x32x96xbf16, #tpu.memory_space<vmem>>, vector<1x1x32x96xbf16>
    %22 = vector.shape_cast %21 : vector<1x1x32x96xbf16> to vector<32x96xbf16>
    %cst_28 = arith.constant dense<0.000000e+00> : vector<16x96xf32>
    %23 = tpu.matmul %20, %22, %cst_28 {dimension_numbers = #tpu.dot_dimension_numbers<[1], [0], [0], [1], [0, 0, 1, 1], [], []>} : vector<16x32xbf16>, vector<32x96xbf16>, vector<16x96xf32> -> vector<16x96xf32>
    %24 = arith.addf %19, %23 : vector<16x96xf32>
    %c1_29 = arith.constant 1 : index
    %c0_30 = arith.constant 0 : index
    %c0_31 = arith.constant 0 : index
    %25 = vector.load %arg6[%c1_29, %c0_30, %c0_31] : memref<2x1x96xf32, #tpu.memory_space<vmem>>, vector<1x1x96xf32>
    %26 = vector.shape_cast %25 : vector<1x1x96xf32> to vector<1x96xf32>
    %27 = vector.broadcast %26 : vector<1x96xf32> to vector<16x96xf32>
    %28 = arith.addf %24, %27 : vector<16x96xf32>
    %c0_32 = arith.constant 0 : index
    %c0_33 = arith.constant 0 : index
    %c0_34 = arith.constant 0 : index
    %29 = vector.load %arg7[%c0_32, %c0_33, %c0_34] : memref<2x32x96xbf16, #tpu.memory_space<vmem>>, vector<1x32x96xbf16>
    %30 = vector.shape_cast %29 : vector<1x32x96xbf16> to vector<32x96xbf16>
    %c1_35 = arith.constant 1 : index
    %c0_36 = arith.constant 0 : index
    %c0_37 = arith.constant 0 : index
    %31 = vector.load %arg7[%c1_35, %c0_36, %c0_37] : memref<2x32x96xbf16, #tpu.memory_space<vmem>>, vector<1x32x96xbf16>
    %32 = vector.shape_cast %31 : vector<1x32x96xbf16> to vector<32x96xbf16>
    %c0_38 = arith.constant 0 : index
    %c0_39 = arith.constant 0 : index
    %c0_40 = arith.constant 0 : index
    %33 = vector.load %arg8[%c0_38, %c0_39, %c0_40] : memref<2x1x32xf32, #tpu.memory_space<vmem>>, vector<1x1x32xf32>
    %34 = vector.shape_cast %33 : vector<1x1x32xf32> to vector<1x32xf32>
    %c1_41 = arith.constant 1 : index
    %c0_42 = arith.constant 0 : index
    %c0_43 = arith.constant 0 : index
    %35 = vector.load %arg8[%c1_41, %c0_42, %c0_43] : memref<2x1x32xf32, #tpu.memory_space<vmem>>, vector<1x1x32xf32>
    %36 = vector.shape_cast %35 : vector<1x1x32xf32> to vector<1x32xf32>
    %c0_44 = arith.constant 0 : index
    %c0_45 = arith.constant 0 : index
    %37 = vector.load %arg11[%c0_44, %c0_45] : memref<2x32xf32, #tpu.memory_space<vmem>>, vector<2x32xf32>
    %c0_46 = arith.constant 0 : index
    %c0_47 = arith.constant 0 : index
    %38 = vector.load %arg12[%c0_46, %c0_47] : memref<2x32xf32, #tpu.memory_space<vmem>>, vector<2x32xf32>
    %39 = vector.extract_strided_slice %15 {offsets = [0, 0], sizes = [2, 96], strides = [1, 1]} : vector<16x96xf32> to vector<2x96xf32>
    %40 = arith.truncf %37 : vector<2x32xf32> to vector<2x32xbf16>
    %cst_48 = arith.constant dense<0.000000e+00> : vector<2x96xf32>
    %41 = tpu.matmul %40, %30, %cst_48 {dimension_numbers = #tpu.dot_dimension_numbers<[1], [0], [0], [1], [0, 0, 1, 1], [], []>} : vector<2x32xbf16>, vector<32x96xbf16>, vector<2x96xf32> -> vector<2x96xf32>
    %42 = vector.extract_strided_slice %39 {offsets = [0, 0], sizes = [2, 32], strides = [1, 1]} : vector<2x96xf32> to vector<2x32xf32>
    %43 = vector.extract_strided_slice %41 {offsets = [0, 0], sizes = [2, 32], strides = [1, 1]} : vector<2x96xf32> to vector<2x32xf32>
    %44 = arith.addf %42, %43 : vector<2x32xf32>
    %45 = arith.negf %44 : vector<2x32xf32>
    %46 = math.exp %45 : vector<2x32xf32>
    %cst_49 = arith.constant 1.000000e+00 : f32
    %47 = vector.broadcast %cst_49 : f32 to vector<2x32xf32>
    %48 = arith.addf %47, %46 : vector<2x32xf32>
    %49 = arith.divf %47, %48 : vector<2x32xf32>
    %50 = vector.extract_strided_slice %39 {offsets = [0, 32], sizes = [2, 32], strides = [1, 1]} : vector<2x96xf32> to vector<2x32xf32>
    %51 = vector.extract_strided_slice %41 {offsets = [0, 32], sizes = [2, 32], strides = [1, 1]} : vector<2x96xf32> to vector<2x32xf32>
    %52 = arith.addf %50, %51 : vector<2x32xf32>
    %53 = arith.negf %52 : vector<2x32xf32>
    %54 = math.exp %53 : vector<2x32xf32>
    %cst_50 = arith.constant 1.000000e+00 : f32
    %55 = vector.broadcast %cst_50 : f32 to vector<2x32xf32>
    %56 = arith.addf %55, %54 : vector<2x32xf32>
    %57 = arith.divf %55, %56 : vector<2x32xf32>
    %58 = vector.extract_strided_slice %39 {offsets = [0, 64], sizes = [2, 32], strides = [1, 1]} : vector<2x96xf32> to vector<2x32xf32>
    %59 = vector.extract_strided_slice %41 {offsets = [0, 64], sizes = [2, 32], strides = [1, 1]} : vector<2x96xf32> to vector<2x32xf32>
    %60 = vector.broadcast %34 : vector<1x32xf32> to vector<2x32xf32>
    %61 = arith.addf %59, %60 : vector<2x32xf32>
    %62 = arith.mulf %49, %61 : vector<2x32xf32>
    %63 = arith.addf %58, %62 : vector<2x32xf32>
    %64 = math.tanh %63 : vector<2x32xf32>
    %cst_51 = arith.constant 1.000000e+00 : f32
    %65 = vector.broadcast %cst_51 : f32 to vector<2x32xf32>
    %66 = arith.subf %65, %57 : vector<2x32xf32>
    %67 = arith.mulf %66, %64 : vector<2x32xf32>
    %68 = arith.mulf %57, %37 : vector<2x32xf32>
    %69 = arith.addf %67, %68 : vector<2x32xf32>
    %70 = vector.extract_strided_slice %28 {offsets = [14, 0], sizes = [2, 96], strides = [1, 1]} : vector<16x96xf32> to vector<2x96xf32>
    %71 = arith.truncf %38 : vector<2x32xf32> to vector<2x32xbf16>
    %cst_52 = arith.constant dense<0.000000e+00> : vector<2x96xf32>
    %72 = tpu.matmul %71, %32, %cst_52 {dimension_numbers = #tpu.dot_dimension_numbers<[1], [0], [0], [1], [0, 0, 1, 1], [], []>} : vector<2x32xbf16>, vector<32x96xbf16>, vector<2x96xf32> -> vector<2x96xf32>
    %73 = vector.extract_strided_slice %70 {offsets = [0, 0], sizes = [2, 32], strides = [1, 1]} : vector<2x96xf32> to vector<2x32xf32>
    %74 = vector.extract_strided_slice %72 {offsets = [0, 0], sizes = [2, 32], strides = [1, 1]} : vector<2x96xf32> to vector<2x32xf32>
    %75 = arith.addf %73, %74 : vector<2x32xf32>
    %76 = arith.negf %75 : vector<2x32xf32>
    %77 = math.exp %76 : vector<2x32xf32>
    %cst_53 = arith.constant 1.000000e+00 : f32
    %78 = vector.broadcast %cst_53 : f32 to vector<2x32xf32>
    %79 = arith.addf %78, %77 : vector<2x32xf32>
    %80 = arith.divf %78, %79 : vector<2x32xf32>
    %81 = vector.extract_strided_slice %70 {offsets = [0, 32], sizes = [2, 32], strides = [1, 1]} : vector<2x96xf32> to vector<2x32xf32>
    %82 = vector.extract_strided_slice %72 {offsets = [0, 32], sizes = [2, 32], strides = [1, 1]} : vector<2x96xf32> to vector<2x32xf32>
    %83 = arith.addf %81, %82 : vector<2x32xf32>
    %84 = arith.negf %83 : vector<2x32xf32>
    %85 = math.exp %84 : vector<2x32xf32>
    %cst_54 = arith.constant 1.000000e+00 : f32
    %86 = vector.broadcast %cst_54 : f32 to vector<2x32xf32>
    %87 = arith.addf %86, %85 : vector<2x32xf32>
    %88 = arith.divf %86, %87 : vector<2x32xf32>
    %89 = vector.extract_strided_slice %70 {offsets = [0, 64], sizes = [2, 32], strides = [1, 1]} : vector<2x96xf32> to vector<2x32xf32>
    %90 = vector.extract_strided_slice %72 {offsets = [0, 64], sizes = [2, 32], strides = [1, 1]} : vector<2x96xf32> to vector<2x32xf32>
    %91 = vector.broadcast %36 : vector<1x32xf32> to vector<2x32xf32>
    %92 = arith.addf %90, %91 : vector<2x32xf32>
    %93 = arith.mulf %80, %92 : vector<2x32xf32>
    %94 = arith.addf %89, %93 : vector<2x32xf32>
    %95 = math.tanh %94 : vector<2x32xf32>
    %cst_55 = arith.constant 1.000000e+00 : f32
    %96 = vector.broadcast %cst_55 : f32 to vector<2x32xf32>
    %97 = arith.subf %96, %88 : vector<2x32xf32>
    %98 = arith.mulf %97, %95 : vector<2x32xf32>
    %99 = arith.mulf %88, %38 : vector<2x32xf32>
    %100 = arith.addf %98, %99 : vector<2x32xf32>
    %101 = arith.truncf %69 : vector<2x32xf32> to vector<2x32xbf16>
    %c0_56 = arith.constant 0 : index
    %c0_57 = arith.constant 0 : index
    %102 = vector.load %arg9[%c0_56, %c0_57] : memref<16x32xbf16, #tpu.memory_space<vmem>>, vector<2x32xbf16>
    tpu.vector_store %arg9[%c0_56, %c0_57], %101 {strides = array<i32>} : memref<16x32xbf16, #tpu.memory_space<vmem>>, vector<2x32xbf16>,
    %103 = arith.truncf %100 : vector<2x32xf32> to vector<2x32xbf16>
    %c14 = arith.constant 14 : index
    %c0_58 = arith.constant 0 : index
    %104 = vector.load %arg10[%c14, %c0_58] : memref<16x32xbf16, #tpu.memory_space<vmem>>, vector<2x32xbf16>
    tpu.vector_store %arg10[%c14, %c0_58], %103 {strides = array<i32>} : memref<16x32xbf16, #tpu.memory_space<vmem>>, vector<2x32xbf16>,
    %105 = vector.extract_strided_slice %15 {offsets = [2, 0], sizes = [2, 96], strides = [1, 1]} : vector<16x96xf32> to vector<2x96xf32>
    %106 = arith.truncf %69 : vector<2x32xf32> to vector<2x32xbf16>
    %cst_59 = arith.constant dense<0.000000e+00> : vector<2x96xf32>
    %107 = tpu.matmul %106, %30, %cst_59 {dimension_numbers = #tpu.dot_dimension_numbers<[1], [0], [0], [1], [0, 0, 1, 1], [], []>} : vector<2x32xbf16>, vector<32x96xbf16>, vector<2x96xf32> -> vector<2x96xf32>
    %108 = vector.extract_strided_slice %105 {offsets = [0, 0], sizes = [2, 32], strides = [1, 1]} : vector<2x96xf32> to vector<2x32xf32>
    %109 = vector.extract_strided_slice %107 {offsets = [0, 0], sizes = [2, 32], strides = [1, 1]} : vector<2x96xf32> to vector<2x32xf32>
    %110 = arith.addf %108, %109 : vector<2x32xf32>
    %111 = arith.negf %110 : vector<2x32xf32>
    %112 = math.exp %111 : vector<2x32xf32>
    %cst_60 = arith.constant 1.000000e+00 : f32
    %113 = vector.broadcast %cst_60 : f32 to vector<2x32xf32>
    %114 = arith.addf %113, %112 : vector<2x32xf32>
    %115 = arith.divf %113, %114 : vector<2x32xf32>
    %116 = vector.extract_strided_slice %105 {offsets = [0, 32], sizes = [2, 32], strides = [1, 1]} : vector<2x96xf32> to vector<2x32xf32>
    %117 = vector.extract_strided_slice %107 {offsets = [0, 32], sizes = [2, 32], strides = [1, 1]} : vector<2x96xf32> to vector<2x32xf32>
    %118 = arith.addf %116, %117 : vector<2x32xf32>
    %119 = arith.negf %118 : vector<2x32xf32>
    %120 = math.exp %119 : vector<2x32xf32>
    %cst_61 = arith.constant 1.000000e+00 : f32
    %121 = vector.broadcast %cst_61 : f32 to vector<2x32xf32>
    %122 = arith.addf %121, %120 : vector<2x32xf32>
    %123 = arith.divf %121, %122 : vector<2x32xf32>
    %124 = vector.extract_strided_slice %105 {offsets = [0, 64], sizes = [2, 32], strides = [1, 1]} : vector<2x96xf32> to vector<2x32xf32>
    %125 = vector.extract_strided_slice %107 {offsets = [0, 64], sizes = [2, 32], strides = [1, 1]} : vector<2x96xf32> to vector<2x32xf32>
    %126 = vector.broadcast %34 : vector<1x32xf32> to vector<2x32xf32>
    %127 = arith.addf %125, %126 : vector<2x32xf32>
    %128 = arith.mulf %115, %127 : vector<2x32xf32>
    %129 = arith.addf %124, %128 : vector<2x32xf32>
    %130 = math.tanh %129 : vector<2x32xf32>
    %cst_62 = arith.constant 1.000000e+00 : f32
    %131 = vector.broadcast %cst_62 : f32 to vector<2x32xf32>
    %132 = arith.subf %131, %123 : vector<2x32xf32>
    %133 = arith.mulf %132, %130 : vector<2x32xf32>
    %134 = arith.mulf %123, %69 : vector<2x32xf32>
    %135 = arith.addf %133, %134 : vector<2x32xf32>
    %136 = vector.extract_strided_slice %28 {offsets = [12, 0], sizes = [2, 96], strides = [1, 1]} : vector<16x96xf32> to vector<2x96xf32>
    %137 = arith.truncf %100 : vector<2x32xf32> to vector<2x32xbf16>
    %cst_63 = arith.constant dense<0.000000e+00> : vector<2x96xf32>
    %138 = tpu.matmul %137, %32, %cst_63 {dimension_numbers = #tpu.dot_dimension_numbers<[1], [0], [0], [1], [0, 0, 1, 1], [], []>} : vector<2x32xbf16>, vector<32x96xbf16>, vector<2x96xf32> -> vector<2x96xf32>
    %139 = vector.extract_strided_slice %136 {offsets = [0, 0], sizes = [2, 32], strides = [1, 1]} : vector<2x96xf32> to vector<2x32xf32>
    %140 = vector.extract_strided_slice %138 {offsets = [0, 0], sizes = [2, 32], strides = [1, 1]} : vector<2x96xf32> to vector<2x32xf32>
    %141 = arith.addf %139, %140 : vector<2x32xf32>
    %142 = arith.negf %141 : vector<2x32xf32>
    %143 = math.exp %142 : vector<2x32xf32>
    %cst_64 = arith.constant 1.000000e+00 : f32
    %144 = vector.broadcast %cst_64 : f32 to vector<2x32xf32>
    %145 = arith.addf %144, %143 : vector<2x32xf32>
    %146 = arith.divf %144, %145 : vector<2x32xf32>
    %147 = vector.extract_strided_slice %136 {offsets = [0, 32], sizes = [2, 32], strides = [1, 1]} : vector<2x96xf32> to vector<2x32xf32>
    %148 = vector.extract_strided_slice %138 {offsets = [0, 32], sizes = [2, 32], strides = [1, 1]} : vector<2x96xf32> to vector<2x32xf32>
    %149 = arith.addf %147, %148 : vector<2x32xf32>
    %150 = arith.negf %149 : vector<2x32xf32>
    %151 = math.exp %150 : vector<2x32xf32>
    %cst_65 = arith.constant 1.000000e+00 : f32
    %152 = vector.broadcast %cst_65 : f32 to vector<2x32xf32>
    %153 = arith.addf %152, %151 : vector<2x32xf32>
    %154 = arith.divf %152, %153 : vector<2x32xf32>
    %155 = vector.extract_strided_slice %136 {offsets = [0, 64], sizes = [2, 32], strides = [1, 1]} : vector<2x96xf32> to vector<2x32xf32>
    %156 = vector.extract_strided_slice %138 {offsets = [0, 64], sizes = [2, 32], strides = [1, 1]} : vector<2x96xf32> to vector<2x32xf32>
    %157 = vector.broadcast %36 : vector<1x32xf32> to vector<2x32xf32>
    %158 = arith.addf %156, %157 : vector<2x32xf32>
    %159 = arith.mulf %146, %158 : vector<2x32xf32>
    %160 = arith.addf %155, %159 : vector<2x32xf32>
    %161 = math.tanh %160 : vector<2x32xf32>
    %cst_66 = arith.constant 1.000000e+00 : f32
    %162 = vector.broadcast %cst_66 : f32 to vector<2x32xf32>
    %163 = arith.subf %162, %154 : vector<2x32xf32>
    %164 = arith.mulf %163, %161 : vector<2x32xf32>
    %165 = arith.mulf %154, %100 : vector<2x32xf32>
    %166 = arith.addf %164, %165 : vector<2x32xf32>
    %167 = arith.truncf %135 : vector<2x32xf32> to vector<2x32xbf16>
    %c2 = arith.constant 2 : index
    %c0_67 = arith.constant 0 : index
    %168 = vector.load %arg9[%c2, %c0_67] : memref<16x32xbf16, #tpu.memory_space<vmem>>, vector<2x32xbf16>
    tpu.vector_store %arg9[%c2, %c0_67], %167 {strides = array<i32>} : memref<16x32xbf16, #tpu.memory_space<vmem>>, vector<2x32xbf16>,
    %169 = arith.truncf %166 : vector<2x32xf32> to vector<2x32xbf16>
    %c12 = arith.constant 12 : index
    %c0_68 = arith.constant 0 : index
    %170 = vector.load %arg10[%c12, %c0_68] : memref<16x32xbf16, #tpu.memory_space<vmem>>, vector<2x32xbf16>
    tpu.vector_store %arg10[%c12, %c0_68], %169 {strides = array<i32>} : memref<16x32xbf16, #tpu.memory_space<vmem>>, vector<2x32xbf16>,
    %171 = vector.extract_strided_slice %15 {offsets = [4, 0], sizes = [2, 96], strides = [1, 1]} : vector<16x96xf32> to vector<2x96xf32>
    %172 = arith.truncf %135 : vector<2x32xf32> to vector<2x32xbf16>
    %cst_69 = arith.constant dense<0.000000e+00> : vector<2x96xf32>
    %173 = tpu.matmul %172, %30, %cst_69 {dimension_numbers = #tpu.dot_dimension_numbers<[1], [0], [0], [1], [0, 0, 1, 1], [], []>} : vector<2x32xbf16>, vector<32x96xbf16>, vector<2x96xf32> -> vector<2x96xf32>
    %174 = vector.extract_strided_slice %171 {offsets = [0, 0], sizes = [2, 32], strides = [1, 1]} : vector<2x96xf32> to vector<2x32xf32>
    %175 = vector.extract_strided_slice %173 {offsets = [0, 0], sizes = [2, 32], strides = [1, 1]} : vector<2x96xf32> to vector<2x32xf32>
    %176 = arith.addf %174, %175 : vector<2x32xf32>
    %177 = arith.negf %176 : vector<2x32xf32>
    %178 = math.exp %177 : vector<2x32xf32>
    %cst_70 = arith.constant 1.000000e+00 : f32
    %179 = vector.broadcast %cst_70 : f32 to vector<2x32xf32>
    %180 = arith.addf %179, %178 : vector<2x32xf32>
    %181 = arith.divf %179, %180 : vector<2x32xf32>
    %182 = vector.extract_strided_slice %171 {offsets = [0, 32], sizes = [2, 32], strides = [1, 1]} : vector<2x96xf32> to vector<2x32xf32>
    %183 = vector.extract_strided_slice %173 {offsets = [0, 32], sizes = [2, 32], strides = [1, 1]} : vector<2x96xf32> to vector<2x32xf32>
    %184 = arith.addf %182, %183 : vector<2x32xf32>
    %185 = arith.negf %184 : vector<2x32xf32>
    %186 = math.exp %185 : vector<2x32xf32>
    %cst_71 = arith.constant 1.000000e+00 : f32
    %187 = vector.broadcast %cst_71 : f32 to vector<2x32xf32>
    %188 = arith.addf %187, %186 : vector<2x32xf32>
    %189 = arith.divf %187, %188 : vector<2x32xf32>
    %190 = vector.extract_strided_slice %171 {offsets = [0, 64], sizes = [2, 32], strides = [1, 1]} : vector<2x96xf32> to vector<2x32xf32>
    %191 = vector.extract_strided_slice %173 {offsets = [0, 64], sizes = [2, 32], strides = [1, 1]} : vector<2x96xf32> to vector<2x32xf32>
    %192 = vector.broadcast %34 : vector<1x32xf32> to vector<2x32xf32>
    %193 = arith.addf %191, %192 : vector<2x32xf32>
    %194 = arith.mulf %181, %193 : vector<2x32xf32>
    %195 = arith.addf %190, %194 : vector<2x32xf32>
    %196 = math.tanh %195 : vector<2x32xf32>
    %cst_72 = arith.constant 1.000000e+00 : f32
    %197 = vector.broadcast %cst_72 : f32 to vector<2x32xf32>
    %198 = arith.subf %197, %189 : vector<2x32xf32>
    %199 = arith.mulf %198, %196 : vector<2x32xf32>
    %200 = arith.mulf %189, %135 : vector<2x32xf32>
    %201 = arith.addf %199, %200 : vector<2x32xf32>
    %202 = vector.extract_strided_slice %28 {offsets = [10, 0], sizes = [2, 96], strides = [1, 1]} : vector<16x96xf32> to vector<2x96xf32>
    %203 = arith.truncf %166 : vector<2x32xf32> to vector<2x32xbf16>
    %cst_73 = arith.constant dense<0.000000e+00> : vector<2x96xf32>
    %204 = tpu.matmul %203, %32, %cst_73 {dimension_numbers = #tpu.dot_dimension_numbers<[1], [0], [0], [1], [0, 0, 1, 1], [], []>} : vector<2x32xbf16>, vector<32x96xbf16>, vector<2x96xf32> -> vector<2x96xf32>
    %205 = vector.extract_strided_slice %202 {offsets = [0, 0], sizes = [2, 32], strides = [1, 1]} : vector<2x96xf32> to vector<2x32xf32>
    %206 = vector.extract_strided_slice %204 {offsets = [0, 0], sizes = [2, 32], strides = [1, 1]} : vector<2x96xf32> to vector<2x32xf32>
    %207 = arith.addf %205, %206 : vector<2x32xf32>
    %208 = arith.negf %207 : vector<2x32xf32>
    %209 = math.exp %208 : vector<2x32xf32>
    %cst_74 = arith.constant 1.000000e+00 : f32
    %210 = vector.broadcast %cst_74 : f32 to vector<2x32xf32>
    %211 = arith.addf %210, %209 : vector<2x32xf32>
    %212 = arith.divf %210, %211 : vector<2x32xf32>
    %213 = vector.extract_strided_slice %202 {offsets = [0, 32], sizes = [2, 32], strides = [1, 1]} : vector<2x96xf32> to vector<2x32xf32>
    %214 = vector.extract_strided_slice %204 {offsets = [0, 32], sizes = [2, 32], strides = [1, 1]} : vector<2x96xf32> to vector<2x32xf32>
    %215 = arith.addf %213, %214 : vector<2x32xf32>
    %216 = arith.negf %215 : vector<2x32xf32>
    %217 = math.exp %216 : vector<2x32xf32>
    %cst_75 = arith.constant 1.000000e+00 : f32
    %218 = vector.broadcast %cst_75 : f32 to vector<2x32xf32>
    %219 = arith.addf %218, %217 : vector<2x32xf32>
    %220 = arith.divf %218, %219 : vector<2x32xf32>
    %221 = vector.extract_strided_slice %202 {offsets = [0, 64], sizes = [2, 32], strides = [1, 1]} : vector<2x96xf32> to vector<2x32xf32>
    %222 = vector.extract_strided_slice %204 {offsets = [0, 64], sizes = [2, 32], strides = [1, 1]} : vector<2x96xf32> to vector<2x32xf32>
    %223 = vector.broadcast %36 : vector<1x32xf32> to vector<2x32xf32>
    %224 = arith.addf %222, %223 : vector<2x32xf32>
    %225 = arith.mulf %212, %224 : vector<2x32xf32>
    %226 = arith.addf %221, %225 : vector<2x32xf32>
    %227 = math.tanh %226 : vector<2x32xf32>
    %cst_76 = arith.constant 1.000000e+00 : f32
    %228 = vector.broadcast %cst_76 : f32 to vector<2x32xf32>
    %229 = arith.subf %228, %220 : vector<2x32xf32>
    %230 = arith.mulf %229, %227 : vector<2x32xf32>
    %231 = arith.mulf %220, %166 : vector<2x32xf32>
    %232 = arith.addf %230, %231 : vector<2x32xf32>
    %233 = arith.truncf %201 : vector<2x32xf32> to vector<2x32xbf16>
    %c4 = arith.constant 4 : index
    %c0_77 = arith.constant 0 : index
    %234 = vector.load %arg9[%c4, %c0_77] : memref<16x32xbf16, #tpu.memory_space<vmem>>, vector<2x32xbf16>
    tpu.vector_store %arg9[%c4, %c0_77], %233 {strides = array<i32>} : memref<16x32xbf16, #tpu.memory_space<vmem>>, vector<2x32xbf16>,
    %235 = arith.truncf %232 : vector<2x32xf32> to vector<2x32xbf16>
    %c10 = arith.constant 10 : index
    %c0_78 = arith.constant 0 : index
    %236 = vector.load %arg10[%c10, %c0_78] : memref<16x32xbf16, #tpu.memory_space<vmem>>, vector<2x32xbf16>
    tpu.vector_store %arg10[%c10, %c0_78], %235 {strides = array<i32>} : memref<16x32xbf16, #tpu.memory_space<vmem>>, vector<2x32xbf16>,
    %237 = vector.extract_strided_slice %15 {offsets = [6, 0], sizes = [2, 96], strides = [1, 1]} : vector<16x96xf32> to vector<2x96xf32>
    %238 = arith.truncf %201 : vector<2x32xf32> to vector<2x32xbf16>
    %cst_79 = arith.constant dense<0.000000e+00> : vector<2x96xf32>
    %239 = tpu.matmul %238, %30, %cst_79 {dimension_numbers = #tpu.dot_dimension_numbers<[1], [0], [0], [1], [0, 0, 1, 1], [], []>} : vector<2x32xbf16>, vector<32x96xbf16>, vector<2x96xf32> -> vector<2x96xf32>
    %240 = vector.extract_strided_slice %237 {offsets = [0, 0], sizes = [2, 32], strides = [1, 1]} : vector<2x96xf32> to vector<2x32xf32>
    %241 = vector.extract_strided_slice %239 {offsets = [0, 0], sizes = [2, 32], strides = [1, 1]} : vector<2x96xf32> to vector<2x32xf32>
    %242 = arith.addf %240, %241 : vector<2x32xf32>
    %243 = arith.negf %242 : vector<2x32xf32>
    %244 = math.exp %243 : vector<2x32xf32>
    %cst_80 = arith.constant 1.000000e+00 : f32
    %245 = vector.broadcast %cst_80 : f32 to vector<2x32xf32>
    %246 = arith.addf %245, %244 : vector<2x32xf32>
    %247 = arith.divf %245, %246 : vector<2x32xf32>
    %248 = vector.extract_strided_slice %237 {offsets = [0, 32], sizes = [2, 32], strides = [1, 1]} : vector<2x96xf32> to vector<2x32xf32>
    %249 = vector.extract_strided_slice %239 {offsets = [0, 32], sizes = [2, 32], strides = [1, 1]} : vector<2x96xf32> to vector<2x32xf32>
    %250 = arith.addf %248, %249 : vector<2x32xf32>
    %251 = arith.negf %250 : vector<2x32xf32>
    %252 = math.exp %251 : vector<2x32xf32>
    %cst_81 = arith.constant 1.000000e+00 : f32
    %253 = vector.broadcast %cst_81 : f32 to vector<2x32xf32>
    %254 = arith.addf %253, %252 : vector<2x32xf32>
    %255 = arith.divf %253, %254 : vector<2x32xf32>
    %256 = vector.extract_strided_slice %237 {offsets = [0, 64], sizes = [2, 32], strides = [1, 1]} : vector<2x96xf32> to vector<2x32xf32>
    %257 = vector.extract_strided_slice %239 {offsets = [0, 64], sizes = [2, 32], strides = [1, 1]} : vector<2x96xf32> to vector<2x32xf32>
    %258 = vector.broadcast %34 : vector<1x32xf32> to vector<2x32xf32>
    %259 = arith.addf %257, %258 : vector<2x32xf32>
    %260 = arith.mulf %247, %259 : vector<2x32xf32>
    %261 = arith.addf %256, %260 : vector<2x32xf32>
    %262 = math.tanh %261 : vector<2x32xf32>
    %cst_82 = arith.constant 1.000000e+00 : f32
    %263 = vector.broadcast %cst_82 : f32 to vector<2x32xf32>
    %264 = arith.subf %263, %255 : vector<2x32xf32>
    %265 = arith.mulf %264, %262 : vector<2x32xf32>
    %266 = arith.mulf %255, %201 : vector<2x32xf32>
    %267 = arith.addf %265, %266 : vector<2x32xf32>
    %268 = vector.extract_strided_slice %28 {offsets = [8, 0], sizes = [2, 96], strides = [1, 1]} : vector<16x96xf32> to vector<2x96xf32>
    %269 = arith.truncf %232 : vector<2x32xf32> to vector<2x32xbf16>
    %cst_83 = arith.constant dense<0.000000e+00> : vector<2x96xf32>
    %270 = tpu.matmul %269, %32, %cst_83 {dimension_numbers = #tpu.dot_dimension_numbers<[1], [0], [0], [1], [0, 0, 1, 1], [], []>} : vector<2x32xbf16>, vector<32x96xbf16>, vector<2x96xf32> -> vector<2x96xf32>
    %271 = vector.extract_strided_slice %268 {offsets = [0, 0], sizes = [2, 32], strides = [1, 1]} : vector<2x96xf32> to vector<2x32xf32>
    %272 = vector.extract_strided_slice %270 {offsets = [0, 0], sizes = [2, 32], strides = [1, 1]} : vector<2x96xf32> to vector<2x32xf32>
    %273 = arith.addf %271, %272 : vector<2x32xf32>
    %274 = arith.negf %273 : vector<2x32xf32>
    %275 = math.exp %274 : vector<2x32xf32>
    %cst_84 = arith.constant 1.000000e+00 : f32
    %276 = vector.broadcast %cst_84 : f32 to vector<2x32xf32>
    %277 = arith.addf %276, %275 : vector<2x32xf32>
    %278 = arith.divf %276, %277 : vector<2x32xf32>
    %279 = vector.extract_strided_slice %268 {offsets = [0, 32], sizes = [2, 32], strides = [1, 1]} : vector<2x96xf32> to vector<2x32xf32>
    %280 = vector.extract_strided_slice %270 {offsets = [0, 32], sizes = [2, 32], strides = [1, 1]} : vector<2x96xf32> to vector<2x32xf32>
    %281 = arith.addf %279, %280 : vector<2x32xf32>
    %282 = arith.negf %281 : vector<2x32xf32>
    %283 = math.exp %282 : vector<2x32xf32>
    %cst_85 = arith.constant 1.000000e+00 : f32
    %284 = vector.broadcast %cst_85 : f32 to vector<2x32xf32>
    %285 = arith.addf %284, %283 : vector<2x32xf32>
    %286 = arith.divf %284, %285 : vector<2x32xf32>
    %287 = vector.extract_strided_slice %268 {offsets = [0, 64], sizes = [2, 32], strides = [1, 1]} : vector<2x96xf32> to vector<2x32xf32>
    %288 = vector.extract_strided_slice %270 {offsets = [0, 64], sizes = [2, 32], strides = [1, 1]} : vector<2x96xf32> to vector<2x32xf32>
    %289 = vector.broadcast %36 : vector<1x32xf32> to vector<2x32xf32>
    %290 = arith.addf %288, %289 : vector<2x32xf32>
    %291 = arith.mulf %278, %290 : vector<2x32xf32>
    %292 = arith.addf %287, %291 : vector<2x32xf32>
    %293 = math.tanh %292 : vector<2x32xf32>
    %cst_86 = arith.constant 1.000000e+00 : f32
    %294 = vector.broadcast %cst_86 : f32 to vector<2x32xf32>
    %295 = arith.subf %294, %286 : vector<2x32xf32>
    %296 = arith.mulf %295, %293 : vector<2x32xf32>
    %297 = arith.mulf %286, %232 : vector<2x32xf32>
    %298 = arith.addf %296, %297 : vector<2x32xf32>
    %299 = arith.truncf %267 : vector<2x32xf32> to vector<2x32xbf16>
    %c6 = arith.constant 6 : index
    %c0_87 = arith.constant 0 : index
    %300 = vector.load %arg9[%c6, %c0_87] : memref<16x32xbf16, #tpu.memory_space<vmem>>, vector<2x32xbf16>
    tpu.vector_store %arg9[%c6, %c0_87], %299 {strides = array<i32>} : memref<16x32xbf16, #tpu.memory_space<vmem>>, vector<2x32xbf16>,
    %301 = arith.truncf %298 : vector<2x32xf32> to vector<2x32xbf16>
    %c8 = arith.constant 8 : index
    %c0_88 = arith.constant 0 : index
    %302 = vector.load %arg10[%c8, %c0_88] : memref<16x32xbf16, #tpu.memory_space<vmem>>, vector<2x32xbf16>
    tpu.vector_store %arg10[%c8, %c0_88], %301 {strides = array<i32>} : memref<16x32xbf16, #tpu.memory_space<vmem>>, vector<2x32xbf16>,
    %303 = vector.extract_strided_slice %15 {offsets = [8, 0], sizes = [2, 96], strides = [1, 1]} : vector<16x96xf32> to vector<2x96xf32>
    %304 = arith.truncf %267 : vector<2x32xf32> to vector<2x32xbf16>
    %cst_89 = arith.constant dense<0.000000e+00> : vector<2x96xf32>
    %305 = tpu.matmul %304, %30, %cst_89 {dimension_numbers = #tpu.dot_dimension_numbers<[1], [0], [0], [1], [0, 0, 1, 1], [], []>} : vector<2x32xbf16>, vector<32x96xbf16>, vector<2x96xf32> -> vector<2x96xf32>
    %306 = vector.extract_strided_slice %303 {offsets = [0, 0], sizes = [2, 32], strides = [1, 1]} : vector<2x96xf32> to vector<2x32xf32>
    %307 = vector.extract_strided_slice %305 {offsets = [0, 0], sizes = [2, 32], strides = [1, 1]} : vector<2x96xf32> to vector<2x32xf32>
    %308 = arith.addf %306, %307 : vector<2x32xf32>
    %309 = arith.negf %308 : vector<2x32xf32>
    %310 = math.exp %309 : vector<2x32xf32>
    %cst_90 = arith.constant 1.000000e+00 : f32
    %311 = vector.broadcast %cst_90 : f32 to vector<2x32xf32>
    %312 = arith.addf %311, %310 : vector<2x32xf32>
    %313 = arith.divf %311, %312 : vector<2x32xf32>
    %314 = vector.extract_strided_slice %303 {offsets = [0, 32], sizes = [2, 32], strides = [1, 1]} : vector<2x96xf32> to vector<2x32xf32>
    %315 = vector.extract_strided_slice %305 {offsets = [0, 32], sizes = [2, 32], strides = [1, 1]} : vector<2x96xf32> to vector<2x32xf32>
    %316 = arith.addf %314, %315 : vector<2x32xf32>
    %317 = arith.negf %316 : vector<2x32xf32>
    %318 = math.exp %317 : vector<2x32xf32>
    %cst_91 = arith.constant 1.000000e+00 : f32
    %319 = vector.broadcast %cst_91 : f32 to vector<2x32xf32>
    %320 = arith.addf %319, %318 : vector<2x32xf32>
    %321 = arith.divf %319, %320 : vector<2x32xf32>
    %322 = vector.extract_strided_slice %303 {offsets = [0, 64], sizes = [2, 32], strides = [1, 1]} : vector<2x96xf32> to vector<2x32xf32>
    %323 = vector.extract_strided_slice %305 {offsets = [0, 64], sizes = [2, 32], strides = [1, 1]} : vector<2x96xf32> to vector<2x32xf32>
    %324 = vector.broadcast %34 : vector<1x32xf32> to vector<2x32xf32>
    %325 = arith.addf %323, %324 : vector<2x32xf32>
    %326 = arith.mulf %313, %325 : vector<2x32xf32>
    %327 = arith.addf %322, %326 : vector<2x32xf32>
    %328 = math.tanh %327 : vector<2x32xf32>
    %cst_92 = arith.constant 1.000000e+00 : f32
    %329 = vector.broadcast %cst_92 : f32 to vector<2x32xf32>
    %330 = arith.subf %329, %321 : vector<2x32xf32>
    %331 = arith.mulf %330, %328 : vector<2x32xf32>
    %332 = arith.mulf %321, %267 : vector<2x32xf32>
    %333 = arith.addf %331, %332 : vector<2x32xf32>
    %334 = vector.extract_strided_slice %28 {offsets = [6, 0], sizes = [2, 96], strides = [1, 1]} : vector<16x96xf32> to vector<2x96xf32>
    %335 = arith.truncf %298 : vector<2x32xf32> to vector<2x32xbf16>
    %cst_93 = arith.constant dense<0.000000e+00> : vector<2x96xf32>
    %336 = tpu.matmul %335, %32, %cst_93 {dimension_numbers = #tpu.dot_dimension_numbers<[1], [0], [0], [1], [0, 0, 1, 1], [], []>} : vector<2x32xbf16>, vector<32x96xbf16>, vector<2x96xf32> -> vector<2x96xf32>
    %337 = vector.extract_strided_slice %334 {offsets = [0, 0], sizes = [2, 32], strides = [1, 1]} : vector<2x96xf32> to vector<2x32xf32>
    %338 = vector.extract_strided_slice %336 {offsets = [0, 0], sizes = [2, 32], strides = [1, 1]} : vector<2x96xf32> to vector<2x32xf32>
    %339 = arith.addf %337, %338 : vector<2x32xf32>
    %340 = arith.negf %339 : vector<2x32xf32>
    %341 = math.exp %340 : vector<2x32xf32>
    %cst_94 = arith.constant 1.000000e+00 : f32
    %342 = vector.broadcast %cst_94 : f32 to vector<2x32xf32>
    %343 = arith.addf %342, %341 : vector<2x32xf32>
    %344 = arith.divf %342, %343 : vector<2x32xf32>
    %345 = vector.extract_strided_slice %334 {offsets = [0, 32], sizes = [2, 32], strides = [1, 1]} : vector<2x96xf32> to vector<2x32xf32>
    %346 = vector.extract_strided_slice %336 {offsets = [0, 32], sizes = [2, 32], strides = [1, 1]} : vector<2x96xf32> to vector<2x32xf32>
    %347 = arith.addf %345, %346 : vector<2x32xf32>
    %348 = arith.negf %347 : vector<2x32xf32>
    %349 = math.exp %348 : vector<2x32xf32>
    %cst_95 = arith.constant 1.000000e+00 : f32
    %350 = vector.broadcast %cst_95 : f32 to vector<2x32xf32>
    %351 = arith.addf %350, %349 : vector<2x32xf32>
    %352 = arith.divf %350, %351 : vector<2x32xf32>
    %353 = vector.extract_strided_slice %334 {offsets = [0, 64], sizes = [2, 32], strides = [1, 1]} : vector<2x96xf32> to vector<2x32xf32>
    %354 = vector.extract_strided_slice %336 {offsets = [0, 64], sizes = [2, 32], strides = [1, 1]} : vector<2x96xf32> to vector<2x32xf32>
    %355 = vector.broadcast %36 : vector<1x32xf32> to vector<2x32xf32>
    %356 = arith.addf %354, %355 : vector<2x32xf32>
    %357 = arith.mulf %344, %356 : vector<2x32xf32>
    %358 = arith.addf %353, %357 : vector<2x32xf32>
    %359 = math.tanh %358 : vector<2x32xf32>
    %cst_96 = arith.constant 1.000000e+00 : f32
    %360 = vector.broadcast %cst_96 : f32 to vector<2x32xf32>
    %361 = arith.subf %360, %352 : vector<2x32xf32>
    %362 = arith.mulf %361, %359 : vector<2x32xf32>
    %363 = arith.mulf %352, %298 : vector<2x32xf32>
    %364 = arith.addf %362, %363 : vector<2x32xf32>
    %365 = arith.truncf %333 : vector<2x32xf32> to vector<2x32xbf16>
    %c8_97 = arith.constant 8 : index
    %c0_98 = arith.constant 0 : index
    %366 = vector.load %arg9[%c8_97, %c0_98] : memref<16x32xbf16, #tpu.memory_space<vmem>>, vector<2x32xbf16>
    tpu.vector_store %arg9[%c8_97, %c0_98], %365 {strides = array<i32>} : memref<16x32xbf16, #tpu.memory_space<vmem>>, vector<2x32xbf16>,
    %367 = arith.truncf %364 : vector<2x32xf32> to vector<2x32xbf16>
    %c6_99 = arith.constant 6 : index
    %c0_100 = arith.constant 0 : index
    %368 = vector.load %arg10[%c6_99, %c0_100] : memref<16x32xbf16, #tpu.memory_space<vmem>>, vector<2x32xbf16>
    tpu.vector_store %arg10[%c6_99, %c0_100], %367 {strides = array<i32>} : memref<16x32xbf16, #tpu.memory_space<vmem>>, vector<2x32xbf16>,
    %369 = vector.extract_strided_slice %15 {offsets = [10, 0], sizes = [2, 96], strides = [1, 1]} : vector<16x96xf32> to vector<2x96xf32>
    %370 = arith.truncf %333 : vector<2x32xf32> to vector<2x32xbf16>
    %cst_101 = arith.constant dense<0.000000e+00> : vector<2x96xf32>
    %371 = tpu.matmul %370, %30, %cst_101 {dimension_numbers = #tpu.dot_dimension_numbers<[1], [0], [0], [1], [0, 0, 1, 1], [], []>} : vector<2x32xbf16>, vector<32x96xbf16>, vector<2x96xf32> -> vector<2x96xf32>
    %372 = vector.extract_strided_slice %369 {offsets = [0, 0], sizes = [2, 32], strides = [1, 1]} : vector<2x96xf32> to vector<2x32xf32>
    %373 = vector.extract_strided_slice %371 {offsets = [0, 0], sizes = [2, 32], strides = [1, 1]} : vector<2x96xf32> to vector<2x32xf32>
    %374 = arith.addf %372, %373 : vector<2x32xf32>
    %375 = arith.negf %374 : vector<2x32xf32>
    %376 = math.exp %375 : vector<2x32xf32>
    %cst_102 = arith.constant 1.000000e+00 : f32
    %377 = vector.broadcast %cst_102 : f32 to vector<2x32xf32>
    %378 = arith.addf %377, %376 : vector<2x32xf32>
    %379 = arith.divf %377, %378 : vector<2x32xf32>
    %380 = vector.extract_strided_slice %369 {offsets = [0, 32], sizes = [2, 32], strides = [1, 1]} : vector<2x96xf32> to vector<2x32xf32>
    %381 = vector.extract_strided_slice %371 {offsets = [0, 32], sizes = [2, 32], strides = [1, 1]} : vector<2x96xf32> to vector<2x32xf32>
    %382 = arith.addf %380, %381 : vector<2x32xf32>
    %383 = arith.negf %382 : vector<2x32xf32>
    %384 = math.exp %383 : vector<2x32xf32>
    %cst_103 = arith.constant 1.000000e+00 : f32
    %385 = vector.broadcast %cst_103 : f32 to vector<2x32xf32>
    %386 = arith.addf %385, %384 : vector<2x32xf32>
    %387 = arith.divf %385, %386 : vector<2x32xf32>
    %388 = vector.extract_strided_slice %369 {offsets = [0, 64], sizes = [2, 32], strides = [1, 1]} : vector<2x96xf32> to vector<2x32xf32>
    %389 = vector.extract_strided_slice %371 {offsets = [0, 64], sizes = [2, 32], strides = [1, 1]} : vector<2x96xf32> to vector<2x32xf32>
    %390 = vector.broadcast %34 : vector<1x32xf32> to vector<2x32xf32>
    %391 = arith.addf %389, %390 : vector<2x32xf32>
    %392 = arith.mulf %379, %391 : vector<2x32xf32>
    %393 = arith.addf %388, %392 : vector<2x32xf32>
    %394 = math.tanh %393 : vector<2x32xf32>
    %cst_104 = arith.constant 1.000000e+00 : f32
    %395 = vector.broadcast %cst_104 : f32 to vector<2x32xf32>
    %396 = arith.subf %395, %387 : vector<2x32xf32>
    %397 = arith.mulf %396, %394 : vector<2x32xf32>
    %398 = arith.mulf %387, %333 : vector<2x32xf32>
    %399 = arith.addf %397, %398 : vector<2x32xf32>
    %400 = vector.extract_strided_slice %28 {offsets = [4, 0], sizes = [2, 96], strides = [1, 1]} : vector<16x96xf32> to vector<2x96xf32>
    %401 = arith.truncf %364 : vector<2x32xf32> to vector<2x32xbf16>
    %cst_105 = arith.constant dense<0.000000e+00> : vector<2x96xf32>
    %402 = tpu.matmul %401, %32, %cst_105 {dimension_numbers = #tpu.dot_dimension_numbers<[1], [0], [0], [1], [0, 0, 1, 1], [], []>} : vector<2x32xbf16>, vector<32x96xbf16>, vector<2x96xf32> -> vector<2x96xf32>
    %403 = vector.extract_strided_slice %400 {offsets = [0, 0], sizes = [2, 32], strides = [1, 1]} : vector<2x96xf32> to vector<2x32xf32>
    %404 = vector.extract_strided_slice %402 {offsets = [0, 0], sizes = [2, 32], strides = [1, 1]} : vector<2x96xf32> to vector<2x32xf32>
    %405 = arith.addf %403, %404 : vector<2x32xf32>
    %406 = arith.negf %405 : vector<2x32xf32>
    %407 = math.exp %406 : vector<2x32xf32>
    %cst_106 = arith.constant 1.000000e+00 : f32
    %408 = vector.broadcast %cst_106 : f32 to vector<2x32xf32>
    %409 = arith.addf %408, %407 : vector<2x32xf32>
    %410 = arith.divf %408, %409 : vector<2x32xf32>
    %411 = vector.extract_strided_slice %400 {offsets = [0, 32], sizes = [2, 32], strides = [1, 1]} : vector<2x96xf32> to vector<2x32xf32>
    %412 = vector.extract_strided_slice %402 {offsets = [0, 32], sizes = [2, 32], strides = [1, 1]} : vector<2x96xf32> to vector<2x32xf32>
    %413 = arith.addf %411, %412 : vector<2x32xf32>
    %414 = arith.negf %413 : vector<2x32xf32>
    %415 = math.exp %414 : vector<2x32xf32>
    %cst_107 = arith.constant 1.000000e+00 : f32
    %416 = vector.broadcast %cst_107 : f32 to vector<2x32xf32>
    %417 = arith.addf %416, %415 : vector<2x32xf32>
    %418 = arith.divf %416, %417 : vector<2x32xf32>
    %419 = vector.extract_strided_slice %400 {offsets = [0, 64], sizes = [2, 32], strides = [1, 1]} : vector<2x96xf32> to vector<2x32xf32>
    %420 = vector.extract_strided_slice %402 {offsets = [0, 64], sizes = [2, 32], strides = [1, 1]} : vector<2x96xf32> to vector<2x32xf32>
    %421 = vector.broadcast %36 : vector<1x32xf32> to vector<2x32xf32>
    %422 = arith.addf %420, %421 : vector<2x32xf32>
    %423 = arith.mulf %410, %422 : vector<2x32xf32>
    %424 = arith.addf %419, %423 : vector<2x32xf32>
    %425 = math.tanh %424 : vector<2x32xf32>
    %cst_108 = arith.constant 1.000000e+00 : f32
    %426 = vector.broadcast %cst_108 : f32 to vector<2x32xf32>
    %427 = arith.subf %426, %418 : vector<2x32xf32>
    %428 = arith.mulf %427, %425 : vector<2x32xf32>
    %429 = arith.mulf %418, %364 : vector<2x32xf32>
    %430 = arith.addf %428, %429 : vector<2x32xf32>
    %431 = arith.truncf %399 : vector<2x32xf32> to vector<2x32xbf16>
    %c10_109 = arith.constant 10 : index
    %c0_110 = arith.constant 0 : index
    %432 = vector.load %arg9[%c10_109, %c0_110] : memref<16x32xbf16, #tpu.memory_space<vmem>>, vector<2x32xbf16>
    tpu.vector_store %arg9[%c10_109, %c0_110], %431 {strides = array<i32>} : memref<16x32xbf16, #tpu.memory_space<vmem>>, vector<2x32xbf16>,
    %433 = arith.truncf %430 : vector<2x32xf32> to vector<2x32xbf16>
    %c4_111 = arith.constant 4 : index
    %c0_112 = arith.constant 0 : index
    %434 = vector.load %arg10[%c4_111, %c0_112] : memref<16x32xbf16, #tpu.memory_space<vmem>>, vector<2x32xbf16>
    tpu.vector_store %arg10[%c4_111, %c0_112], %433 {strides = array<i32>} : memref<16x32xbf16, #tpu.memory_space<vmem>>, vector<2x32xbf16>,
    %435 = vector.extract_strided_slice %15 {offsets = [12, 0], sizes = [2, 96], strides = [1, 1]} : vector<16x96xf32> to vector<2x96xf32>
    %436 = arith.truncf %399 : vector<2x32xf32> to vector<2x32xbf16>
    %cst_113 = arith.constant dense<0.000000e+00> : vector<2x96xf32>
    %437 = tpu.matmul %436, %30, %cst_113 {dimension_numbers = #tpu.dot_dimension_numbers<[1], [0], [0], [1], [0, 0, 1, 1], [], []>} : vector<2x32xbf16>, vector<32x96xbf16>, vector<2x96xf32> -> vector<2x96xf32>
    %438 = vector.extract_strided_slice %435 {offsets = [0, 0], sizes = [2, 32], strides = [1, 1]} : vector<2x96xf32> to vector<2x32xf32>
    %439 = vector.extract_strided_slice %437 {offsets = [0, 0], sizes = [2, 32], strides = [1, 1]} : vector<2x96xf32> to vector<2x32xf32>
    %440 = arith.addf %438, %439 : vector<2x32xf32>
    %441 = arith.negf %440 : vector<2x32xf32>
    %442 = math.exp %441 : vector<2x32xf32>
    %cst_114 = arith.constant 1.000000e+00 : f32
    %443 = vector.broadcast %cst_114 : f32 to vector<2x32xf32>
    %444 = arith.addf %443, %442 : vector<2x32xf32>
    %445 = arith.divf %443, %444 : vector<2x32xf32>
    %446 = vector.extract_strided_slice %435 {offsets = [0, 32], sizes = [2, 32], strides = [1, 1]} : vector<2x96xf32> to vector<2x32xf32>
    %447 = vector.extract_strided_slice %437 {offsets = [0, 32], sizes = [2, 32], strides = [1, 1]} : vector<2x96xf32> to vector<2x32xf32>
    %448 = arith.addf %446, %447 : vector<2x32xf32>
    %449 = arith.negf %448 : vector<2x32xf32>
    %450 = math.exp %449 : vector<2x32xf32>
    %cst_115 = arith.constant 1.000000e+00 : f32
    %451 = vector.broadcast %cst_115 : f32 to vector<2x32xf32>
    %452 = arith.addf %451, %450 : vector<2x32xf32>
    %453 = arith.divf %451, %452 : vector<2x32xf32>
    %454 = vector.extract_strided_slice %435 {offsets = [0, 64], sizes = [2, 32], strides = [1, 1]} : vector<2x96xf32> to vector<2x32xf32>
    %455 = vector.extract_strided_slice %437 {offsets = [0, 64], sizes = [2, 32], strides = [1, 1]} : vector<2x96xf32> to vector<2x32xf32>
    %456 = vector.broadcast %34 : vector<1x32xf32> to vector<2x32xf32>
    %457 = arith.addf %455, %456 : vector<2x32xf32>
    %458 = arith.mulf %445, %457 : vector<2x32xf32>
    %459 = arith.addf %454, %458 : vector<2x32xf32>
    %460 = math.tanh %459 : vector<2x32xf32>
    %cst_116 = arith.constant 1.000000e+00 : f32
    %461 = vector.broadcast %cst_116 : f32 to vector<2x32xf32>
    %462 = arith.subf %461, %453 : vector<2x32xf32>
    %463 = arith.mulf %462, %460 : vector<2x32xf32>
    %464 = arith.mulf %453, %399 : vector<2x32xf32>
    %465 = arith.addf %463, %464 : vector<2x32xf32>
    %466 = vector.extract_strided_slice %28 {offsets = [2, 0], sizes = [2, 96], strides = [1, 1]} : vector<16x96xf32> to vector<2x96xf32>
    %467 = arith.truncf %430 : vector<2x32xf32> to vector<2x32xbf16>
    %cst_117 = arith.constant dense<0.000000e+00> : vector<2x96xf32>
    %468 = tpu.matmul %467, %32, %cst_117 {dimension_numbers = #tpu.dot_dimension_numbers<[1], [0], [0], [1], [0, 0, 1, 1], [], []>} : vector<2x32xbf16>, vector<32x96xbf16>, vector<2x96xf32> -> vector<2x96xf32>
    %469 = vector.extract_strided_slice %466 {offsets = [0, 0], sizes = [2, 32], strides = [1, 1]} : vector<2x96xf32> to vector<2x32xf32>
    %470 = vector.extract_strided_slice %468 {offsets = [0, 0], sizes = [2, 32], strides = [1, 1]} : vector<2x96xf32> to vector<2x32xf32>
    %471 = arith.addf %469, %470 : vector<2x32xf32>
    %472 = arith.negf %471 : vector<2x32xf32>
    %473 = math.exp %472 : vector<2x32xf32>
    %cst_118 = arith.constant 1.000000e+00 : f32
    %474 = vector.broadcast %cst_118 : f32 to vector<2x32xf32>
    %475 = arith.addf %474, %473 : vector<2x32xf32>
    %476 = arith.divf %474, %475 : vector<2x32xf32>
    %477 = vector.extract_strided_slice %466 {offsets = [0, 32], sizes = [2, 32], strides = [1, 1]} : vector<2x96xf32> to vector<2x32xf32>
    %478 = vector.extract_strided_slice %468 {offsets = [0, 32], sizes = [2, 32], strides = [1, 1]} : vector<2x96xf32> to vector<2x32xf32>
    %479 = arith.addf %477, %478 : vector<2x32xf32>
    %480 = arith.negf %479 : vector<2x32xf32>
    %481 = math.exp %480 : vector<2x32xf32>
    %cst_119 = arith.constant 1.000000e+00 : f32
    %482 = vector.broadcast %cst_119 : f32 to vector<2x32xf32>
    %483 = arith.addf %482, %481 : vector<2x32xf32>
    %484 = arith.divf %482, %483 : vector<2x32xf32>
    %485 = vector.extract_strided_slice %466 {offsets = [0, 64], sizes = [2, 32], strides = [1, 1]} : vector<2x96xf32> to vector<2x32xf32>
    %486 = vector.extract_strided_slice %468 {offsets = [0, 64], sizes = [2, 32], strides = [1, 1]} : vector<2x96xf32> to vector<2x32xf32>
    %487 = vector.broadcast %36 : vector<1x32xf32> to vector<2x32xf32>
    %488 = arith.addf %486, %487 : vector<2x32xf32>
    %489 = arith.mulf %476, %488 : vector<2x32xf32>
    %490 = arith.addf %485, %489 : vector<2x32xf32>
    %491 = math.tanh %490 : vector<2x32xf32>
    %cst_120 = arith.constant 1.000000e+00 : f32
    %492 = vector.broadcast %cst_120 : f32 to vector<2x32xf32>
    %493 = arith.subf %492, %484 : vector<2x32xf32>
    %494 = arith.mulf %493, %491 : vector<2x32xf32>
    %495 = arith.mulf %484, %430 : vector<2x32xf32>
    %496 = arith.addf %494, %495 : vector<2x32xf32>
    %497 = arith.truncf %465 : vector<2x32xf32> to vector<2x32xbf16>
    %c12_121 = arith.constant 12 : index
    %c0_122 = arith.constant 0 : index
    %498 = vector.load %arg9[%c12_121, %c0_122] : memref<16x32xbf16, #tpu.memory_space<vmem>>, vector<2x32xbf16>
    tpu.vector_store %arg9[%c12_121, %c0_122], %497 {strides = array<i32>} : memref<16x32xbf16, #tpu.memory_space<vmem>>, vector<2x32xbf16>,
    %499 = arith.truncf %496 : vector<2x32xf32> to vector<2x32xbf16>
    %c2_123 = arith.constant 2 : index
    %c0_124 = arith.constant 0 : index
    %500 = vector.load %arg10[%c2_123, %c0_124] : memref<16x32xbf16, #tpu.memory_space<vmem>>, vector<2x32xbf16>
    tpu.vector_store %arg10[%c2_123, %c0_124], %499 {strides = array<i32>} : memref<16x32xbf16, #tpu.memory_space<vmem>>, vector<2x32xbf16>,
    %501 = vector.extract_strided_slice %15 {offsets = [14, 0], sizes = [2, 96], strides = [1, 1]} : vector<16x96xf32> to vector<2x96xf32>
    %502 = arith.truncf %465 : vector<2x32xf32> to vector<2x32xbf16>
    %cst_125 = arith.constant dense<0.000000e+00> : vector<2x96xf32>
    %503 = tpu.matmul %502, %30, %cst_125 {dimension_numbers = #tpu.dot_dimension_numbers<[1], [0], [0], [1], [0, 0, 1, 1], [], []>} : vector<2x32xbf16>, vector<32x96xbf16>, vector<2x96xf32> -> vector<2x96xf32>
    %504 = vector.extract_strided_slice %501 {offsets = [0, 0], sizes = [2, 32], strides = [1, 1]} : vector<2x96xf32> to vector<2x32xf32>
    %505 = vector.extract_strided_slice %503 {offsets = [0, 0], sizes = [2, 32], strides = [1, 1]} : vector<2x96xf32> to vector<2x32xf32>
    %506 = arith.addf %504, %505 : vector<2x32xf32>
    %507 = arith.negf %506 : vector<2x32xf32>
    %508 = math.exp %507 : vector<2x32xf32>
    %cst_126 = arith.constant 1.000000e+00 : f32
    %509 = vector.broadcast %cst_126 : f32 to vector<2x32xf32>
    %510 = arith.addf %509, %508 : vector<2x32xf32>
    %511 = arith.divf %509, %510 : vector<2x32xf32>
    %512 = vector.extract_strided_slice %501 {offsets = [0, 32], sizes = [2, 32], strides = [1, 1]} : vector<2x96xf32> to vector<2x32xf32>
    %513 = vector.extract_strided_slice %503 {offsets = [0, 32], sizes = [2, 32], strides = [1, 1]} : vector<2x96xf32> to vector<2x32xf32>
    %514 = arith.addf %512, %513 : vector<2x32xf32>
    %515 = arith.negf %514 : vector<2x32xf32>
    %516 = math.exp %515 : vector<2x32xf32>
    %cst_127 = arith.constant 1.000000e+00 : f32
    %517 = vector.broadcast %cst_127 : f32 to vector<2x32xf32>
    %518 = arith.addf %517, %516 : vector<2x32xf32>
    %519 = arith.divf %517, %518 : vector<2x32xf32>
    %520 = vector.extract_strided_slice %501 {offsets = [0, 64], sizes = [2, 32], strides = [1, 1]} : vector<2x96xf32> to vector<2x32xf32>
    %521 = vector.extract_strided_slice %503 {offsets = [0, 64], sizes = [2, 32], strides = [1, 1]} : vector<2x96xf32> to vector<2x32xf32>
    %522 = vector.broadcast %34 : vector<1x32xf32> to vector<2x32xf32>
    %523 = arith.addf %521, %522 : vector<2x32xf32>
    %524 = arith.mulf %511, %523 : vector<2x32xf32>
    %525 = arith.addf %520, %524 : vector<2x32xf32>
    %526 = math.tanh %525 : vector<2x32xf32>
    %cst_128 = arith.constant 1.000000e+00 : f32
    %527 = vector.broadcast %cst_128 : f32 to vector<2x32xf32>
    %528 = arith.subf %527, %519 : vector<2x32xf32>
    %529 = arith.mulf %528, %526 : vector<2x32xf32>
    %530 = arith.mulf %519, %465 : vector<2x32xf32>
    %531 = arith.addf %529, %530 : vector<2x32xf32>
    %532 = vector.extract_strided_slice %28 {offsets = [0, 0], sizes = [2, 96], strides = [1, 1]} : vector<16x96xf32> to vector<2x96xf32>
    %533 = arith.truncf %496 : vector<2x32xf32> to vector<2x32xbf16>
    %cst_129 = arith.constant dense<0.000000e+00> : vector<2x96xf32>
    %534 = tpu.matmul %533, %32, %cst_129 {dimension_numbers = #tpu.dot_dimension_numbers<[1], [0], [0], [1], [0, 0, 1, 1], [], []>} : vector<2x32xbf16>, vector<32x96xbf16>, vector<2x96xf32> -> vector<2x96xf32>
    %535 = vector.extract_strided_slice %532 {offsets = [0, 0], sizes = [2, 32], strides = [1, 1]} : vector<2x96xf32> to vector<2x32xf32>
    %536 = vector.extract_strided_slice %534 {offsets = [0, 0], sizes = [2, 32], strides = [1, 1]} : vector<2x96xf32> to vector<2x32xf32>
    %537 = arith.addf %535, %536 : vector<2x32xf32>
    %538 = arith.negf %537 : vector<2x32xf32>
    %539 = math.exp %538 : vector<2x32xf32>
    %cst_130 = arith.constant 1.000000e+00 : f32
    %540 = vector.broadcast %cst_130 : f32 to vector<2x32xf32>
    %541 = arith.addf %540, %539 : vector<2x32xf32>
    %542 = arith.divf %540, %541 : vector<2x32xf32>
    %543 = vector.extract_strided_slice %532 {offsets = [0, 32], sizes = [2, 32], strides = [1, 1]} : vector<2x96xf32> to vector<2x32xf32>
    %544 = vector.extract_strided_slice %534 {offsets = [0, 32], sizes = [2, 32], strides = [1, 1]} : vector<2x96xf32> to vector<2x32xf32>
    %545 = arith.addf %543, %544 : vector<2x32xf32>
    %546 = arith.negf %545 : vector<2x32xf32>
    %547 = math.exp %546 : vector<2x32xf32>
    %cst_131 = arith.constant 1.000000e+00 : f32
    %548 = vector.broadcast %cst_131 : f32 to vector<2x32xf32>
    %549 = arith.addf %548, %547 : vector<2x32xf32>
    %550 = arith.divf %548, %549 : vector<2x32xf32>
    %551 = vector.extract_strided_slice %532 {offsets = [0, 64], sizes = [2, 32], strides = [1, 1]} : vector<2x96xf32> to vector<2x32xf32>
    %552 = vector.extract_strided_slice %534 {offsets = [0, 64], sizes = [2, 32], strides = [1, 1]} : vector<2x96xf32> to vector<2x32xf32>
    %553 = vector.broadcast %36 : vector<1x32xf32> to vector<2x32xf32>
    %554 = arith.addf %552, %553 : vector<2x32xf32>
    %555 = arith.mulf %542, %554 : vector<2x32xf32>
    %556 = arith.addf %551, %555 : vector<2x32xf32>
    %557 = math.tanh %556 : vector<2x32xf32>
    %cst_132 = arith.constant 1.000000e+00 : f32
    %558 = vector.broadcast %cst_132 : f32 to vector<2x32xf32>
    %559 = arith.subf %558, %550 : vector<2x32xf32>
    %560 = arith.mulf %559, %557 : vector<2x32xf32>
    %561 = arith.mulf %550, %496 : vector<2x32xf32>
    %562 = arith.addf %560, %561 : vector<2x32xf32>
    %563 = arith.truncf %531 : vector<2x32xf32> to vector<2x32xbf16>
    %c14_133 = arith.constant 14 : index
    %c0_134 = arith.constant 0 : index
    %564 = vector.load %arg9[%c14_133, %c0_134] : memref<16x32xbf16, #tpu.memory_space<vmem>>, vector<2x32xbf16>
    tpu.vector_store %arg9[%c14_133, %c0_134], %563 {strides = array<i32>} : memref<16x32xbf16, #tpu.memory_space<vmem>>, vector<2x32xbf16>,
    %565 = arith.truncf %562 : vector<2x32xf32> to vector<2x32xbf16>
    %c0_135 = arith.constant 0 : index
    %c0_136 = arith.constant 0 : index
    %566 = vector.load %arg10[%c0_135, %c0_136] : memref<16x32xbf16, #tpu.memory_space<vmem>>, vector<2x32xbf16>
    tpu.vector_store %arg10[%c0_135, %c0_136], %565 {strides = array<i32>} : memref<16x32xbf16, #tpu.memory_space<vmem>>, vector<2x32xbf16>,
    %c0_137 = arith.constant 0 : index
    %c0_138 = arith.constant 0 : index
    %567 = vector.load %arg11[%c0_137, %c0_138] : memref<2x32xf32, #tpu.memory_space<vmem>>, vector<2x32xf32>
    tpu.vector_store %arg11[%c0_137, %c0_138], %531 {strides = array<i32>} : memref<2x32xf32, #tpu.memory_space<vmem>>, vector<2x32xf32>,
    %c0_139 = arith.constant 0 : index
    %c0_140 = arith.constant 0 : index
    %568 = vector.load %arg12[%c0_139, %c0_140] : memref<2x32xf32, #tpu.memory_space<vmem>>, vector<2x32xf32>
    tpu.vector_store %arg12[%c0_139, %c0_140], %562 {strides = array<i32>} : memref<2x32xf32, #tpu.memory_space<vmem>>, vector<2x32xf32>,
    return
  }
  func.func @transform_0(%arg0: i32) -> (i32, i32) {
    %c0_i32 = arith.constant 0 : i32
    %c0_i32_0 = arith.constant 0 : i32
    return %arg0, %c0_i32 : i32, i32
  }
  func.func @transform_1(%arg0: i32) -> (i32, i32) {
    %c0_i32 = arith.constant 0 : i32
    %c0_i32_0 = arith.constant 0 : i32
    return %arg0, %c0_i32 : i32, i32
  }
  func.func @transform_2(%arg0: i32) -> (i32, i32) {
    %c0_i32 = arith.constant 0 : i32
    %0 = arith.subi %c0_i32, %arg0 : i32
    %c0_i32_0 = arith.constant 0 : i32
    %c0_i32_1 = arith.constant 0 : i32
    return %0, %c0_i32_0 : i32, i32
  }
  func.func @transform_3(%arg0: i32) -> (i32, i32) {
    %c0_i32 = arith.constant 0 : i32
    %0 = arith.subi %c0_i32, %arg0 : i32
    %c0_i32_0 = arith.constant 0 : i32
    %c0_i32_1 = arith.constant 0 : i32
    return %0, %c0_i32_0 : i32, i32
  }
  func.func @transform_4(%arg0: i32) -> (i32, i32, i32, i32) {
    %c0_i32 = arith.constant 0 : i32
    %c0_i32_0 = arith.constant 0 : i32
    %c0_i32_1 = arith.constant 0 : i32
    %c0_i32_2 = arith.constant 0 : i32
    %c0_i32_3 = arith.constant 0 : i32
    return %c0_i32, %c0_i32_0, %c0_i32_1, %c0_i32_2 : i32, i32, i32, i32
  }
  func.func @transform_5(%arg0: i32) -> (i32, i32, i32) {
    %c0_i32 = arith.constant 0 : i32
    %c0_i32_0 = arith.constant 0 : i32
    %c0_i32_1 = arith.constant 0 : i32
    %c0_i32_2 = arith.constant 0 : i32
    return %c0_i32, %c0_i32_0, %c0_i32_1 : i32, i32, i32
  }
  func.func @transform_6(%arg0: i32) -> (i32, i32, i32) {
    %c0_i32 = arith.constant 0 : i32
    %c0_i32_0 = arith.constant 0 : i32
    %c0_i32_1 = arith.constant 0 : i32
    %c0_i32_2 = arith.constant 0 : i32
    return %c0_i32, %c0_i32_0, %c0_i32_1 : i32, i32, i32
  }
  func.func @transform_7(%arg0: i32) -> (i32, i32, i32) {
    %c0_i32 = arith.constant 0 : i32
    %c0_i32_0 = arith.constant 0 : i32
    %c0_i32_1 = arith.constant 0 : i32
    %c0_i32_2 = arith.constant 0 : i32
    return %c0_i32, %c0_i32_0, %c0_i32_1 : i32, i32, i32
  }
  func.func @transform_8(%arg0: i32) -> (i32, i32) {
    %c0_i32 = arith.constant 0 : i32
    %c0_i32_0 = arith.constant 0 : i32
    return %arg0, %c0_i32 : i32, i32
  }
  func.func @transform_9(%arg0: i32) -> (i32, i32) {
    %c0_i32 = arith.constant 0 : i32
    %0 = arith.subi %c0_i32, %arg0 : i32
    %c0_i32_0 = arith.constant 0 : i32
    %c0_i32_1 = arith.constant 0 : i32
    return %0, %c0_i32_0 : i32, i32
  }
}

</mosaic_0001>

<llo_original>
// kernel: gru_classifier_forward.5
$region0: #{gru_classifier_forward.5}
  #allocation0 [shape = 'u32[]', space=smem, size = 0x4, offset = 0x4, fixed_abs, tag = 'smem constant byte address 0x4 - core index']
  #allocation1 [shape = 'u32[144,128]{1,0:T(1,128)}', space=vmem, size = 0x12000, scoped, tag = 'internal scratch']
  %s0 = inlined_call_operand.vmem [shape: bf16[2,32], index: 0, kind: input, shape index: {}]
  %s1 = inlined_call_operand.vmem [shape: bf16[2,32], index: 1, kind: input, shape index: {}]
  %s2 = inlined_call_operand.vmem [shape: bf16[2,32,5], index: 2, kind: input, shape index: {}]
  %s3 = inlined_call_operand.vmem [shape: f32[1,5], index: 3, kind: input, shape index: {}]
  %s4 = inlined_call_operand.hbm [shape: f32[2,5], index: 4, kind: output, shape index: {}]
  %s5 = sld [smem:[#allocation0]]
  $region26: #{gru_classifier_forward.5} parent=0
    _
  %s7 = ssub.s32 1, %s5
  %s8 = scalar_select 0, %s7, %s5
  $region1: #{gru_classifier_forward.5} parent=0
    #allocation2 [shape = 'u8[1024]{0}', space=vmem, size = 0x400, scoped, tag = 'output window, operand 0, single buffered']
    #allocation3 [shape = 's32[1]{0}', space=sflag, size = 0x4, scoped, tag = 'scoped memory for gru_classifier_forward.5']
    %9 = vsyncpa [#allocation3], 0
    // Predicated region
    $region2: #{gru_classifier_forward.5} parent=1 // pred_check
      _
    $region3: #{gru_classifier_forward.5} parent=1 // pred_check_branch
      %11 = sbr.rel (0) target = $region5
    $region4: #{gru_classifier_forward.5} parent=1 // pred_region
      _
    $region5: #{gru_classifier_forward.5} parent=1 // pred_fallthru
      _
    // Predicated region
    $region6: #{gru_classifier_forward.5} parent=1 // pred_check
      _
    $region7: #{gru_classifier_forward.5} parent=1 // pred_check_branch
      %13 = sbr.rel (0) target = $region9
    $region8: #{gru_classifier_forward.5} parent=1 // pred_region
      _
    $region9: #{gru_classifier_forward.5} parent=1 // pred_fallthru
      _
    // Predicated region
    $region10: #{gru_classifier_forward.5} parent=1 // pred_check
      _
    $region11: #{gru_classifier_forward.5} parent=1 // pred_check_branch
      %15 = sbr.rel (0) target = $region13
    $region12: #{gru_classifier_forward.5} parent=1 // pred_region
      _
    $region13: #{gru_classifier_forward.5} parent=1 // pred_fallthru
      _
    // Predicated region
    $region14: #{gru_classifier_forward.5} parent=1 // pred_check
      _
    $region15: #{gru_classifier_forward.5} parent=1 // pred_check_branch
      %17 = sbr.rel (0) target = $region17
    $region16: #{gru_classifier_forward.5} parent=1 // pred_region
      _
    $region17: #{gru_classifier_forward.5} parent=1 // pred_fallthru
      _
    %v19 = vld [vmem:[%s0] sm:$0x1]
    %v20 = vld [vmem:[%s2] sm:$0xf]
    %v21 = vld [vmem:[%s2 + $0x4] sm:$0xf]
    %v22 = vld [vmem:[%s2 + $0x8] sm:$0xf]
    %v23 = vld [vmem:[%s2 + $0xc] sm:$0xf]
    %v24 = vld [vmem:[%s1] sm:$0x1]
    %s25 = scalar_lea.vmem %s2, 16
    %v26 = vld [vmem:[%s25] sm:$0xf]
    %v27 = vld [vmem:[%s25 + $0x4] sm:$0xf]
    %v28 = vld [vmem:[%s25 + $0x8] sm:$0xf]
    %v29 = vld [vmem:[%s25 + $0xc] sm:$0xf]
    %v34 = vunpack.c.l.b16 %v26
    %v35 = vunpack.c.l.b16 %v27
    %v36 = vunpack.c.l.b16 %v28
    %v37 = vunpack.c.l.b16 %v29
    %v38 = vpack.c.b16 %v35, %v34
    %v39 = vpack.c.b16 %v37, %v36
    %vm42 = vcmask 261120
    %v44 = vsel %vm42, %v24, 0
    %46 = vmatprep.subr.bf16.mxu0 0
    %47 = vmatpush1.bf16.msra.mxu0 %v38
    %48 = vmatprep.subr.bf16.mxu0 0
    %49 = vmatpush1.bf16.msra.mxu0 %v39
    %50 = vmatprep.subr.bf16.mxu0 0
    %51 = vmatpush1.bf16.msra.mxu0 0
    %52 = vmatprep.subr.bf16.mxu0 0
    %53 = vmatpush1.bf16.msra.mxu0 0
    %54 = vmatprep.subr.bf16.mxu0 0
    %55 = vmatpush1.bf16.msra.mxu0 0
    %56 = vmatprep.subr.bf16.mxu0 0
    %57 = vmatpush1.bf16.msra.mxu0 0
    %58 = vmatprep.subr.bf16.mxu0 0
    %59 = vmatpush1.bf16.msra.mxu0 0
    %60 = vmatprep.subr.bf16.mxu0 0
    %61 = vmatpush1.bf16.msra.mxu0 0
    %62 = vmatprep.subr.bf16.mxu0 0
    %63 = vmatpush1.bf16.msra.mxu0 0
    %64 = vmatprep.subr.bf16.mxu0 0
    %65 = vmatpush1.bf16.msra.mxu0 0
    %66 = vmatprep.subr.bf16.mxu0 0
    %67 = vmatpush1.bf16.msra.mxu0 0
    %68 = vmatprep.subr.bf16.mxu0 0
    %69 = vmatpush1.bf16.msra.mxu0 0
    %70 = vmatprep.subr.bf16.mxu0 0
    %71 = vmatpush1.bf16.msra.mxu0 0
    %72 = vmatprep.subr.bf16.mxu0 0
    %73 = vmatpush1.bf16.msra.mxu0 0
    %74 = vmatprep.subr.bf16.mxu0 0
    %75 = vmatpush1.bf16.msra.mxu0 0
    %76 = vmatprep.subr.bf16.mxu0 0
    %77 = vmatpush1.bf16.msra.mxu0 0
    %78 = vmatprep.mubr.bf16.mxu0 0
    %79 = vmatmul.mubr.bf16.gmra.mrb[0].mxu0 %v44
    %v80 = vpop.f32.mrb[0].mxu0
    %v81 = vadd.f32 0.0, %v80
    %v82 = vpop.f32.mrb[0].mxu0
    %v83 = vpop.f32.mrb[0].mxu0
    %v84 = vpop.f32.mrb[0].mxu0
    %85 = vdwg.mxu0
    %v90 = vunpack.c.l.b16 %v20
    %v91 = vunpack.c.l.b16 %v21
    %v92 = vunpack.c.l.b16 %v22
    %v93 = vunpack.c.l.b16 %v23
    %v94 = vpack.c.b16 %v91, %v90
    %v95 = vpack.c.b16 %v93, %v92
    %v99 = vsel %vm42, %v19, 0
    %101 = vmatprep.subr.bf16.mxu0 0
    %102 = vmatpush1.bf16.msra.mxu0 %v94
    %103 = vmatprep.subr.bf16.mxu0 0
    %104 = vmatpush1.bf16.msra.mxu0 %v95
    %105 = vmatprep.subr.bf16.mxu0 0
    %106 = vmatpush1.bf16.msra.mxu0 0
    %107 = vmatprep.subr.bf16.mxu0 0
    %108 = vmatpush1.bf16.msra.mxu0 0
    %109 = vmatprep.subr.bf16.mxu0 0
    %110 = vmatpush1.bf16.msra.mxu0 0
    %111 = vmatprep.subr.bf16.mxu0 0
    %112 = vmatpush1.bf16.msra.mxu0 0
    %113 = vmatprep.subr.bf16.mxu0 0
    %114 = vmatpush1.bf16.msra.mxu0 0
    %115 = vmatprep.subr.bf16.mxu0 0
    %116 = vmatpush1.bf16.msra.mxu0 0
    %117 = vmatprep.subr.bf16.mxu0 0
    %118 = vmatpush1.bf16.msra.mxu0 0
    %119 = vmatprep.subr.bf16.mxu0 0
    %120 = vmatpush1.bf16.msra.mxu0 0
    %121 = vmatprep.subr.bf16.mxu0 0
    %122 = vmatpush1.bf16.msra.mxu0 0
    %123 = vmatprep.subr.bf16.mxu0 0
    %124 = vmatpush1.bf16.msra.mxu0 0
    %125 = vmatprep.subr.bf16.mxu0 0
    %126 = vmatpush1.bf16.msra.mxu0 0
    %127 = vmatprep.subr.bf16.mxu0 0
    %128 = vmatpush1.bf16.msra.mxu0 0
    %129 = vmatprep.subr.bf16.mxu0 0
    %130 = vmatpush1.bf16.msra.mxu0 0
    %131 = vmatprep.subr.bf16.mxu0 0
    %132 = vmatpush1.bf16.msra.mxu0 0
    %133 = vmatprep.mubr.bf16.mxu0 0
    %134 = vmatmul.mubr.bf16.gmra.mrb[0].mxu0 %v99
    %v135 = vpop.f32.mrb[0].mxu0
    %v136 = vadd.f32 %v81, %v135
    %v137 = vpop.f32.mrb[0].mxu0
    %v138 = vpop.f32.mrb[0].mxu0
    %v139 = vpop.f32.mrb[0].mxu0
    %140 = vdwg.mxu0
    %v141 = vld [vmem:[%s3] sm:$0x1]
    %v143 = vlaneseq
    %v144 = vshrl.u32 %v143, 7
    %v145 = vsub.s32 0, %v144
    %v146 = vrot.slane %v141, %v145
    %v148 = vadd.f32 %v136, %v146
    %vm149 = vcmask 33792
    %150 = vst.msk [vmem:[#allocation2] sm:$0x3] %vm149, %v148
    // Predicated region
    $region18: #{gru_classifier_forward.5} parent=1 // pred_check
      _
    $region19: #{gru_classifier_forward.5} parent=1 // pred_check_branch
      %152 = sbr.rel (0) target = $region21
    $region20: #{gru_classifier_forward.5} parent=1 // pred_region
      %s154 = ssub.s32 32, 32
      %155 = vsyncadd [#allocation3], %s154
      %s157 = sshll.u32 [#allocation2], 4
      %s158 = int_to_ptr.vmem [resolvable:$true] %s157
      %160 = dma.vmem_to_hbm [thread:$0]  %s158, 32, %s4, [#allocation3]
    $region21: #{gru_classifier_forward.5} parent=1 // pred_fallthru
      _
    // Predicated region
    $region22: #{gru_classifier_forward.5} parent=1 // pred_check
      _
    $region23: #{gru_classifier_forward.5} parent=1 // pred_check_branch
      %162 = sbr.rel (0) target = $region25
    $region24: #{gru_classifier_forward.5} parent=1 // pred_region
      %163 = dma.done [#allocation3], 32
    $region25: #{gru_classifier_forward.5} parent=1 // pred_fallthru
      _
    %164 = vsyncpa [#allocation3], 1

// kernel: gru_classifier_forward.4
$region0: #{gru_classifier_forward.4}
  #allocation0 [shape = 'u32[]', space=smem, size = 0x4, offset = 0x4, fixed_abs, tag = 'smem constant byte address 0x4 - core index']
  #allocation1 [shape = 'u32[144,128]{1,0:T(1,128)}', space=vmem, size = 0x12000, scoped, tag = 'internal scratch']
  #allocation2 [shape = 'f32[2,32]{1,0:T(2,128)}', space=vmem, size = 0x400, scoped, tag = 'scratch operand']
  #allocation3 [shape = 'f32[2,32]{1,0:T(2,128)}', space=vmem, size = 0x400, scoped, tag = 'scratch operand']
  %s0 = inlined_call_operand.vmem [shape: bf16[16,32], index: 0, kind: input, shape index: {}, may-alias: {0,2}]
  %s1 = inlined_call_operand.vmem [shape: bf16[16,32], index: 1, kind: input, shape index: {}, may-alias: {1,3}]
  %s2 = inlined_call_operand.vmem [shape: bf16[16,32], index: 2, kind: input, shape index: {}, may-alias: {0,2}]
  %s3 = inlined_call_operand.vmem [shape: bf16[16,32], index: 3, kind: input, shape index: {}, may-alias: {1,3}]
  %s4 = inlined_call_operand.vmem [shape: bf16[2,2,32,96], index: 4, kind: input, shape index: {}]
  %s5 = inlined_call_operand.vmem [shape: f32[2,1,96], index: 5, kind: input, shape index: {}]
  %s6 = inlined_call_operand.vmem [shape: bf16[2,32,96], index: 6, kind: input, shape index: {}]
  %s7 = inlined_call_operand.vmem [shape: f32[2,1,32], index: 7, kind: input, shape index: {}]
  %s8 = inlined_call_operand.vmem [shape: bf16[16,32], index: 8, kind: output, shape index: {0}]
  %s9 = inlined_call_operand.vmem [shape: bf16[16,32], index: 9, kind: output, shape index: {1}]
  %10 = xla_tuple %s8, %s9
  %s11 = sld [smem:[#allocation0]]
  $region54: #{gru_classifier_forward.4} parent=0
    _
  %s13 = ssub.s32 1, %s11
  %s14 = scalar_select 0, %s13, %s11
  // Predicated region
  $region2: #{gru_classifier_forward.4} parent=0 // pred_check
    _
  $region3: #{gru_classifier_forward.4} parent=0 // pred_check_branch
    %16 = sbr.rel (0) target = $region5
  $region4: #{gru_classifier_forward.4} parent=0 // pred_region
    _
  $region5: #{gru_classifier_forward.4} parent=0 // pred_fallthru
    _
  // Predicated region
  $region6: #{gru_classifier_forward.4} parent=0 // pred_check
    _
  $region7: #{gru_classifier_forward.4} parent=0 // pred_check_branch
    %18 = sbr.rel (0) target = $region9
  $region8: #{gru_classifier_forward.4} parent=0 // pred_region
    _
  $region9: #{gru_classifier_forward.4} parent=0 // pred_fallthru
    _
  // Predicated region
  $region10: #{gru_classifier_forward.4} parent=0 // pred_check
    _
  $region11: #{gru_classifier_forward.4} parent=0 // pred_check_branch
    %20 = sbr.rel (0) target = $region13
  $region12: #{gru_classifier_forward.4} parent=0 // pred_region
    %s21 = ssub.s32 0, 0
    %s22 = smul.u32 2, %s21
    %p23 = scmp.lt.s32.totalorder %s22, 1
    %s24 = scalar_select %p23, %s22, 1
    %s25 = smul.addr %s24, 4
    %s26 = scalar_lea.vmem %s2, %s25
    %s27 = ssub.s32 0, 0
    %s28 = smul.u32 2, %s27
  $region13: #{gru_classifier_forward.4} parent=0 // pred_fallthru
    _
  // Predicated region
  $region14: #{gru_classifier_forward.4} parent=0 // pred_check
    _
  $region15: #{gru_classifier_forward.4} parent=0 // pred_check_branch
    %30 = sbr.rel (0) target = $region17
  $region16: #{gru_classifier_forward.4} parent=0 // pred_region
    %s31 = ssub.s32 0, 0
    %s32 = smul.u32 2, %s31
    %p33 = scmp.lt.s32.totalorder %s32, 1
    %s34 = scalar_select %p33, %s32, 1
    %s35 = smul.addr %s34, 4
    %s36 = scalar_lea.vmem %s3, %s35
    %s37 = ssub.s32 0, 0
    %s38 = smul.u32 2, %s37
  $region17: #{gru_classifier_forward.4} parent=0 // pred_fallthru
    _
  // Predicated region
  $region18: #{gru_classifier_forward.4} parent=0 // pred_check
    _
  $region19: #{gru_classifier_forward.4} parent=0 // pred_check_branch
    %40 = sbr.rel (0) target = $region21
  $region20: #{gru_classifier_forward.4} parent=0 // pred_region
    _
  $region21: #{gru_classifier_forward.4} parent=0 // pred_fallthru
    _
  // Predicated region
  $region22: #{gru_classifier_forward.4} parent=0 // pred_check
    _
  $region23: #{gru_classifier_forward.4} parent=0 // pred_check_branch
    %42 = sbr.rel (0) target = $region25
  $region24: #{gru_classifier_forward.4} parent=0 // pred_region
    _
  $region25: #{gru_classifier_forward.4} parent=0 // pred_fallthru
    _
  // Predicated region
  $region26: #{gru_classifier_forward.4} parent=0 // pred_check
    _
  $region27: #{gru_classifier_forward.4} parent=0 // pred_check_branch
    %44 = sbr.rel (0) target = $region29
  $region28: #{gru_classifier_forward.4} parent=0 // pred_region
    _
  $region29: #{gru_classifier_forward.4} parent=0 // pred_fallthru
    _
  // Predicated region
  $region30: #{gru_classifier_forward.4} parent=0 // pred_check
    _
  $region31: #{gru_classifier_forward.4} parent=0 // pred_check_branch
    %46 = sbr.rel (0) target = $region33
  $region32: #{gru_classifier_forward.4} parent=0 // pred_region
    _
  $region33: #{gru_classifier_forward.4} parent=0 // pred_fallthru
    _
  %s47 = ssub.s32 0, 0
  %s48 = smul.u32 2, %s47
  %p49 = scmp.lt.s32.totalorder %s48, 1
  %s50 = scalar_select %p49, %s48, 1
  %s51 = smul.addr %s50, 4
  %s52 = scalar_lea.vmem %s2, %s51
  %s53 = ssub.s32 0, 0
  %s54 = smul.u32 2, %s53
  %p55 = scmp.lt.s32.totalorder %s54, 1
  %s56 = scalar_select %p55, %s54, 1
  %s57 = smul.addr %s56, 4
  %s58 = scalar_lea.vmem %s3, %s57
  %s59 = ssub.s32 0, 0
  %s60 = smul.u32 2, %s59
  %p61 = scmp.lt.s32.totalorder %s60, 1
  %s62 = scalar_select %p61, %s60, 1
  %s63 = smul.addr %s62, 4
  %s64 = scalar_lea.vmem %s9, %s63
  %s65 = ssub.s32 0, 0
  %s66 = smul.u32 2, %s65
  %p67 = scmp.lt.s32.totalorder %s66, 1
  %s68 = scalar_select %p67, %s66, 1
  %s69 = smul.addr %s68, 4
  %s70 = scalar_lea.vmem %s2, %s69
  %s71 = ssub.s32 0, 0
  %s72 = smul.u32 2, %s71
  %s73 = ssub.s32 0, 0
  %s74 = smul.u32 2, %s73
  %p75 = scmp.lt.s32.totalorder %s74, 1
  %s76 = scalar_select %p75, %s74, 1
  %s77 = smul.addr %s76, 4
  %s78 = scalar_lea.vmem %s3, %s77
  %s79 = ssub.s32 0, 0
  %s80 = smul.u32 2, %s79
  %s81 = ssub.s32 0, 0
  %s82 = smul.u32 2, %s81
  %p83 = scmp.lt.s32.totalorder %s82, 1
  %s84 = scalar_select %p83, %s82, 1
  %s85 = smul.addr %s84, 4
  %s86 = scalar_lea.vmem %s9, %s85
  %s87 = ssub.s32 0, 0
  %s88 = smul.u32 2, %s87
  %p90 = scmp.eq.s32.totalorder 0, 0
  // Predicated region
  $region34: #{gru_classifier_forward.4} parent=0 // pred_check
    %p91 = pneg %p90
  $region35: #{gru_classifier_forward.4} parent=0 // pred_check_branch
    %93 = sbr.rel (%p91) target = $region37
  $region36: #{gru_classifier_forward.4} parent=0 // pred_region
    %vm94 = vcmask 254976
    %95 = vst.msk [vmem:[#allocation2] sm:$0x3] %vm94, 0.0
    %96 = vst.msk [vmem:[#allocation3] sm:$0x3] %vm94, 0.0
  $region37: #{gru_classifier_forward.4} parent=0 // pred_fallthru
    _
  %v97 = vld [vmem:[%s0] sm:$0xf]
  %v98 = vld [vmem:[%s0 + $0x4] sm:$0xf]
  %v99 = vld [vmem:[%s4] sm:$0xf]
  %v100 = vld [vmem:[%s4 + $0x4] sm:$0xf]
  %v101 = vld [vmem:[%s4 + $0x8] sm:$0xf]
  %v102 = vld [vmem:[%s4 + $0xc] sm:$0xf]
  %v103 = vld [vmem:[%s1] sm:$0xf]
  %v104 = vld [vmem:[%s1 + $0x4] sm:$0xf]
  %s105 = scalar_lea.vmem %s4, 16
  %v106 = vld [vmem:[%s105] sm:$0xf]
  %v107 = vld [vmem:[%s105 + $0x4] sm:$0xf]
  %v108 = vld [vmem:[%s105 + $0x8] sm:$0xf]
  %v109 = vld [vmem:[%s105 + $0xc] sm:$0xf]
  %v112 = vunpack.c.l.b16 %v103
  %v113 = vunpack.c.l.b16 %v104
  %v114 = vpack.c.b16 %v113, %v112
  %v119 = vunpack.c.l.b16 %v106
  %v120 = vunpack.c.l.b16 %v107
  %v121 = vunpack.c.l.b16 %v108
  %v122 = vunpack.c.l.b16 %v109
  %v123 = vpack.c.b16 %v120, %v119
  %v124 = vpack.c.b16 %v122, %v121
  %vm127 = vcmask 261120
  %v129 = vsel %vm127, %v114, 0
  %131 = vmatprep.subr.bf16.mxu0 0
  %132 = vmatpush1.bf16.msra.mxu0 %v123
  %133 = vmatprep.subr.bf16.mxu0 0
  %134 = vmatpush1.bf16.msra.mxu0 %v124
  %135 = vmatprep.subr.bf16.mxu0 0
  %136 = vmatpush1.bf16.msra.mxu0 0
  %137 = vmatprep.subr.bf16.mxu0 0
  %138 = vmatpush1.bf16.msra.mxu0 0
  %139 = vmatprep.subr.bf16.mxu0 0
  %140 = vmatpush1.bf16.msra.mxu0 0
  %141 = vmatprep.subr.bf16.mxu0 0
  %142 = vmatpush1.bf16.msra.mxu0 0
  %143 = vmatprep.subr.bf16.mxu0 0
  %144 = vmatpush1.bf16.msra.mxu0 0
  %145 = vmatprep.subr.bf16.mxu0 0
  %146 = vmatpush1.bf16.msra.mxu0 0
  %147 = vmatprep.subr.bf16.mxu0 0
  %148 = vmatpush1.bf16.msra.mxu0 0
  %149 = vmatprep.subr.bf16.mxu0 0
  %150 = vmatpush1.bf16.msra.mxu0 0
  %151 = vmatprep.subr.bf16.mxu0 0
  %152 = vmatpush1.bf16.msra.mxu0 0
  %153 = vmatprep.subr.bf16.mxu0 0
  %154 = vmatpush1.bf16.msra.mxu0 0
  %155 = vmatprep.subr.bf16.mxu0 0
  %156 = vmatpush1.bf16.msra.mxu0 0
  %157 = vmatprep.subr.bf16.mxu0 0
  %158 = vmatpush1.bf16.msra.mxu0 0
  %159 = vmatprep.subr.bf16.mxu0 0
  %160 = vmatpush1.bf16.msra.mxu0 0
  %161 = vmatprep.subr.bf16.mxu0 0
  %162 = vmatpush1.bf16.msra.mxu0 0
  %163 = vmatprep.mubr.bf16.mxu0 0
  %164 = vmatmul.mubr.bf16.gmra.mrb[0].mxu0 %v129
  %v165 = vpop.f32.mrb[0].mxu0
  %v166 = vadd.f32 0.0, %v165
  %v167 = vpop.f32.mrb[0].mxu0
  %v168 = vpop.f32.mrb[0].mxu0
  %v169 = vadd.f32 0.0, %v168
  %v170 = vpop.f32.mrb[0].mxu0
  %171 = vdwg.mxu0
  %v174 = vunpack.c.l.b16 %v97
  %v175 = vunpack.c.l.b16 %v98
  %v176 = vpack.c.b16 %v175, %v174
  %v181 = vunpack.c.l.b16 %v99
  %v182 = vunpack.c.l.b16 %v100
  %v183 = vunpack.c.l.b16 %v101
  %v184 = vunpack.c.l.b16 %v102
  %v185 = vpack.c.b16 %v182, %v181
  %v186 = vpack.c.b16 %v184, %v183
  %v190 = vsel %vm127, %v176, 0
  %192 = vmatprep.subr.bf16.mxu0 0
  %193 = vmatpush1.bf16.msra.mxu0 %v185
  %194 = vmatprep.subr.bf16.mxu0 0
  %195 = vmatpush1.bf16.msra.mxu0 %v186
  %196 = vmatprep.subr.bf16.mxu0 0
  %197 = vmatpush1.bf16.msra.mxu0 0
  %198 = vmatprep.subr.bf16.mxu0 0
  %199 = vmatpush1.bf16.msra.mxu0 0
  %200 = vmatprep.subr.bf16.mxu0 0
  %201 = vmatpush1.bf16.msra.mxu0 0
  %202 = vmatprep.subr.bf16.mxu0 0
  %203 = vmatpush1.bf16.msra.mxu0 0
  %204 = vmatprep.subr.bf16.mxu0 0
  %205 = vmatpush1.bf16.msra.mxu0 0
  %206 = vmatprep.subr.bf16.mxu0 0
  %207 = vmatpush1.bf16.msra.mxu0 0
  %208 = vmatprep.subr.bf16.mxu0 0
  %209 = vmatpush1.bf16.msra.mxu0 0
  %210 = vmatprep.subr.bf16.mxu0 0
  %211 = vmatpush1.bf16.msra.mxu0 0
  %212 = vmatprep.subr.bf16.mxu0 0
  %213 = vmatpush1.bf16.msra.mxu0 0
  %214 = vmatprep.subr.bf16.mxu0 0
  %215 = vmatpush1.bf16.msra.mxu0 0
  %216 = vmatprep.subr.bf16.mxu0 0
  %217 = vmatpush1.bf16.msra.mxu0 0
  %218 = vmatprep.subr.bf16.mxu0 0
  %219 = vmatpush1.bf16.msra.mxu0 0
  %220 = vmatprep.subr.bf16.mxu0 0
  %221 = vmatpush1.bf16.msra.mxu0 0
  %222 = vmatprep.subr.bf16.mxu0 0
  %223 = vmatpush1.bf16.msra.mxu0 0
  %224 = vmatprep.mubr.bf16.mxu0 0
  %225 = vmatmul.mubr.bf16.gmra.mrb[0].mxu0 %v190
  %v226 = vpop.f32.mrb[0].mxu0
  %v227 = vadd.f32 %v166, %v226
  %v228 = vpop.f32.mrb[0].mxu0
  %v229 = vpop.f32.mrb[0].mxu0
  %v230 = vadd.f32 %v169, %v229
  %v231 = vpop.f32.mrb[0].mxu0
  %232 = vdwg.mxu0
  %v233 = vld [vmem:[%s5] sm:$0x1]
  %v235 = vlaneseq
  %v236 = vshrl.u32 %v235, 7
  %v237 = vsub.s32 0, %v236
  %v238 = vrot.slane %v233, %v237
  %v240 = vadd.f32 %v227, %v238
  %v241 = vadd.f32 %v230, %v238
  %v242 = vld [vmem:[%s70] sm:$0xf]
  %v243 = vld [vmem:[%s70 + $0x4] sm:$0xf]
  %s244 = scalar_lea.vmem %s4, 32
  %v245 = vld [vmem:[%s244] sm:$0xf]
  %v246 = vld [vmem:[%s244 + $0x4] sm:$0xf]
  %v247 = vld [vmem:[%s244 + $0x8] sm:$0xf]
  %v248 = vld [vmem:[%s244 + $0xc] sm:$0xf]
  %v249 = vld [vmem:[%s78] sm:$0xf]
  %v250 = vld [vmem:[%s78 + $0x4] sm:$0xf]
  %s251 = scalar_lea.vmem %s4, 48
  %v252 = vld [vmem:[%s251] sm:$0xf]
  %v253 = vld [vmem:[%s251 + $0x4] sm:$0xf]
  %v254 = vld [vmem:[%s251 + $0x8] sm:$0xf]
  %v255 = vld [vmem:[%s251 + $0xc] sm:$0xf]
  %v258 = vunpack.c.l.b16 %v249
  %v259 = vunpack.c.l.b16 %v250
  %v260 = vpack.c.b16 %v259, %v258
  %v265 = vunpack.c.l.b16 %v252
  %v266 = vunpack.c.l.b16 %v253
  %v267 = vunpack.c.l.b16 %v254
  %v268 = vunpack.c.l.b16 %v255
  %v269 = vpack.c.b16 %v266, %v265
  %v270 = vpack.c.b16 %v268, %v267
  %v274 = vsel %vm127, %v260, 0
  %276 = vmatprep.subr.bf16.mxu0 0
  %277 = vmatpush1.bf16.msra.mxu0 %v269
  %278 = vmatprep.subr.bf16.mxu0 0
  %279 = vmatpush1.bf16.msra.mxu0 %v270
  %280 = vmatprep.subr.bf16.mxu0 0
  %281 = vmatpush1.bf16.msra.mxu0 0
  %282 = vmatprep.subr.bf16.mxu0 0
  %283 = vmatpush1.bf16.msra.mxu0 0
  %284 = vmatprep.subr.bf16.mxu0 0
  %285 = vmatpush1.bf16.msra.mxu0 0
  %286 = vmatprep.subr.bf16.mxu0 0
  %287 = vmatpush1.bf16.msra.mxu0 0
  %288 = vmatprep.subr.bf16.mxu0 0
  %289 = vmatpush1.bf16.msra.mxu0 0
  %290 = vmatprep.subr.bf16.mxu0 0
  %291 = vmatpush1.bf16.msra.mxu0 0
  %292 = vmatprep.subr.bf16.mxu0 0
  %293 = vmatpush1.bf16.msra.mxu0 0
  %294 = vmatprep.subr.bf16.mxu0 0
  %295 = vmatpush1.bf16.msra.mxu0 0
  %296 = vmatprep.subr.bf16.mxu0 0
  %297 = vmatpush1.bf16.msra.mxu0 0
  %298 = vmatprep.subr.bf16.mxu0 0
  %299 = vmatpush1.bf16.msra.mxu0 0
  %300 = vmatprep.subr.bf16.mxu0 0
  %301 = vmatpush1.bf16.msra.mxu0 0
  %302 = vmatprep.subr.bf16.mxu0 0
  %303 = vmatpush1.bf16.msra.mxu0 0
  %304 = vmatprep.subr.bf16.mxu0 0
  %305 = vmatpush1.bf16.msra.mxu0 0
  %306 = vmatprep.subr.bf16.mxu0 0
  %307 = vmatpush1.bf16.msra.mxu0 0
  %308 = vmatprep.mubr.bf16.mxu0 0
  %309 = vmatmul.mubr.bf16.gmra.mrb[0].mxu0 %v274
  %v310 = vpop.f32.mrb[0].mxu0
  %v311 = vadd.f32 0.0, %v310
  %v312 = vpop.f32.mrb[0].mxu0
  %v313 = vpop.f32.mrb[0].mxu0
  %v314 = vadd.f32 0.0, %v313
  %v315 = vpop.f32.mrb[0].mxu0
  %316 = vdwg.mxu0
  %v319 = vunpack.c.l.b16 %v242
  %v320 = vunpack.c.l.b16 %v243
  %v321 = vpack.c.b16 %v320, %v319
  %v326 = vunpack.c.l.b16 %v245
  %v327 = vunpack.c.l.b16 %v246
  %v328 = vunpack.c.l.b16 %v247
  %v329 = vunpack.c.l.b16 %v248
  %v330 = vpack.c.b16 %v327, %v326
  %v331 = vpack.c.b16 %v329, %v328
  %v335 = vsel %vm127, %v321, 0
  %337 = vmatprep.subr.bf16.mxu0 0
  %338 = vmatpush1.bf16.msra.mxu0 %v330
  %339 = vmatprep.subr.bf16.mxu0 0
  %340 = vmatpush1.bf16.msra.mxu0 %v331
  %341 = vmatprep.subr.bf16.mxu0 0
  %342 = vmatpush1.bf16.msra.mxu0 0
  %343 = vmatprep.subr.bf16.mxu0 0
  %344 = vmatpush1.bf16.msra.mxu0 0
  %345 = vmatprep.subr.bf16.mxu0 0
  %346 = vmatpush1.bf16.msra.mxu0 0
  %347 = vmatprep.subr.bf16.mxu0 0
  %348 = vmatpush1.bf16.msra.mxu0 0
  %349 = vmatprep.subr.bf16.mxu0 0
  %350 = vmatpush1.bf16.msra.mxu0 0
  %351 = vmatprep.subr.bf16.mxu0 0
  %352 = vmatpush1.bf16.msra.mxu0 0
  %353 = vmatprep.subr.bf16.mxu0 0
  %354 = vmatpush1.bf16.msra.mxu0 0
  %355 = vmatprep.subr.bf16.mxu0 0
  %356 = vmatpush1.bf16.msra.mxu0 0
  %357 = vmatprep.subr.bf16.mxu0 0
  %358 = vmatpush1.bf16.msra.mxu0 0
  %359 = vmatprep.subr.bf16.mxu0 0
  %360 = vmatpush1.bf16.msra.mxu0 0
  %361 = vmatprep.subr.bf16.mxu0 0
  %362 = vmatpush1.bf16.msra.mxu0 0
  %363 = vmatprep.subr.bf16.mxu0 0
  %364 = vmatpush1.bf16.msra.mxu0 0
  %365 = vmatprep.subr.bf16.mxu0 0
  %366 = vmatpush1.bf16.msra.mxu0 0
  %367 = vmatprep.subr.bf16.mxu0 0
  %368 = vmatpush1.bf16.msra.mxu0 0
  %369 = vmatprep.mubr.bf16.mxu0 0
  %370 = vmatmul.mubr.bf16.gmra.mrb[0].mxu0 %v335
  %v371 = vpop.f32.mrb[0].mxu0
  %v372 = vadd.f32 %v311, %v371
  %v373 = vpop.f32.mrb[0].mxu0
  %v374 = vpop.f32.mrb[0].mxu0
  %v375 = vadd.f32 %v314, %v374
  %v376 = vpop.f32.mrb[0].mxu0
  %377 = vdwg.mxu0
  %s378 = scalar_lea.vmem %s5, 1
  %v379 = vld [vmem:[%s378] sm:$0x1]
  %v381 = vlaneseq
  %v382 = vshrl.u32 %v381, 7
  %v383 = vsub.s32 0, %v382
  %v384 = vrot.slane %v379, %v383
  %v386 = vadd.f32 %v372, %v384
  %v387 = vadd.f32 %v375, %v384
  %v388 = vld [vmem:[%s6] sm:$0xf]
  %v389 = vld [vmem:[%s6 + $0x4] sm:$0xf]
  %v390 = vld [vmem:[%s6 + $0x8] sm:$0xf]
  %v391 = vld [vmem:[%s6 + $0xc] sm:$0xf]
  %s392 = scalar_lea.vmem %s6, 16
  %v393 = vld [vmem:[%s392] sm:$0xf]
  %v394 = vld [vmem:[%s392 + $0x4] sm:$0xf]
  %v395 = vld [vmem:[%s392 + $0x8] sm:$0xf]
  %v396 = vld [vmem:[%s392 + $0xc] sm:$0xf]
  %v397 = vld [vmem:[%s7] sm:$0x1]
  %s398 = scalar_lea.vmem %s7, 1
  %v399 = vld [vmem:[%s398] sm:$0x1]
  %v400 = vld [vmem:[#allocation2] sm:$0x3]
  %v401 = vld [vmem:[#allocation3] sm:$0x3]
  %v402 = vpack.c.bf16 %v400, %v400
  %v407 = vunpack.c.l.b16 %v388
  %v408 = vunpack.c.l.b16 %v389
  %v409 = vunpack.c.l.b16 %v390
  %v410 = vunpack.c.l.b16 %v391
  %v411 = vpack.c.b16 %v408, %v407
  %v412 = vpack.c.b16 %v410, %v409
  %v416 = vsel %vm127, %v402, 0
  %418 = vmatprep.subr.bf16.mxu0 0
  %419 = vmatpush1.bf16.msra.mxu0 %v411
  %420 = vmatprep.subr.bf16.mxu0 0
  %421 = vmatpush1.bf16.msra.mxu0 %v412
  %422 = vmatprep.subr.bf16.mxu0 0
  %423 = vmatpush1.bf16.msra.mxu0 0
  %424 = vmatprep.subr.bf16.mxu0 0
  %425 = vmatpush1.bf16.msra.mxu0 0
  %426 = vmatprep.subr.bf16.mxu0 0
  %427 = vmatpush1.bf16.msra.mxu0 0
  %428 = vmatprep.subr.bf16.mxu0 0
  %429 = vmatpush1.bf16.msra.mxu0 0
  %430 = vmatprep.subr.bf16.mxu0 0
  %431 = vmatpush1.bf16.msra.mxu0 0
  %432 = vmatprep.subr.bf16.mxu0 0
  %433 = vmatpush1.bf16.msra.mxu0 0
  %434 = vmatprep.subr.bf16.mxu0 0
  %435 = vmatpush1.bf16.msra.mxu0 0
  %436 = vmatprep.subr.bf16.mxu0 0
  %437 = vmatpush1.bf16.msra.mxu0 0
  %438 = vmatprep.subr.bf16.mxu0 0
  %439 = vmatpush1.bf16.msra.mxu0 0
  %440 = vmatprep.subr.bf16.mxu0 0
  %441 = vmatpush1.bf16.msra.mxu0 0
  %442 = vmatprep.subr.bf16.mxu0 0
  %443 = vmatpush1.bf16.msra.mxu0 0
  %444 = vmatprep.subr.bf16.mxu0 0
  %445 = vmatpush1.bf16.msra.mxu0 0
  %446 = vmatprep.subr.bf16.mxu0 0
  %447 = vmatpush1.bf16.msra.mxu0 0
  %448 = vmatprep.subr.bf16.mxu0 0
  %449 = vmatpush1.bf16.msra.mxu0 0
  %450 = vmatprep.mubr.bf16.mxu0 0
  %451 = vmatmul.mubr.bf16.gmra.mrb[0].mxu0 %v416
  %v452 = vpop.f32.mrb[0].mxu0
  %v453 = vadd.f32 0.0, %v452
  %v454 = vpop.f32.mrb[0].mxu0
  %v455 = vpop.f32.mrb[0].mxu0
  %v456 = vpop.f32.mrb[0].mxu0
  %457 = vdwg.mxu0
  %v458 = vadd.f32 %v240, %v453
  %v459 = vxor.u32 %v458, 2147483648
  %v460 = vmul.f32 %v459, 1.442695
  %v461 = vpow.pop %v460
  %v462 = vadd.f32 %v461, 1.0
  %v463 = vrcp.pop %v462
  %v464 = vmul.f32 1.0, %v463
  %v466 = vlaneseq
  %v467 = vshrl.u32 %v466, 7
  %v468 = vsub.s32 0, %v467
  %v469 = vrot.slane %v397, %v468
  %470 = vrot.lane.b32.xlu0 %v469, 64
  %v471 = vpop.permute.xlu0 %470
  %v473 = vadd.f32 %v453, %v471
  %475 = vrot.lane.b32.xlu0 %v473, 64
  %v476 = vpop.permute.xlu0 %475
  %v478 = vmul.f32 %v464, %v476
  %480 = vrot.lane.b32.xlu0 %v478, 64
  %v481 = vpop.permute.xlu0 %480
  %v483 = vadd.f32 %v240, %v481
  %v484 = vtanh.pop %v483
  %v485 = vsub.f32 1.0, %v464
  %487 = vrot.lane.b32.xlu0 %v484, 96
  %v488 = vpop.permute.xlu0 %487
  %v490 = vmul.f32 %v485, %v488
  %492 = vrot.lane.b32.xlu0 %v400, 32
  %v493 = vpop.permute.xlu0 %492
  %v495 = vmul.f32 %v464, %v493
  %v496 = vadd.f32 %v490, %v495
  %v497 = vpack.c.bf16 %v401, %v401
  %v502 = vunpack.c.l.b16 %v393
  %v503 = vunpack.c.l.b16 %v394
  %v504 = vunpack.c.l.b16 %v395
  %v505 = vunpack.c.l.b16 %v396
  %v506 = vpack.c.b16 %v503, %v502
  %v507 = vpack.c.b16 %v505, %v504
  %v511 = vsel %vm127, %v497, 0
  %513 = vmatprep.subr.bf16.mxu0 0
  %514 = vmatpush1.bf16.msra.mxu0 %v506
  %515 = vmatprep.subr.bf16.mxu0 0
  %516 = vmatpush1.bf16.msra.mxu0 %v507
  %517 = vmatprep.subr.bf16.mxu0 0
  %518 = vmatpush1.bf16.msra.mxu0 0
  %519 = vmatprep.subr.bf16.mxu0 0
  %520 = vmatpush1.bf16.msra.mxu0 0
  %521 = vmatprep.subr.bf16.mxu0 0
  %522 = vmatpush1.bf16.msra.mxu0 0
  %523 = vmatprep.subr.bf16.mxu0 0
  %524 = vmatpush1.bf16.msra.mxu0 0
  %525 = vmatprep.subr.bf16.mxu0 0
  %526 = vmatpush1.bf16.msra.mxu0 0
  %527 = vmatprep.subr.bf16.mxu0 0
  %528 = vmatpush1.bf16.msra.mxu0 0
  %529 = vmatprep.subr.bf16.mxu0 0
  %530 = vmatpush1.bf16.msra.mxu0 0
  %531 = vmatprep.subr.bf16.mxu0 0
  %532 = vmatpush1.bf16.msra.mxu0 0
  %533 = vmatprep.subr.bf16.mxu0 0
  %534 = vmatpush1.bf16.msra.mxu0 0
  %535 = vmatprep.subr.bf16.mxu0 0
  %536 = vmatpush1.bf16.msra.mxu0 0
  %537 = vmatprep.subr.bf16.mxu0 0
  %538 = vmatpush1.bf16.msra.mxu0 0
  %539 = vmatprep.subr.bf16.mxu0 0
  %540 = vmatpush1.bf16.msra.mxu0 0
  %541 = vmatprep.subr.bf16.mxu0 0
  %542 = vmatpush1.bf16.msra.mxu0 0
  %543 = vmatprep.subr.bf16.mxu0 0
  %544 = vmatpush1.bf16.msra.mxu0 0
  %545 = vmatprep.mubr.bf16.mxu0 0
  %546 = vmatmul.mubr.bf16.gmra.mrb[0].mxu0 %v511
  %v547 = vpop.f32.mrb[0].mxu0
  %v548 = vadd.f32 0.0, %v547
  %v549 = vpop.f32.mrb[0].mxu0
  %v550 = vpop.f32.mrb[0].mxu0
  %v551 = vpop.f32.mrb[0].mxu0
  %552 = vdwg.mxu0
  %v554 = vrot.slane %v548, 2
  %v556 = vadd.f32 %v387, %v554
  %v557 = vxor.u32 %v556, 2147483648
  %v558 = vmul.f32 %v557, 1.442695
  %v559 = vpow.pop %v558
  %v560 = vadd.f32 %v559, 1.0
  %v561 = vrcp.pop %v560
  %v562 = vmul.f32 1.0, %v561
  %v564 = vlaneseq
  %v565 = vshrl.u32 %v564, 7
  %v566 = vsub.s32 0, %v565
  %v567 = vrot.slane %v399, %v566
  %568 = vrot.lane.b32.xlu0 %v567, 64
  %v569 = vpop.permute.xlu0 %568
  %v571 = vadd.f32 %v548, %v569
  %v573 = vrot.slane %v571, 2
  %574 = vrot.lane.b32.xlu0 %v573, 64
  %v575 = vpop.permute.xlu0 %574
  %v577 = vmul.f32 %v562, %v575
  %579 = vrot.lane.b32.xlu0 %v577, 64
  %v580 = vpop.permute.xlu0 %579
  %v582 = vadd.f32 %v387, %v580
  %v583 = vtanh.pop %v582
  %v584 = vsub.f32 1.0, %v562
  %586 = vrot.lane.b32.xlu0 %v583, 96
  %v587 = vpop.permute.xlu0 %586
  %v589 = vmul.f32 %v584, %v587
  %v591 = vrot.slane %v401, 2
  %592 = vrot.lane.b32.xlu0 %v591, 32
  %v593 = vpop.permute.xlu0 %592
  %v595 = vmul.f32 %v562, %v593
  %v596 = vadd.f32 %v589, %v595
  %v597 = vpack.c.bf16 %v496, %v496
  %v599 = vunpack.c.l.b16 %v597
  %v600 = vpack.c.b16 %v599, %v599
  %601 = vrot.lane.b32.xlu0 %v600, 96
  %v602 = vpop.permute.xlu0 %601
  %vm604 = vcmask 253952
  %605 = vst.msk [vmem:[%s8] sm:$0x1] %vm604, %v602
  %v606 = vpack.c.bf16 %v596, %v596
  %v608 = vunpack.c.l.b16 %v606
  %v609 = vpack.c.b16 %v608, %v608
  %610 = vrot.lane.b32.xlu0 %v609, 96
  %v611 = vpop.permute.xlu0 %610
  %vm613 = vcmask 257027
  %614 = vst.msk [vmem:[%s86 + $0x4] sm:$0x8] %vm613, %v611
  %615 = vrot.lane.b32.xlu0 %v597, 96
  %v616 = vpop.permute.xlu0 %615
  %v618 = vsel %vm127, %v616, 0
  %620 = vmatprep.subr.bf16.mxu0 0
  %621 = vmatpush1.bf16.msra.mxu0 %v411
  %622 = vmatprep.subr.bf16.mxu0 0
  %623 = vmatpush1.bf16.msra.mxu0 %v412
  %624 = vmatprep.subr.bf16.mxu0 0
  %625 = vmatpush1.bf16.msra.mxu0 0
  %626 = vmatprep.subr.bf16.mxu0 0
  %627 = vmatpush1.bf16.msra.mxu0 0
  %628 = vmatprep.subr.bf16.mxu0 0
  %629 = vmatpush1.bf16.msra.mxu0 0
  %630 = vmatprep.subr.bf16.mxu0 0
  %631 = vmatpush1.bf16.msra.mxu0 0
  %632 = vmatprep.subr.bf16.mxu0 0
  %633 = vmatpush1.bf16.msra.mxu0 0
  %634 = vmatprep.subr.bf16.mxu0 0
  %635 = vmatpush1.bf16.msra.mxu0 0
  %636 = vmatprep.subr.bf16.mxu0 0
  %637 = vmatpush1.bf16.msra.mxu0 0
  %638 = vmatprep.subr.bf16.mxu0 0
  %639 = vmatpush1.bf16.msra.mxu0 0
  %640 = vmatprep.subr.bf16.mxu0 0
  %641 = vmatpush1.bf16.msra.mxu0 0
  %642 = vmatprep.subr.bf16.mxu0 0
  %643 = vmatpush1.bf16.msra.mxu0 0
  %644 = vmatprep.subr.bf16.mxu0 0
  %645 = vmatpush1.bf16.msra.mxu0 0
  %646 = vmatprep.subr.bf16.mxu0 0
  %647 = vmatpush1.bf16.msra.mxu0 0
  %648 = vmatprep.subr.bf16.mxu0 0
  %649 = vmatpush1.bf16.msra.mxu0 0
  %650 = vmatprep.subr.bf16.mxu0 0
  %651 = vmatpush1.bf16.msra.mxu0 0
  %652 = vmatprep.mubr.bf16.mxu0 0
  %653 = vmatmul.mubr.bf16.gmra.mrb[0].mxu0 %v618
  %v654 = vpop.f32.mrb[0].mxu0
  %v655 = vadd.f32 0.0, %v654
  %v656 = vpop.f32.mrb[0].mxu0
  %v657 = vpop.f32.mrb[0].mxu0
  %v658 = vpop.f32.mrb[0].mxu0
  %659 = vdwg.mxu0
  %v661 = vrot.slane %v655, 6
  %v663 = vadd.f32 %v240, %v661
  %v664 = vxor.u32 %v663, 2147483648
  %v665 = vmul.f32 %v664, 1.442695
  %v666 = vpow.pop %v665
  %v667 = vadd.f32 %v666, 1.0
  %v668 = vrcp.pop %v667
  %v669 = vmul.f32 1.0, %v668
  %v670 = vadd.f32 %v655, %v471
  %v672 = vrot.slane %v670, 6
  %673 = vrot.lane.b32.xlu0 %v672, 64
  %v674 = vpop.permute.xlu0 %673
  %v676 = vmul.f32 %v669, %v674
  %678 = vrot.lane.b32.xlu0 %v676, 64
  %v679 = vpop.permute.xlu0 %678
  %v681 = vadd.f32 %v240, %v679
  %v682 = vtanh.pop %v681
  %v683 = vsub.f32 1.0, %v669
  %685 = vrot.lane.b32.xlu0 %v682, 96
  %v686 = vpop.permute.xlu0 %685
  %v688 = vmul.f32 %v683, %v686
  %v690 = vrot.slane %v496, 6
  %v692 = vmul.f32 %v669, %v690
  %v693 = vadd.f32 %v688, %v692
  %v694 = vrot.slane %v606, 3
  %695 = vrot.lane.b32.xlu0 %v694, 96
  %v696 = vpop.permute.xlu0 %695
  %v698 = vsel %vm127, %v696, 0
  %700 = vmatprep.subr.bf16.mxu0 0
  %701 = vmatpush1.bf16.msra.mxu0 %v506
  %702 = vmatprep.subr.bf16.mxu0 0
  %703 = vmatpush1.bf16.msra.mxu0 %v507
  %704 = vmatprep.subr.bf16.mxu0 0
  %705 = vmatpush1.bf16.msra.mxu0 0
  %706 = vmatprep.subr.bf16.mxu0 0
  %707 = vmatpush1.bf16.msra.mxu0 0
  %708 = vmatprep.subr.bf16.mxu0 0
  %709 = vmatpush1.bf16.msra.mxu0 0
  %710 = vmatprep.subr.bf16.mxu0 0
  %711 = vmatpush1.bf16.msra.mxu0 0
  %712 = vmatprep.subr.bf16.mxu0 0
  %713 = vmatpush1.bf16.msra.mxu0 0
  %714 = vmatprep.subr.bf16.mxu0 0
  %715 = vmatpush1.bf16.msra.mxu0 0
  %716 = vmatprep.subr.bf16.mxu0 0
  %717 = vmatpush1.bf16.msra.mxu0 0
  %718 = vmatprep.subr.bf16.mxu0 0
  %719 = vmatpush1.bf16.msra.mxu0 0
  %720 = vmatprep.subr.bf16.mxu0 0
  %721 = vmatpush1.bf16.msra.mxu0 0
  %722 = vmatprep.subr.bf16.mxu0 0
  %723 = vmatpush1.bf16.msra.mxu0 0
  %724 = vmatprep.subr.bf16.mxu0 0
  %725 = vmatpush1.bf16.msra.mxu0 0
  %726 = vmatprep.subr.bf16.mxu0 0
  %727 = vmatpush1.bf16.msra.mxu0 0
  %728 = vmatprep.subr.bf16.mxu0 0
  %729 = vmatpush1.bf16.msra.mxu0 0
  %730 = vmatprep.subr.bf16.mxu0 0
  %731 = vmatpush1.bf16.msra.mxu0 0
  %732 = vmatprep.mubr.bf16.mxu0 0
  %733 = vmatmul.mubr.bf16.gmra.mrb[0].mxu0 %v698
  %v734 = vpop.f32.mrb[0].mxu0
  %v735 = vadd.f32 0.0, %v734
  %v736 = vpop.f32.mrb[0].mxu0
  %v737 = vpop.f32.mrb[0].mxu0
  %v738 = vpop.f32.mrb[0].mxu0
  %739 = vdwg.mxu0
  %v741 = vrot.slane %v735, 4
  %v743 = vadd.f32 %v387, %v741
  %v744 = vxor.u32 %v743, 2147483648
  %v745 = vmul.f32 %v744, 1.442695
  %v746 = vpow.pop %v745
  %v747 = vadd.f32 %v746, 1.0
  %v748 = vrcp.pop %v747
  %v749 = vmul.f32 1.0, %v748
  %v750 = vadd.f32 %v735, %v569
  %v752 = vrot.slane %v750, 4
  %753 = vrot.lane.b32.xlu0 %v752, 64
  %v754 = vpop.permute.xlu0 %753
  %v756 = vmul.f32 %v749, %v754
  %758 = vrot.lane.b32.xlu0 %v756, 64
  %v759 = vpop.permute.xlu0 %758
  %v761 = vadd.f32 %v387, %v759
  %v762 = vtanh.pop %v761
  %v763 = vsub.f32 1.0, %v749
  %765 = vrot.lane.b32.xlu0 %v762, 96
  %v766 = vpop.permute.xlu0 %765
  %v768 = vmul.f32 %v763, %v766
  %v770 = vrot.slane %v596, 2
  %v772 = vmul.f32 %v749, %v770
  %v773 = vadd.f32 %v768, %v772
  %v774 = vpack.c.bf16 %v693, %v693
  %v776 = vunpack.c.l.b16 %v774
  %v777 = vpack.c.b16 %v776, %v776
  %778 = vrot.lane.b32.xlu0 %v777, 96
  %v779 = vpop.permute.xlu0 %778
  %vm781 = vcmask 254977
  %782 = vst.msk [vmem:[%s8] sm:$0x2] %vm781, %v779
  %v783 = vpack.c.bf16 %v773, %v773
  %v785 = vunpack.c.l.b16 %v783
  %v786 = vpack.c.b16 %v785, %v785
  %787 = vrot.lane.b32.xlu0 %v786, 96
  %v788 = vpop.permute.xlu0 %787
  %vm790 = vcmask 256002
  %791 = vst.msk [vmem:[%s86 + $0x4] sm:$0x4] %vm790, %v788
  %v792 = vrot.slane %v774, 1
  %793 = vrot.lane.b32.xlu0 %v792, 96
  %v794 = vpop.permute.xlu0 %793
  %v796 = vsel %vm127, %v794, 0
  %798 = vmatprep.subr.bf16.mxu0 0
  %799 = vmatpush1.bf16.msra.mxu0 %v411
  %800 = vmatprep.subr.bf16.mxu0 0
  %801 = vmatpush1.bf16.msra.mxu0 %v412
  %802 = vmatprep.subr.bf16.mxu0 0
  %803 = vmatpush1.bf16.msra.mxu0 0
  %804 = vmatprep.subr.bf16.mxu0 0
  %805 = vmatpush1.bf16.msra.mxu0 0
  %806 = vmatprep.subr.bf16.mxu0 0
  %807 = vmatpush1.bf16.msra.mxu0 0
  %808 = vmatprep.subr.bf16.mxu0 0
  %809 = vmatpush1.bf16.msra.mxu0 0
  %810 = vmatprep.subr.bf16.mxu0 0
  %811 = vmatpush1.bf16.msra.mxu0 0
  %812 = vmatprep.subr.bf16.mxu0 0
  %813 = vmatpush1.bf16.msra.mxu0 0
  %814 = vmatprep.subr.bf16.mxu0 0
  %815 = vmatpush1.bf16.msra.mxu0 0
  %816 = vmatprep.subr.bf16.mxu0 0
  %817 = vmatpush1.bf16.msra.mxu0 0
  %818 = vmatprep.subr.bf16.mxu0 0
  %819 = vmatpush1.bf16.msra.mxu0 0
  %820 = vmatprep.subr.bf16.mxu0 0
  %821 = vmatpush1.bf16.msra.mxu0 0
  %822 = vmatprep.subr.bf16.mxu0 0
  %823 = vmatpush1.bf16.msra.mxu0 0
  %824 = vmatprep.subr.bf16.mxu0 0
  %825 = vmatpush1.bf16.msra.mxu0 0
  %826 = vmatprep.subr.bf16.mxu0 0
  %827 = vmatpush1.bf16.msra.mxu0 0
  %828 = vmatprep.subr.bf16.mxu0 0
  %829 = vmatpush1.bf16.msra.mxu0 0
  %830 = vmatprep.mubr.bf16.mxu0 0
  %831 = vmatmul.mubr.bf16.gmra.mrb[0].mxu0 %v796
  %v832 = vpop.f32.mrb[0].mxu0
  %v833 = vadd.f32 0.0, %v832
  %v834 = vpop.f32.mrb[0].mxu0
  %v835 = vpop.f32.mrb[0].mxu0
  %v836 = vpop.f32.mrb[0].mxu0
  %837 = vdwg.mxu0
  %v839 = vrot.slane %v833, 4
  %v841 = vadd.f32 %v240, %v839
  %v842 = vxor.u32 %v841, 2147483648
  %v843 = vmul.f32 %v842, 1.442695
  %v844 = vpow.pop %v843
  %v845 = vadd.f32 %v844, 1.0
  %v846 = vrcp.pop %v845
  %v847 = vmul.f32 1.0, %v846
  %v848 = vadd.f32 %v833, %v471
  %v850 = vrot.slane %v848, 4
  %851 = vrot.lane.b32.xlu0 %v850, 64
  %v852 = vpop.permute.xlu0 %851
  %v854 = vmul.f32 %v847, %v852
  %856 = vrot.lane.b32.xlu0 %v854, 64
  %v857 = vpop.permute.xlu0 %856
  %v859 = vadd.f32 %v240, %v857
  %v860 = vtanh.pop %v859
  %v861 = vsub.f32 1.0, %v847
  %863 = vrot.lane.b32.xlu0 %v860, 96
  %v864 = vpop.permute.xlu0 %863
  %v866 = vmul.f32 %v861, %v864
  %v868 = vrot.slane %v693, 6
  %v870 = vmul.f32 %v847, %v868
  %v871 = vadd.f32 %v866, %v870
  %v872 = vrot.slane %v783, 2
  %873 = vrot.lane.b32.xlu0 %v872, 96
  %v874 = vpop.permute.xlu0 %873
  %v876 = vsel %vm127, %v874, 0
  %878 = vmatprep.subr.bf16.mxu0 0
  %879 = vmatpush1.bf16.msra.mxu0 %v506
  %880 = vmatprep.subr.bf16.mxu0 0
  %881 = vmatpush1.bf16.msra.mxu0 %v507
  %882 = vmatprep.subr.bf16.mxu0 0
  %883 = vmatpush1.bf16.msra.mxu0 0
  %884 = vmatprep.subr.bf16.mxu0 0
  %885 = vmatpush1.bf16.msra.mxu0 0
  %886 = vmatprep.subr.bf16.mxu0 0
  %887 = vmatpush1.bf16.msra.mxu0 0
  %888 = vmatprep.subr.bf16.mxu0 0
  %889 = vmatpush1.bf16.msra.mxu0 0
  %890 = vmatprep.subr.bf16.mxu0 0
  %891 = vmatpush1.bf16.msra.mxu0 0
  %892 = vmatprep.subr.bf16.mxu0 0
  %893 = vmatpush1.bf16.msra.mxu0 0
  %894 = vmatprep.subr.bf16.mxu0 0
  %895 = vmatpush1.bf16.msra.mxu0 0
  %896 = vmatprep.subr.bf16.mxu0 0
  %897 = vmatpush1.bf16.msra.mxu0 0
  %898 = vmatprep.subr.bf16.mxu0 0
  %899 = vmatpush1.bf16.msra.mxu0 0
  %900 = vmatprep.subr.bf16.mxu0 0
  %901 = vmatpush1.bf16.msra.mxu0 0
  %902 = vmatprep.subr.bf16.mxu0 0
  %903 = vmatpush1.bf16.msra.mxu0 0
  %904 = vmatprep.subr.bf16.mxu0 0
  %905 = vmatpush1.bf16.msra.mxu0 0
  %906 = vmatprep.subr.bf16.mxu0 0
  %907 = vmatpush1.bf16.msra.mxu0 0
  %908 = vmatprep.subr.bf16.mxu0 0
  %909 = vmatpush1.bf16.msra.mxu0 0
  %910 = vmatprep.mubr.bf16.mxu0 0
  %911 = vmatmul.mubr.bf16.gmra.mrb[0].mxu0 %v876
  %v912 = vpop.f32.mrb[0].mxu0
  %v913 = vadd.f32 0.0, %v912
  %v914 = vpop.f32.mrb[0].mxu0
  %v915 = vpop.f32.mrb[0].mxu0
  %v916 = vpop.f32.mrb[0].mxu0
  %917 = vdwg.mxu0
  %v919 = vrot.slane %v913, 6
  %v921 = vadd.f32 %v387, %v919
  %v922 = vxor.u32 %v921, 2147483648
  %v923 = vmul.f32 %v922, 1.442695
  %v924 = vpow.pop %v923
  %v925 = vadd.f32 %v924, 1.0
  %v926 = vrcp.pop %v925
  %v927 = vmul.f32 1.0, %v926
  %v928 = vadd.f32 %v913, %v569
  %v930 = vrot.slane %v928, 6
  %931 = vrot.lane.b32.xlu0 %v930, 64
  %v932 = vpop.permute.xlu0 %931
  %v934 = vmul.f32 %v927, %v932
  %936 = vrot.lane.b32.xlu0 %v934, 64
  %v937 = vpop.permute.xlu0 %936
  %v939 = vadd.f32 %v387, %v937
  %v940 = vtanh.pop %v939
  %v941 = vsub.f32 1.0, %v927
  %943 = vrot.lane.b32.xlu0 %v940, 96
  %v944 = vpop.permute.xlu0 %943
  %v946 = vmul.f32 %v941, %v944
  %v948 = vrot.slane %v773, 2
  %v950 = vmul.f32 %v927, %v948
  %v951 = vadd.f32 %v946, %v950
  %v952 = vpack.c.bf16 %v871, %v871
  %v954 = vunpack.c.l.b16 %v952
  %v955 = vpack.c.b16 %v954, %v954
  %956 = vrot.lane.b32.xlu0 %v955, 96
  %v957 = vpop.permute.xlu0 %956
  %959 = vst.msk [vmem:[%s8] sm:$0x4] %vm790, %v957
  %v960 = vpack.c.bf16 %v951, %v951
  %v962 = vunpack.c.l.b16 %v960
  %v963 = vpack.c.b16 %v962, %v962
  %964 = vrot.lane.b32.xlu0 %v963, 96
  %v965 = vpop.permute.xlu0 %964
  %967 = vst.msk [vmem:[%s86 + $0x4] sm:$0x2] %vm781, %v965
  %v968 = vrot.slane %v952, 2
  %969 = vrot.lane.b32.xlu0 %v968, 96
  %v970 = vpop.permute.xlu0 %969
  %v972 = vsel %vm127, %v970, 0
  %974 = vmatprep.subr.bf16.mxu0 0
  %975 = vmatpush1.bf16.msra.mxu0 %v411
  %976 = vmatprep.subr.bf16.mxu0 0
  %977 = vmatpush1.bf16.msra.mxu0 %v412
  %978 = vmatprep.subr.bf16.mxu0 0
  %979 = vmatpush1.bf16.msra.mxu0 0
  %980 = vmatprep.subr.bf16.mxu0 0
  %981 = vmatpush1.bf16.msra.mxu0 0
  %982 = vmatprep.subr.bf16.mxu0 0
  %983 = vmatpush1.bf16.msra.mxu0 0
  %984 = vmatprep.subr.bf16.mxu0 0
  %985 = vmatpush1.bf16.msra.mxu0 0
  %986 = vmatprep.subr.bf16.mxu0 0
  %987 = vmatpush1.bf16.msra.mxu0 0
  %988 = vmatprep.subr.bf16.mxu0 0
  %989 = vmatpush1.bf16.msra.mxu0 0
  %990 = vmatprep.subr.bf16.mxu0 0
  %991 = vmatpush1.bf16.msra.mxu0 0
  %992 = vmatprep.subr.bf16.mxu0 0
  %993 = vmatpush1.bf16.msra.mxu0 0
  %994 = vmatprep.subr.bf16.mxu0 0
  %995 = vmatpush1.bf16.msra.mxu0 0
  %996 = vmatprep.subr.bf16.mxu0 0
  %997 = vmatpush1.bf16.msra.mxu0 0
  %998 = vmatprep.subr.bf16.mxu0 0
  %999 = vmatpush1.bf16.msra.mxu0 0
  %1000 = vmatprep.subr.bf16.mxu0 0
  %1001 = vmatpush1.bf16.msra.mxu0 0
  %1002 = vmatprep.subr.bf16.mxu0 0
  %1003 = vmatpush1.bf16.msra.mxu0 0
  %1004 = vmatprep.subr.bf16.mxu0 0
  %1005 = vmatpush1.bf16.msra.mxu0 0
  %1006 = vmatprep.mubr.bf16.mxu0 0
  %1007 = vmatmul.mubr.bf16.gmra.mrb[0].mxu0 %v972
  %v1008 = vpop.f32.mrb[0].mxu0
  %v1009 = vadd.f32 0.0, %v1008
  %v1010 = vpop.f32.mrb[0].mxu0
  %v1011 = vpop.f32.mrb[0].mxu0
  %v1012 = vpop.f32.mrb[0].mxu0
  %1013 = vdwg.mxu0
  %v1015 = vrot.slane %v1009, 2
  %v1017 = vadd.f32 %v240, %v1015
  %v1018 = vxor.u32 %v1017, 2147483648
  %v1019 = vmul.f32 %v1018, 1.442695
  %v1020 = vpow.pop %v1019
  %v1021 = vadd.f32 %v1020, 1.0
  %v1022 = vrcp.pop %v1021
  %v1023 = vmul.f32 1.0, %v1022
  %v1024 = vadd.f32 %v1009, %v471
  %v1026 = vrot.slane %v1024, 2
  %1027 = vrot.lane.b32.xlu0 %v1026, 64
  %v1028 = vpop.permute.xlu0 %1027
  %v1030 = vmul.f32 %v1023, %v1028
  %1032 = vrot.lane.b32.xlu0 %v1030, 64
  %v1033 = vpop.permute.xlu0 %1032
  %v1035 = vadd.f32 %v240, %v1033
  %v1036 = vtanh.pop %v1035
  %v1037 = vsub.f32 1.0, %v1023
  %1039 = vrot.lane.b32.xlu0 %v1036, 96
  %v1040 = vpop.permute.xlu0 %1039
  %v1042 = vmul.f32 %v1037, %v1040
  %v1044 = vrot.slane %v871, 6
  %v1046 = vmul.f32 %v1023, %v1044
  %v1047 = vadd.f32 %v1042, %v1046
  %v1048 = vrot.slane %v960, 1
  %1049 = vrot.lane.b32.xlu0 %v1048, 96
  %v1050 = vpop.permute.xlu0 %1049
  %v1052 = vsel %vm127, %v1050, 0
  %1054 = vmatprep.subr.bf16.mxu0 0
  %1055 = vmatpush1.bf16.msra.mxu0 %v506
  %1056 = vmatprep.subr.bf16.mxu0 0
  %1057 = vmatpush1.bf16.msra.mxu0 %v507
  %1058 = vmatprep.subr.bf16.mxu0 0
  %1059 = vmatpush1.bf16.msra.mxu0 0
  %1060 = vmatprep.subr.bf16.mxu0 0
  %1061 = vmatpush1.bf16.msra.mxu0 0
  %1062 = vmatprep.subr.bf16.mxu0 0
  %1063 = vmatpush1.bf16.msra.mxu0 0
  %1064 = vmatprep.subr.bf16.mxu0 0
  %1065 = vmatpush1.bf16.msra.mxu0 0
  %1066 = vmatprep.subr.bf16.mxu0 0
  %1067 = vmatpush1.bf16.msra.mxu0 0
  %1068 = vmatprep.subr.bf16.mxu0 0
  %1069 = vmatpush1.bf16.msra.mxu0 0
  %1070 = vmatprep.subr.bf16.mxu0 0
  %1071 = vmatpush1.bf16.msra.mxu0 0
  %1072 = vmatprep.subr.bf16.mxu0 0
  %1073 = vmatpush1.bf16.msra.mxu0 0
  %1074 = vmatprep.subr.bf16.mxu0 0
  %1075 = vmatpush1.bf16.msra.mxu0 0
  %1076 = vmatprep.subr.bf16.mxu0 0
  %1077 = vmatpush1.bf16.msra.mxu0 0
  %1078 = vmatprep.subr.bf16.mxu0 0
  %1079 = vmatpush1.bf16.msra.mxu0 0
  %1080 = vmatprep.subr.bf16.mxu0 0
  %1081 = vmatpush1.bf16.msra.mxu0 0
  %1082 = vmatprep.subr.bf16.mxu0 0
  %1083 = vmatpush1.bf16.msra.mxu0 0
  %1084 = vmatprep.subr.bf16.mxu0 0
  %1085 = vmatpush1.bf16.msra.mxu0 0
  %1086 = vmatprep.mubr.bf16.mxu0 0
  %1087 = vmatmul.mubr.bf16.gmra.mrb[0].mxu0 %v1052
  %v1088 = vpop.f32.mrb[0].mxu0
  %v1089 = vadd.f32 0.0, %v1088
  %v1090 = vpop.f32.mrb[0].mxu0
  %v1091 = vpop.f32.mrb[0].mxu0
  %v1092 = vpop.f32.mrb[0].mxu0
  %1093 = vdwg.mxu0
  %v1094 = vadd.f32 %v387, %v1089
  %v1095 = vxor.u32 %v1094, 2147483648
  %v1096 = vmul.f32 %v1095, 1.442695
  %v1097 = vpow.pop %v1096
  %v1098 = vadd.f32 %v1097, 1.0
  %v1099 = vrcp.pop %v1098
  %v1100 = vmul.f32 1.0, %v1099
  %v1101 = vadd.f32 %v1089, %v569
  %1103 = vrot.lane.b32.xlu0 %v1101, 64
  %v1104 = vpop.permute.xlu0 %1103
  %v1106 = vmul.f32 %v1100, %v1104
  %1108 = vrot.lane.b32.xlu0 %v1106, 64
  %v1109 = vpop.permute.xlu0 %1108
  %v1111 = vadd.f32 %v387, %v1109
  %v1112 = vtanh.pop %v1111
  %v1113 = vsub.f32 1.0, %v1100
  %1115 = vrot.lane.b32.xlu0 %v1112, 96
  %v1116 = vpop.permute.xlu0 %1115
  %v1118 = vmul.f32 %v1113, %v1116
  %v1120 = vrot.slane %v951, 2
  %v1122 = vmul.f32 %v1100, %v1120
  %v1123 = vadd.f32 %v1118, %v1122
  %v1124 = vpack.c.bf16 %v1047, %v1047
  %v1126 = vunpack.c.l.b16 %v1124
  %v1127 = vpack.c.b16 %v1126, %v1126
  %1128 = vrot.lane.b32.xlu0 %v1127, 96
  %v1129 = vpop.permute.xlu0 %1128
  %1131 = vst.msk [vmem:[%s8] sm:$0x8] %vm613, %v1129
  %v1132 = vpack.c.bf16 %v1123, %v1123
  %v1134 = vunpack.c.l.b16 %v1132
  %v1135 = vpack.c.b16 %v1134, %v1134
  %1136 = vrot.lane.b32.xlu0 %v1135, 96
  %v1137 = vpop.permute.xlu0 %1136
  %1139 = vst.msk [vmem:[%s86 + $0x4] sm:$0x1] %vm604, %v1137
  %v1140 = vrot.slane %v1124, 3
  %1141 = vrot.lane.b32.xlu0 %v1140, 96
  %v1142 = vpop.permute.xlu0 %1141
  %v1144 = vsel %vm127, %v1142, 0
  %1146 = vmatprep.subr.bf16.mxu0 0
  %1147 = vmatpush1.bf16.msra.mxu0 %v411
  %1148 = vmatprep.subr.bf16.mxu0 0
  %1149 = vmatpush1.bf16.msra.mxu0 %v412
  %1150 = vmatprep.subr.bf16.mxu0 0
  %1151 = vmatpush1.bf16.msra.mxu0 0
  %1152 = vmatprep.subr.bf16.mxu0 0
  %1153 = vmatpush1.bf16.msra.mxu0 0
  %1154 = vmatprep.subr.bf16.mxu0 0
  %1155 = vmatpush1.bf16.msra.mxu0 0
  %1156 = vmatprep.subr.bf16.mxu0 0
  %1157 = vmatpush1.bf16.msra.mxu0 0
  %1158 = vmatprep.subr.bf16.mxu0 0
  %1159 = vmatpush1.bf16.msra.mxu0 0
  %1160 = vmatprep.subr.bf16.mxu0 0
  %1161 = vmatpush1.bf16.msra.mxu0 0
  %1162 = vmatprep.subr.bf16.mxu0 0
  %1163 = vmatpush1.bf16.msra.mxu0 0
  %1164 = vmatprep.subr.bf16.mxu0 0
  %1165 = vmatpush1.bf16.msra.mxu0 0
  %1166 = vmatprep.subr.bf16.mxu0 0
  %1167 = vmatpush1.bf16.msra.mxu0 0
  %1168 = vmatprep.subr.bf16.mxu0 0
  %1169 = vmatpush1.bf16.msra.mxu0 0
  %1170 = vmatprep.subr.bf16.mxu0 0
  %1171 = vmatpush1.bf16.msra.mxu0 0
  %1172 = vmatprep.subr.bf16.mxu0 0
  %1173 = vmatpush1.bf16.msra.mxu0 0
  %1174 = vmatprep.subr.bf16.mxu0 0
  %1175 = vmatpush1.bf16.msra.mxu0 0
  %1176 = vmatprep.subr.bf16.mxu0 0
  %1177 = vmatpush1.bf16.msra.mxu0 0
  %1178 = vmatprep.mubr.bf16.mxu0 0
  %1179 = vmatmul.mubr.bf16.gmra.mrb[0].mxu0 %v1144
  %v1180 = vpop.f32.mrb[0].mxu0
  %v1181 = vadd.f32 0.0, %v1180
  %v1182 = vpop.f32.mrb[0].mxu0
  %v1183 = vpop.f32.mrb[0].mxu0
  %v1184 = vpop.f32.mrb[0].mxu0
  %1185 = vdwg.mxu0
  %v1186 = vadd.f32 %v241, %v1181
  %v1187 = vxor.u32 %v1186, 2147483648
  %v1188 = vmul.f32 %v1187, 1.442695
  %v1189 = vpow.pop %v1188
  %v1190 = vadd.f32 %v1189, 1.0
  %v1191 = vrcp.pop %v1190
  %v1192 = vmul.f32 1.0, %v1191
  %v1193 = vadd.f32 %v1181, %v471
  %1195 = vrot.lane.b32.xlu0 %v1193, 64
  %v1196 = vpop.permute.xlu0 %1195
  %v1198 = vmul.f32 %v1192, %v1196
  %1200 = vrot.lane.b32.xlu0 %v1198, 64
  %v1201 = vpop.permute.xlu0 %1200
  %v1203 = vadd.f32 %v241, %v1201
  %v1204 = vtanh.pop %v1203
  %v1205 = vsub.f32 1.0, %v1192
  %1207 = vrot.lane.b32.xlu0 %v1204, 96
  %v1208 = vpop.permute.xlu0 %1207
  %v1210 = vmul.f32 %v1205, %v1208
  %v1212 = vrot.slane %v1047, 6
  %v1214 = vmul.f32 %v1192, %v1212
  %v1215 = vadd.f32 %v1210, %v1214
  %1216 = vrot.lane.b32.xlu0 %v1132, 96
  %v1217 = vpop.permute.xlu0 %1216
  %v1219 = vsel %vm127, %v1217, 0
  %1221 = vmatprep.subr.bf16.mxu0 0
  %1222 = vmatpush1.bf16.msra.mxu0 %v506
  %1223 = vmatprep.subr.bf16.mxu0 0
  %1224 = vmatpush1.bf16.msra.mxu0 %v507
  %1225 = vmatprep.subr.bf16.mxu0 0
  %1226 = vmatpush1.bf16.msra.mxu0 0
  %1227 = vmatprep.subr.bf16.mxu0 0
  %1228 = vmatpush1.bf16.msra.mxu0 0
  %1229 = vmatprep.subr.bf16.mxu0 0
  %1230 = vmatpush1.bf16.msra.mxu0 0
  %1231 = vmatprep.subr.bf16.mxu0 0
  %1232 = vmatpush1.bf16.msra.mxu0 0
  %1233 = vmatprep.subr.bf16.mxu0 0
  %1234 = vmatpush1.bf16.msra.mxu0 0
  %1235 = vmatprep.subr.bf16.mxu0 0
  %1236 = vmatpush1.bf16.msra.mxu0 0
  %1237 = vmatprep.subr.bf16.mxu0 0
  %1238 = vmatpush1.bf16.msra.mxu0 0
  %1239 = vmatprep.subr.bf16.mxu0 0
  %1240 = vmatpush1.bf16.msra.mxu0 0
  %1241 = vmatprep.subr.bf16.mxu0 0
  %1242 = vmatpush1.bf16.msra.mxu0 0
  %1243 = vmatprep.subr.bf16.mxu0 0
  %1244 = vmatpush1.bf16.msra.mxu0 0
  %1245 = vmatprep.subr.bf16.mxu0 0
  %1246 = vmatpush1.bf16.msra.mxu0 0
  %1247 = vmatprep.subr.bf16.mxu0 0
  %1248 = vmatpush1.bf16.msra.mxu0 0
  %1249 = vmatprep.subr.bf16.mxu0 0
  %1250 = vmatpush1.bf16.msra.mxu0 0
  %1251 = vmatprep.subr.bf16.mxu0 0
  %1252 = vmatpush1.bf16.msra.mxu0 0
  %1253 = vmatprep.mubr.bf16.mxu0 0
  %1254 = vmatmul.mubr.bf16.gmra.mrb[0].mxu0 %v1219
  %v1255 = vpop.f32.mrb[0].mxu0
  %v1256 = vadd.f32 0.0, %v1255
  %v1257 = vpop.f32.mrb[0].mxu0
  %v1258 = vpop.f32.mrb[0].mxu0
  %v1259 = vpop.f32.mrb[0].mxu0
  %1260 = vdwg.mxu0
  %v1262 = vrot.slane %v1256, 2
  %v1264 = vadd.f32 %v386, %v1262
  %v1265 = vxor.u32 %v1264, 2147483648
  %v1266 = vmul.f32 %v1265, 1.442695
  %v1267 = vpow.pop %v1266
  %v1268 = vadd.f32 %v1267, 1.0
  %v1269 = vrcp.pop %v1268
  %v1270 = vmul.f32 1.0, %v1269
  %v1271 = vadd.f32 %v1256, %v569
  %v1273 = vrot.slane %v1271, 2
  %1274 = vrot.lane.b32.xlu0 %v1273, 64
  %v1275 = vpop.permute.xlu0 %1274
  %v1277 = vmul.f32 %v1270, %v1275
  %1279 = vrot.lane.b32.xlu0 %v1277, 64
  %v1280 = vpop.permute.xlu0 %1279
  %v1282 = vadd.f32 %v386, %v1280
  %v1283 = vtanh.pop %v1282
  %v1284 = vsub.f32 1.0, %v1270
  %1286 = vrot.lane.b32.xlu0 %v1283, 96
  %v1287 = vpop.permute.xlu0 %1286
  %v1289 = vmul.f32 %v1284, %v1287
  %v1291 = vrot.slane %v1123, 2
  %v1293 = vmul.f32 %v1270, %v1291
  %v1294 = vadd.f32 %v1289, %v1293
  %v1295 = vpack.c.bf16 %v1215, %v1215
  %v1297 = vunpack.c.l.b16 %v1295
  %v1298 = vpack.c.b16 %v1297, %v1297
  %1299 = vrot.lane.b32.xlu0 %v1298, 96
  %v1300 = vpop.permute.xlu0 %1299
  %1302 = vst.msk [vmem:[%s8 + $0x4] sm:$0x1] %vm604, %v1300
  %v1303 = vpack.c.bf16 %v1294, %v1294
  %v1305 = vunpack.c.l.b16 %v1303
  %v1306 = vpack.c.b16 %v1305, %v1305
  %1307 = vrot.lane.b32.xlu0 %v1306, 96
  %v1308 = vpop.permute.xlu0 %1307
  %1310 = vst.msk [vmem:[%s86] sm:$0x8] %vm613, %v1308
  %1311 = vrot.lane.b32.xlu0 %v1295, 96
  %v1312 = vpop.permute.xlu0 %1311
  %v1314 = vsel %vm127, %v1312, 0
  %1316 = vmatprep.subr.bf16.mxu0 0
  %1317 = vmatpush1.bf16.msra.mxu0 %v411
  %1318 = vmatprep.subr.bf16.mxu0 0
  %1319 = vmatpush1.bf16.msra.mxu0 %v412
  %1320 = vmatprep.subr.bf16.mxu0 0
  %1321 = vmatpush1.bf16.msra.mxu0 0
  %1322 = vmatprep.subr.bf16.mxu0 0
  %1323 = vmatpush1.bf16.msra.mxu0 0
  %1324 = vmatprep.subr.bf16.mxu0 0
  %1325 = vmatpush1.bf16.msra.mxu0 0
  %1326 = vmatprep.subr.bf16.mxu0 0
  %1327 = vmatpush1.bf16.msra.mxu0 0
  %1328 = vmatprep.subr.bf16.mxu0 0
  %1329 = vmatpush1.bf16.msra.mxu0 0
  %1330 = vmatprep.subr.bf16.mxu0 0
  %1331 = vmatpush1.bf16.msra.mxu0 0
  %1332 = vmatprep.subr.bf16.mxu0 0
  %1333 = vmatpush1.bf16.msra.mxu0 0
  %1334 = vmatprep.subr.bf16.mxu0 0
  %1335 = vmatpush1.bf16.msra.mxu0 0
  %1336 = vmatprep.subr.bf16.mxu0 0
  %1337 = vmatpush1.bf16.msra.mxu0 0
  %1338 = vmatprep.subr.bf16.mxu0 0
  %1339 = vmatpush1.bf16.msra.mxu0 0
  %1340 = vmatprep.subr.bf16.mxu0 0
  %1341 = vmatpush1.bf16.msra.mxu0 0
  %1342 = vmatprep.subr.bf16.mxu0 0
  %1343 = vmatpush1.bf16.msra.mxu0 0
  %1344 = vmatprep.subr.bf16.mxu0 0
  %1345 = vmatpush1.bf16.msra.mxu0 0
  %1346 = vmatprep.subr.bf16.mxu0 0
  %1347 = vmatpush1.bf16.msra.mxu0 0
  %1348 = vmatprep.mubr.bf16.mxu0 0
  %1349 = vmatmul.mubr.bf16.gmra.mrb[0].mxu0 %v1314
  %v1350 = vpop.f32.mrb[0].mxu0
  %v1351 = vadd.f32 0.0, %v1350
  %v1352 = vpop.f32.mrb[0].mxu0
  %v1353 = vpop.f32.mrb[0].mxu0
  %v1354 = vpop.f32.mrb[0].mxu0
  %1355 = vdwg.mxu0
  %v1357 = vrot.slane %v1351, 6
  %v1359 = vadd.f32 %v241, %v1357
  %v1360 = vxor.u32 %v1359, 2147483648
  %v1361 = vmul.f32 %v1360, 1.442695
  %v1362 = vpow.pop %v1361
  %v1363 = vadd.f32 %v1362, 1.0
  %v1364 = vrcp.pop %v1363
  %v1365 = vmul.f32 1.0, %v1364
  %v1366 = vadd.f32 %v1351, %v471
  %v1368 = vrot.slane %v1366, 6
  %1369 = vrot.lane.b32.xlu0 %v1368, 64
  %v1370 = vpop.permute.xlu0 %1369
  %v1372 = vmul.f32 %v1365, %v1370
  %1374 = vrot.lane.b32.xlu0 %v1372, 64
  %v1375 = vpop.permute.xlu0 %1374
  %v1377 = vadd.f32 %v241, %v1375
  %v1378 = vtanh.pop %v1377
  %v1379 = vsub.f32 1.0, %v1365
  %1381 = vrot.lane.b32.xlu0 %v1378, 96
  %v1382 = vpop.permute.xlu0 %1381
  %v1384 = vmul.f32 %v1379, %v1382
  %v1386 = vrot.slane %v1215, 6
  %v1388 = vmul.f32 %v1365, %v1386
  %v1389 = vadd.f32 %v1384, %v1388
  %v1390 = vrot.slane %v1303, 3
  %1391 = vrot.lane.b32.xlu0 %v1390, 96
  %v1392 = vpop.permute.xlu0 %1391
  %v1394 = vsel %vm127, %v1392, 0
  %1396 = vmatprep.subr.bf16.mxu0 0
  %1397 = vmatpush1.bf16.msra.mxu0 %v506
  %1398 = vmatprep.subr.bf16.mxu0 0
  %1399 = vmatpush1.bf16.msra.mxu0 %v507
  %1400 = vmatprep.subr.bf16.mxu0 0
  %1401 = vmatpush1.bf16.msra.mxu0 0
  %1402 = vmatprep.subr.bf16.mxu0 0
  %1403 = vmatpush1.bf16.msra.mxu0 0
  %1404 = vmatprep.subr.bf16.mxu0 0
  %1405 = vmatpush1.bf16.msra.mxu0 0
  %1406 = vmatprep.subr.bf16.mxu0 0
  %1407 = vmatpush1.bf16.msra.mxu0 0
  %1408 = vmatprep.subr.bf16.mxu0 0
  %1409 = vmatpush1.bf16.msra.mxu0 0
  %1410 = vmatprep.subr.bf16.mxu0 0
  %1411 = vmatpush1.bf16.msra.mxu0 0
  %1412 = vmatprep.subr.bf16.mxu0 0
  %1413 = vmatpush1.bf16.msra.mxu0 0
  %1414 = vmatprep.subr.bf16.mxu0 0
  %1415 = vmatpush1.bf16.msra.mxu0 0
  %1416 = vmatprep.subr.bf16.mxu0 0
  %1417 = vmatpush1.bf16.msra.mxu0 0
  %1418 = vmatprep.subr.bf16.mxu0 0
  %1419 = vmatpush1.bf16.msra.mxu0 0
  %1420 = vmatprep.subr.bf16.mxu0 0
  %1421 = vmatpush1.bf16.msra.mxu0 0
  %1422 = vmatprep.subr.bf16.mxu0 0
  %1423 = vmatpush1.bf16.msra.mxu0 0
  %1424 = vmatprep.subr.bf16.mxu0 0
  %1425 = vmatpush1.bf16.msra.mxu0 0
  %1426 = vmatprep.subr.bf16.mxu0 0
  %1427 = vmatpush1.bf16.msra.mxu0 0
  %1428 = vmatprep.mubr.bf16.mxu0 0
  %1429 = vmatmul.mubr.bf16.gmra.mrb[0].mxu0 %v1394
  %v1430 = vpop.f32.mrb[0].mxu0
  %v1431 = vadd.f32 0.0, %v1430
  %v1432 = vpop.f32.mrb[0].mxu0
  %v1433 = vpop.f32.mrb[0].mxu0
  %v1434 = vpop.f32.mrb[0].mxu0
  %1435 = vdwg.mxu0
  %v1437 = vrot.slane %v1431, 4
  %v1439 = vadd.f32 %v386, %v1437
  %v1440 = vxor.u32 %v1439, 2147483648
  %v1441 = vmul.f32 %v1440, 1.442695
  %v1442 = vpow.pop %v1441
  %v1443 = vadd.f32 %v1442, 1.0
  %v1444 = vrcp.pop %v1443
  %v1445 = vmul.f32 1.0, %v1444
  %v1446 = vadd.f32 %v1431, %v569
  %v1448 = vrot.slane %v1446, 4
  %1449 = vrot.lane.b32.xlu0 %v1448, 64
  %v1450 = vpop.permute.xlu0 %1449
  %v1452 = vmul.f32 %v1445, %v1450
  %1454 = vrot.lane.b32.xlu0 %v1452, 64
  %v1455 = vpop.permute.xlu0 %1454
  %v1457 = vadd.f32 %v386, %v1455
  %v1458 = vtanh.pop %v1457
  %v1459 = vsub.f32 1.0, %v1445
  %1461 = vrot.lane.b32.xlu0 %v1458, 96
  %v1462 = vpop.permute.xlu0 %1461
  %v1464 = vmul.f32 %v1459, %v1462
  %v1466 = vrot.slane %v1294, 2
  %v1468 = vmul.f32 %v1445, %v1466
  %v1469 = vadd.f32 %v1464, %v1468
  %v1470 = vpack.c.bf16 %v1389, %v1389
  %v1472 = vunpack.c.l.b16 %v1470
  %v1473 = vpack.c.b16 %v1472, %v1472
  %1474 = vrot.lane.b32.xlu0 %v1473, 96
  %v1475 = vpop.permute.xlu0 %1474
  %1477 = vst.msk [vmem:[%s8 + $0x4] sm:$0x2] %vm781, %v1475
  %v1478 = vpack.c.bf16 %v1469, %v1469
  %v1480 = vunpack.c.l.b16 %v1478
  %v1481 = vpack.c.b16 %v1480, %v1480
  %1482 = vrot.lane.b32.xlu0 %v1481, 96
  %v1483 = vpop.permute.xlu0 %1482
  %1485 = vst.msk [vmem:[%s86] sm:$0x4] %vm790, %v1483
  %v1486 = vrot.slane %v1470, 1
  %1487 = vrot.lane.b32.xlu0 %v1486, 96
  %v1488 = vpop.permute.xlu0 %1487
  %v1490 = vsel %vm127, %v1488, 0
  %1492 = vmatprep.subr.bf16.mxu0 0
  %1493 = vmatpush1.bf16.msra.mxu0 %v411
  %1494 = vmatprep.subr.bf16.mxu0 0
  %1495 = vmatpush1.bf16.msra.mxu0 %v412
  %1496 = vmatprep.subr.bf16.mxu0 0
  %1497 = vmatpush1.bf16.msra.mxu0 0
  %1498 = vmatprep.subr.bf16.mxu0 0
  %1499 = vmatpush1.bf16.msra.mxu0 0
  %1500 = vmatprep.subr.bf16.mxu0 0
  %1501 = vmatpush1.bf16.msra.mxu0 0
  %1502 = vmatprep.subr.bf16.mxu0 0
  %1503 = vmatpush1.bf16.msra.mxu0 0
  %1504 = vmatprep.subr.bf16.mxu0 0
  %1505 = vmatpush1.bf16.msra.mxu0 0
  %1506 = vmatprep.subr.bf16.mxu0 0
  %1507 = vmatpush1.bf16.msra.mxu0 0
  %1508 = vmatprep.subr.bf16.mxu0 0
  %1509 = vmatpush1.bf16.msra.mxu0 0
  %1510 = vmatprep.subr.bf16.mxu0 0
  %1511 = vmatpush1.bf16.msra.mxu0 0
  %1512 = vmatprep.subr.bf16.mxu0 0
  %1513 = vmatpush1.bf16.msra.mxu0 0
  %1514 = vmatprep.subr.bf16.mxu0 0
  %1515 = vmatpush1.bf16.msra.mxu0 0
  %1516 = vmatprep.subr.bf16.mxu0 0
  %1517 = vmatpush1.bf16.msra.mxu0 0
  %1518 = vmatprep.subr.bf16.mxu0 0
  %1519 = vmatpush1.bf16.msra.mxu0 0
  %1520 = vmatprep.subr.bf16.mxu0 0
  %1521 = vmatpush1.bf16.msra.mxu0 0
  %1522 = vmatprep.subr.bf16.mxu0 0
  %1523 = vmatpush1.bf16.msra.mxu0 0
  %1524 = vmatprep.mubr.bf16.mxu0 0
  %1525 = vmatmul.mubr.bf16.gmra.mrb[0].mxu0 %v1490
  %v1526 = vpop.f32.mrb[0].mxu0
  %v1527 = vadd.f32 0.0, %v1526
  %v1528 = vpop.f32.mrb[0].mxu0
  %v1529 = vpop.f32.mrb[0].mxu0
  %v1530 = vpop.f32.mrb[0].mxu0
  %1531 = vdwg.mxu0
  %v1533 = vrot.slane %v1527, 4
  %v1535 = vadd.f32 %v241, %v1533
  %v1536 = vxor.u32 %v1535, 2147483648
  %v1537 = vmul.f32 %v1536, 1.442695
  %v1538 = vpow.pop %v1537
  %v1539 = vadd.f32 %v1538, 1.0
  %v1540 = vrcp.pop %v1539
  %v1541 = vmul.f32 1.0, %v1540
  %v1542 = vadd.f32 %v1527, %v471
  %v1544 = vrot.slane %v1542, 4
  %1545 = vrot.lane.b32.xlu0 %v1544, 64
  %v1546 = vpop.permute.xlu0 %1545
  %v1548 = vmul.f32 %v1541, %v1546
  %1550 = vrot.lane.b32.xlu0 %v1548, 64
  %v1551 = vpop.permute.xlu0 %1550
  %v1553 = vadd.f32 %v241, %v1551
  %v1554 = vtanh.pop %v1553
  %v1555 = vsub.f32 1.0, %v1541
  %1557 = vrot.lane.b32.xlu0 %v1554, 96
  %v1558 = vpop.permute.xlu0 %1557
  %v1560 = vmul.f32 %v1555, %v1558
  %v1562 = vrot.slane %v1389, 6
  %v1564 = vmul.f32 %v1541, %v1562
  %v1565 = vadd.f32 %v1560, %v1564
  %v1566 = vrot.slane %v1478, 2
  %1567 = vrot.lane.b32.xlu0 %v1566, 96
  %v1568 = vpop.permute.xlu0 %1567
  %v1570 = vsel %vm127, %v1568, 0
  %1572 = vmatprep.subr.bf16.mxu0 0
  %1573 = vmatpush1.bf16.msra.mxu0 %v506
  %1574 = vmatprep.subr.bf16.mxu0 0
  %1575 = vmatpush1.bf16.msra.mxu0 %v507
  %1576 = vmatprep.subr.bf16.mxu0 0
  %1577 = vmatpush1.bf16.msra.mxu0 0
  %1578 = vmatprep.subr.bf16.mxu0 0
  %1579 = vmatpush1.bf16.msra.mxu0 0
  %1580 = vmatprep.subr.bf16.mxu0 0
  %1581 = vmatpush1.bf16.msra.mxu0 0
  %1582 = vmatprep.subr.bf16.mxu0 0
  %1583 = vmatpush1.bf16.msra.mxu0 0
  %1584 = vmatprep.subr.bf16.mxu0 0
  %1585 = vmatpush1.bf16.msra.mxu0 0
  %1586 = vmatprep.subr.bf16.mxu0 0
  %1587 = vmatpush1.bf16.msra.mxu0 0
  %1588 = vmatprep.subr.bf16.mxu0 0
  %1589 = vmatpush1.bf16.msra.mxu0 0
  %1590 = vmatprep.subr.bf16.mxu0 0
  %1591 = vmatpush1.bf16.msra.mxu0 0
  %1592 = vmatprep.subr.bf16.mxu0 0
  %1593 = vmatpush1.bf16.msra.mxu0 0
  %1594 = vmatprep.subr.bf16.mxu0 0
  %1595 = vmatpush1.bf16.msra.mxu0 0
  %1596 = vmatprep.subr.bf16.mxu0 0
  %1597 = vmatpush1.bf16.msra.mxu0 0
  %1598 = vmatprep.subr.bf16.mxu0 0
  %1599 = vmatpush1.bf16.msra.mxu0 0
  %1600 = vmatprep.subr.bf16.mxu0 0
  %1601 = vmatpush1.bf16.msra.mxu0 0
  %1602 = vmatprep.subr.bf16.mxu0 0
  %1603 = vmatpush1.bf16.msra.mxu0 0
  %1604 = vmatprep.mubr.bf16.mxu0 0
  %1605 = vmatmul.mubr.bf16.gmra.mrb[0].mxu0 %v1570
  %v1606 = vpop.f32.mrb[0].mxu0
  %v1607 = vadd.f32 0.0, %v1606
  %v1608 = vpop.f32.mrb[0].mxu0
  %v1609 = vpop.f32.mrb[0].mxu0
  %v1610 = vpop.f32.mrb[0].mxu0
  %1611 = vdwg.mxu0
  %v1613 = vrot.slane %v1607, 6
  %v1615 = vadd.f32 %v386, %v1613
  %v1616 = vxor.u32 %v1615, 2147483648
  %v1617 = vmul.f32 %v1616, 1.442695
  %v1618 = vpow.pop %v1617
  %v1619 = vadd.f32 %v1618, 1.0
  %v1620 = vrcp.pop %v1619
  %v1621 = vmul.f32 1.0, %v1620
  %v1622 = vadd.f32 %v1607, %v569
  %v1624 = vrot.slane %v1622, 6
  %1625 = vrot.lane.b32.xlu0 %v1624, 64
  %v1626 = vpop.permute.xlu0 %1625
  %v1628 = vmul.f32 %v1621, %v1626
  %1630 = vrot.lane.b32.xlu0 %v1628, 64
  %v1631 = vpop.permute.xlu0 %1630
  %v1633 = vadd.f32 %v386, %v1631
  %v1634 = vtanh.pop %v1633
  %v1635 = vsub.f32 1.0, %v1621
  %1637 = vrot.lane.b32.xlu0 %v1634, 96
  %v1638 = vpop.permute.xlu0 %1637
  %v1640 = vmul.f32 %v1635, %v1638
  %v1642 = vrot.slane %v1469, 2
  %v1644 = vmul.f32 %v1621, %v1642
  %v1645 = vadd.f32 %v1640, %v1644
  %v1646 = vpack.c.bf16 %v1565, %v1565
  %v1648 = vunpack.c.l.b16 %v1646
  %v1649 = vpack.c.b16 %v1648, %v1648
  %1650 = vrot.lane.b32.xlu0 %v1649, 96
  %v1651 = vpop.permute.xlu0 %1650
  %1653 = vst.msk [vmem:[%s8 + $0x4] sm:$0x4] %vm790, %v1651
  %v1654 = vpack.c.bf16 %v1645, %v1645
  %v1656 = vunpack.c.l.b16 %v1654
  %v1657 = vpack.c.b16 %v1656, %v1656
  %1658 = vrot.lane.b32.xlu0 %v1657, 96
  %v1659 = vpop.permute.xlu0 %1658
  %1661 = vst.msk [vmem:[%s86] sm:$0x2] %vm781, %v1659
  %v1662 = vrot.slane %v1646, 2
  %1663 = vrot.lane.b32.xlu0 %v1662, 96
  %v1664 = vpop.permute.xlu0 %1663
  %v1666 = vsel %vm127, %v1664, 0
  %1668 = vmatprep.subr.bf16.mxu0 0
  %1669 = vmatpush1.bf16.msra.mxu0 %v411
  %1670 = vmatprep.subr.bf16.mxu0 0
  %1671 = vmatpush1.bf16.msra.mxu0 %v412
  %1672 = vmatprep.subr.bf16.mxu0 0
  %1673 = vmatpush1.bf16.msra.mxu0 0
  %1674 = vmatprep.subr.bf16.mxu0 0
  %1675 = vmatpush1.bf16.msra.mxu0 0
  %1676 = vmatprep.subr.bf16.mxu0 0
  %1677 = vmatpush1.bf16.msra.mxu0 0
  %1678 = vmatprep.subr.bf16.mxu0 0
  %1679 = vmatpush1.bf16.msra.mxu0 0
  %1680 = vmatprep.subr.bf16.mxu0 0
  %1681 = vmatpush1.bf16.msra.mxu0 0
  %1682 = vmatprep.subr.bf16.mxu0 0
  %1683 = vmatpush1.bf16.msra.mxu0 0
  %1684 = vmatprep.subr.bf16.mxu0 0
  %1685 = vmatpush1.bf16.msra.mxu0 0
  %1686 = vmatprep.subr.bf16.mxu0 0
  %1687 = vmatpush1.bf16.msra.mxu0 0
  %1688 = vmatprep.subr.bf16.mxu0 0
  %1689 = vmatpush1.bf16.msra.mxu0 0
  %1690 = vmatprep.subr.bf16.mxu0 0
  %1691 = vmatpush1.bf16.msra.mxu0 0
  %1692 = vmatprep.subr.bf16.mxu0 0
  %1693 = vmatpush1.bf16.msra.mxu0 0
  %1694 = vmatprep.subr.bf16.mxu0 0
  %1695 = vmatpush1.bf16.msra.mxu0 0
  %1696 = vmatprep.subr.bf16.mxu0 0
  %1697 = vmatpush1.bf16.msra.mxu0 0
  %1698 = vmatprep.subr.bf16.mxu0 0
  %1699 = vmatpush1.bf16.msra.mxu0 0
  %1700 = vmatprep.mubr.bf16.mxu0 0
  %1701 = vmatmul.mubr.bf16.gmra.mrb[0].mxu0 %v1666
  %v1702 = vpop.f32.mrb[0].mxu0
  %v1703 = vadd.f32 0.0, %v1702
  %v1704 = vpop.f32.mrb[0].mxu0
  %v1705 = vpop.f32.mrb[0].mxu0
  %v1706 = vpop.f32.mrb[0].mxu0
  %1707 = vdwg.mxu0
  %v1709 = vrot.slane %v1703, 2
  %v1711 = vadd.f32 %v241, %v1709
  %v1712 = vxor.u32 %v1711, 2147483648
  %v1713 = vmul.f32 %v1712, 1.442695
  %v1714 = vpow.pop %v1713
  %v1715 = vadd.f32 %v1714, 1.0
  %v1716 = vrcp.pop %v1715
  %v1717 = vmul.f32 1.0, %v1716
  %v1718 = vadd.f32 %v1703, %v471
  %v1720 = vrot.slane %v1718, 2
  %1721 = vrot.lane.b32.xlu0 %v1720, 64
  %v1722 = vpop.permute.xlu0 %1721
  %v1724 = vmul.f32 %v1717, %v1722
  %1726 = vrot.lane.b32.xlu0 %v1724, 64
  %v1727 = vpop.permute.xlu0 %1726
  %v1729 = vadd.f32 %v241, %v1727
  %v1730 = vtanh.pop %v1729
  %v1731 = vsub.f32 1.0, %v1717
  %1733 = vrot.lane.b32.xlu0 %v1730, 96
  %v1734 = vpop.permute.xlu0 %1733
  %v1736 = vmul.f32 %v1731, %v1734
  %v1738 = vrot.slane %v1565, 6
  %v1740 = vmul.f32 %v1717, %v1738
  %v1741 = vadd.f32 %v1736, %v1740
  %v1742 = vrot.slane %v1654, 1
  %1743 = vrot.lane.b32.xlu0 %v1742, 96
  %v1744 = vpop.permute.xlu0 %1743
  %v1746 = vsel %vm127, %v1744, 0
  %1748 = vmatprep.subr.bf16.mxu0 0
  %1749 = vmatpush1.bf16.msra.mxu0 %v506
  %1750 = vmatprep.subr.bf16.mxu0 0
  %1751 = vmatpush1.bf16.msra.mxu0 %v507
  %1752 = vmatprep.subr.bf16.mxu0 0
  %1753 = vmatpush1.bf16.msra.mxu0 0
  %1754 = vmatprep.subr.bf16.mxu0 0
  %1755 = vmatpush1.bf16.msra.mxu0 0
  %1756 = vmatprep.subr.bf16.mxu0 0
  %1757 = vmatpush1.bf16.msra.mxu0 0
  %1758 = vmatprep.subr.bf16.mxu0 0
  %1759 = vmatpush1.bf16.msra.mxu0 0
  %1760 = vmatprep.subr.bf16.mxu0 0
  %1761 = vmatpush1.bf16.msra.mxu0 0
  %1762 = vmatprep.subr.bf16.mxu0 0
  %1763 = vmatpush1.bf16.msra.mxu0 0
  %1764 = vmatprep.subr.bf16.mxu0 0
  %1765 = vmatpush1.bf16.msra.mxu0 0
  %1766 = vmatprep.subr.bf16.mxu0 0
  %1767 = vmatpush1.bf16.msra.mxu0 0
  %1768 = vmatprep.subr.bf16.mxu0 0
  %1769 = vmatpush1.bf16.msra.mxu0 0
  %1770 = vmatprep.subr.bf16.mxu0 0
  %1771 = vmatpush1.bf16.msra.mxu0 0
  %1772 = vmatprep.subr.bf16.mxu0 0
  %1773 = vmatpush1.bf16.msra.mxu0 0
  %1774 = vmatprep.subr.bf16.mxu0 0
  %1775 = vmatpush1.bf16.msra.mxu0 0
  %1776 = vmatprep.subr.bf16.mxu0 0
  %1777 = vmatpush1.bf16.msra.mxu0 0
  %1778 = vmatprep.subr.bf16.mxu0 0
  %1779 = vmatpush1.bf16.msra.mxu0 0
  %1780 = vmatprep.mubr.bf16.mxu0 0
  %1781 = vmatmul.mubr.bf16.gmra.mrb[0].mxu0 %v1746
  %v1782 = vpop.f32.mrb[0].mxu0
  %v1783 = vadd.f32 0.0, %v1782
  %v1784 = vpop.f32.mrb[0].mxu0
  %v1785 = vpop.f32.mrb[0].mxu0
  %v1786 = vpop.f32.mrb[0].mxu0
  %1787 = vdwg.mxu0
  %v1788 = vadd.f32 %v386, %v1783
  %v1789 = vxor.u32 %v1788, 2147483648
  %v1790 = vmul.f32 %v1789, 1.442695
  %v1791 = vpow.pop %v1790
  %v1792 = vadd.f32 %v1791, 1.0
  %v1793 = vrcp.pop %v1792
  %v1794 = vmul.f32 1.0, %v1793
  %v1795 = vadd.f32 %v1783, %v569
  %1797 = vrot.lane.b32.xlu0 %v1795, 64
  %v1798 = vpop.permute.xlu0 %1797
  %v1800 = vmul.f32 %v1794, %v1798
  %1802 = vrot.lane.b32.xlu0 %v1800, 64
  %v1803 = vpop.permute.xlu0 %1802
  %v1805 = vadd.f32 %v386, %v1803
  %v1806 = vtanh.pop %v1805
  %v1807 = vsub.f32 1.0, %v1794
  %1809 = vrot.lane.b32.xlu0 %v1806, 96
  %v1810 = vpop.permute.xlu0 %1809
  %v1812 = vmul.f32 %v1807, %v1810
  %v1814 = vrot.slane %v1645, 2
  %v1816 = vmul.f32 %v1794, %v1814
  %v1817 = vadd.f32 %v1812, %v1816
  %v1818 = vpack.c.bf16 %v1741, %v1741
  %v1820 = vunpack.c.l.b16 %v1818
  %v1821 = vpack.c.b16 %v1820, %v1820
  %1822 = vrot.lane.b32.xlu0 %v1821, 96
  %v1823 = vpop.permute.xlu0 %1822
  %1825 = vst.msk [vmem:[%s8 + $0x4] sm:$0x8] %vm613, %v1823
  %v1826 = vpack.c.bf16 %v1817, %v1817
  %v1828 = vunpack.c.l.b16 %v1826
  %v1829 = vpack.c.b16 %v1828, %v1828
  %1830 = vrot.lane.b32.xlu0 %v1829, 96
  %v1831 = vpop.permute.xlu0 %1830
  %1833 = vst.msk [vmem:[%s86] sm:$0x1] %vm604, %v1831
  %1835 = vrot.lane.b32.xlu0 %v1741, 96
  %v1836 = vpop.permute.xlu0 %1835
  %vm1838 = vcmask 261126
  %1839 = vst.msk [vmem:[#allocation2 - $0x6] sm:$0xc0] %vm1838, %v1836
  %1841 = vrot.lane.b32.xlu0 %v1817, 96
  %v1842 = vpop.permute.xlu0 %1841
  %vm1844 = vcmask 254976
  %1845 = vst.msk [vmem:[#allocation3] sm:$0x3] %vm1844, %v1842
  %s1846 = ssub.s32 0, 0
  %s1847 = smul.u32 2, %s1846
  %p1848 = scmp.lt.s32.totalorder %s1847, 1
  %s1849 = scalar_select %p1848, %s1847, 1
  %s1850 = smul.addr %s1849, 4
  %s1851 = scalar_lea.vmem %s9, %s1850
  // Predicated region
  $region38: #{gru_classifier_forward.4} parent=0 // pred_check
    _
  $region39: #{gru_classifier_forward.4} parent=0 // pred_check_branch
    %1853 = sbr.rel (0) target = $region41
  $region40: #{gru_classifier_forward.4} parent=0 // pred_region
    _
  $region41: #{gru_classifier_forward.4} parent=0 // pred_fallthru
    _
  // Predicated region
  $region42: #{gru_classifier_forward.4} parent=0 // pred_check
    _
  $region43: #{gru_classifier_forward.4} parent=0 // pred_check_branch
    %1855 = sbr.rel (0) target = $region45
  $region44: #{gru_classifier_forward.4} parent=0 // pred_region
    %s1856 = ssub.s32 0, 0
    %s1857 = smul.u32 2, %s1856
  $region45: #{gru_classifier_forward.4} parent=0 // pred_fallthru
    _
  // Predicated region
  $region46: #{gru_classifier_forward.4} parent=0 // pred_check
    _
  $region47: #{gru_classifier_forward.4} parent=0 // pred_check_branch
    %1859 = sbr.rel (0) target = $region49
  $region48: #{gru_classifier_forward.4} parent=0 // pred_region
    _
  $region49: #{gru_classifier_forward.4} parent=0 // pred_fallthru
    _
  // Predicated region
  $region50: #{gru_classifier_forward.4} parent=0 // pred_check
    _
  $region51: #{gru_classifier_forward.4} parent=0 // pred_check_branch
    %1861 = sbr.rel (0) target = $region53
  $region52: #{gru_classifier_forward.4} parent=0 // pred_region
    %s1862 = ssub.s32 0, 0
    %s1863 = smul.u32 2, %s1862
    %p1864 = scmp.lt.s32.totalorder %s1863, 1
    %s1865 = scalar_select %p1864, %s1863, 1
    %s1866 = smul.addr %s1865, 4
    %s1867 = scalar_lea.vmem %s9, %s1866
  $region53: #{gru_classifier_forward.4} parent=0 // pred_fallthru
    _

// kernel: gru_classifier_forward.3
$region0: #{gru_classifier_forward.3}
  #allocation0 [shape = 'u32[]', space=smem, size = 0x4, offset = 0x4, fixed_abs, tag = 'smem constant byte address 0x4 - core index']
  #allocation1 [shape = 'u32[144,128]{1,0:T(1,128)}', space=vmem, size = 0x12000, scoped, tag = 'internal scratch']
  #allocation2 [shape = 'f32[2,32]{1,0:T(2,128)}', space=vmem, size = 0x400, scoped, tag = 'scratch operand']
  #allocation3 [shape = 'f32[2,32]{1,0:T(2,128)}', space=vmem, size = 0x400, scoped, tag = 'scratch operand']
  %s0 = inlined_call_operand.vmem [shape: bf16[16,16], index: 0, kind: input, shape index: {}, may-alias: {0,1}]
  %s1 = inlined_call_operand.vmem [shape: bf16[16,16], index: 1, kind: input, shape index: {}, may-alias: {0,1}]
  %s2 = inlined_call_operand.vmem [shape: bf16[2,1,16,96], index: 2, kind: input, shape index: {}]
  %s3 = inlined_call_operand.vmem [shape: f32[2,1,96], index: 3, kind: input, shape index: {}]
  %s4 = inlined_call_operand.vmem [shape: bf16[2,32,96], index: 4, kind: input, shape index: {}]
  %s5 = inlined_call_operand.vmem [shape: f32[2,1,32], index: 5, kind: input, shape index: {}]
  %s6 = inlined_call_operand.vmem [shape: bf16[16,32], index: 6, kind: output, shape index: {0}]
  %s7 = inlined_call_operand.vmem [shape: bf16[16,32], index: 7, kind: output, shape index: {1}]
  %8 = xla_tuple %s6, %s7
  %s9 = sld [smem:[#allocation0]]
  $region46: #{gru_classifier_forward.3} parent=0
    _
  %s11 = ssub.s32 1, %s9
  %s12 = scalar_select 0, %s11, %s9
  // Predicated region
  $region2: #{gru_classifier_forward.3} parent=0 // pred_check
    _
  $region3: #{gru_classifier_forward.3} parent=0 // pred_check_branch
    %14 = sbr.rel (0) target = $region5
  $region4: #{gru_classifier_forward.3} parent=0 // pred_region
    _
  $region5: #{gru_classifier_forward.3} parent=0 // pred_fallthru
    _
  // Predicated region
  $region6: #{gru_classifier_forward.3} parent=0 // pred_check
    _
  $region7: #{gru_classifier_forward.3} parent=0 // pred_check_branch
    %16 = sbr.rel (0) target = $region9
  $region8: #{gru_classifier_forward.3} parent=0 // pred_region
    %s17 = ssub.s32 0, 0
    %s18 = smul.u32 2, %s17
    %p19 = scmp.lt.s32.totalorder %s18, 1
    %s20 = scalar_select %p19, %s18, 1
    %s21 = smul.addr %s20, 4
    %s22 = scalar_lea.vmem %s1, %s21
    %s23 = ssub.s32 0, 0
    %s24 = smul.u32 2, %s23
  $region9: #{gru_classifier_forward.3} parent=0 // pred_fallthru
    _
  // Predicated region
  $region10: #{gru_classifier_forward.3} parent=0 // pred_check
    _
  $region11: #{gru_classifier_forward.3} parent=0 // pred_check_branch
    %26 = sbr.rel (0) target = $region13
  $region12: #{gru_classifier_forward.3} parent=0 // pred_region
    _
  $region13: #{gru_classifier_forward.3} parent=0 // pred_fallthru
    _
  // Predicated region
  $region14: #{gru_classifier_forward.3} parent=0 // pred_check
    _
  $region15: #{gru_classifier_forward.3} parent=0 // pred_check_branch
    %28 = sbr.rel (0) target = $region17
  $region16: #{gru_classifier_forward.3} parent=0 // pred_region
    _
  $region17: #{gru_classifier_forward.3} parent=0 // pred_fallthru
    _
  // Predicated region
  $region18: #{gru_classifier_forward.3} parent=0 // pred_check
    _
  $region19: #{gru_classifier_forward.3} parent=0 // pred_check_branch
    %30 = sbr.rel (0) target = $region21
  $region20: #{gru_classifier_forward.3} parent=0 // pred_region
    _
  $region21: #{gru_classifier_forward.3} parent=0 // pred_fallthru
    _
  // Predicated region
  $region22: #{gru_classifier_forward.3} parent=0 // pred_check
    _
  $region23: #{gru_classifier_forward.3} parent=0 // pred_check_branch
    %32 = sbr.rel (0) target = $region25
  $region24: #{gru_classifier_forward.3} parent=0 // pred_region
    _
  $region25: #{gru_classifier_forward.3} parent=0 // pred_fallthru
    _
  %s33 = ssub.s32 0, 0
  %s34 = smul.u32 2, %s33
  %p35 = scmp.lt.s32.totalorder %s34, 1
  %s36 = scalar_select %p35, %s34, 1
  %s37 = smul.addr %s36, 4
  %s38 = scalar_lea.vmem %s1, %s37
  %s39 = ssub.s32 0, 0
  %s40 = smul.u32 2, %s39
  %p41 = scmp.lt.s32.totalorder %s40, 1
  %s42 = scalar_select %p41, %s40, 1
  %s43 = smul.addr %s42, 4
  %s44 = scalar_lea.vmem %s7, %s43
  %s45 = ssub.s32 0, 0
  %s46 = smul.u32 2, %s45
  %p47 = scmp.lt.s32.totalorder %s46, 1
  %s48 = scalar_select %p47, %s46, 1
  %s49 = smul.addr %s48, 4
  %s50 = scalar_lea.vmem %s1, %s49
  %s51 = ssub.s32 0, 0
  %s52 = smul.u32 2, %s51
  %s53 = ssub.s32 0, 0
  %s54 = smul.u32 2, %s53
  %p55 = scmp.lt.s32.totalorder %s54, 1
  %s56 = scalar_select %p55, %s54, 1
  %s57 = smul.addr %s56, 4
  %s58 = scalar_lea.vmem %s7, %s57
  %s59 = ssub.s32 0, 0
  %s60 = smul.u32 2, %s59
  %p62 = scmp.eq.s32.totalorder 0, 0
  // Predicated region
  $region26: #{gru_classifier_forward.3} parent=0 // pred_check
    %p63 = pneg %p62
  $region27: #{gru_classifier_forward.3} parent=0 // pred_check_branch
    %65 = sbr.rel (%p63) target = $region29
  $region28: #{gru_classifier_forward.3} parent=0 // pred_region
    %vm66 = vcmask 254976
    %67 = vst.msk [vmem:[#allocation2] sm:$0x3] %vm66, 0.0
    %68 = vst.msk [vmem:[#allocation3] sm:$0x3] %vm66, 0.0
  $region29: #{gru_classifier_forward.3} parent=0 // pred_fallthru
    _
  %v69 = vld [vmem:[%s0] sm:$0xf]
  %v70 = vld [vmem:[%s0 + $0x4] sm:$0xf]
  %v71 = vld [vmem:[%s2] sm:$0xf]
  %v72 = vld [vmem:[%s2 + $0x4] sm:$0xf]
  %v73 = vld [vmem:[%s3] sm:$0x1]
  %v75 = vlaneseq
  %v76 = vshrl.u32 %v75, 7
  %v77 = vsub.s32 0, %v76
  %v78 = vrot.slane %v73, %v77
  %v82 = vunpack.c.l.b16 %v69
  %v83 = vunpack.c.l.b16 %v70
  %v84 = vpack.c.b16 %v83, %v82
  %v87 = vunpack.c.l.b16 %v71
  %v88 = vunpack.c.l.b16 %v72
  %v89 = vpack.c.b16 %v88, %v87
  %vm91 = vcmask 130048
  %v93 = vsel %vm91, %v84, 0
  %95 = vmatprep.subr.bf16.mxu0 0
  %96 = vmatpush1.bf16.msra.mxu0 %v89
  %97 = vmatprep.subr.bf16.mxu0 0
  %98 = vmatpush1.bf16.msra.mxu0 0
  %99 = vmatprep.subr.bf16.mxu0 0
  %100 = vmatpush1.bf16.msra.mxu0 0
  %101 = vmatprep.subr.bf16.mxu0 0
  %102 = vmatpush1.bf16.msra.mxu0 0
  %103 = vmatprep.subr.bf16.mxu0 0
  %104 = vmatpush1.bf16.msra.mxu0 0
  %105 = vmatprep.subr.bf16.mxu0 0
  %106 = vmatpush1.bf16.msra.mxu0 0
  %107 = vmatprep.subr.bf16.mxu0 0
  %108 = vmatpush1.bf16.msra.mxu0 0
  %109 = vmatprep.subr.bf16.mxu0 0
  %110 = vmatpush1.bf16.msra.mxu0 0
  %111 = vmatprep.subr.bf16.mxu0 0
  %112 = vmatpush1.bf16.msra.mxu0 0
  %113 = vmatprep.subr.bf16.mxu0 0
  %114 = vmatpush1.bf16.msra.mxu0 0
  %115 = vmatprep.subr.bf16.mxu0 0
  %116 = vmatpush1.bf16.msra.mxu0 0
  %117 = vmatprep.subr.bf16.mxu0 0
  %118 = vmatpush1.bf16.msra.mxu0 0
  %119 = vmatprep.subr.bf16.mxu0 0
  %120 = vmatpush1.bf16.msra.mxu0 0
  %121 = vmatprep.subr.bf16.mxu0 0
  %122 = vmatpush1.bf16.msra.mxu0 0
  %123 = vmatprep.subr.bf16.mxu0 0
  %124 = vmatpush1.bf16.msra.mxu0 0
  %125 = vmatprep.subr.bf16.mxu0 0
  %126 = vmatpush1.bf16.msra.mxu0 0
  %127 = vmatprep.mubr.bf16.mxu0 0
  %128 = vmatmul.mubr.bf16.gmra.mrb[0].mxu0 %v93
  %v129 = vpop.f32.mrb[0].mxu0
  %v130 = vadd.f32 %v78, %v129
  %v131 = vpop.f32.mrb[0].mxu0
  %v132 = vpop.f32.mrb[0].mxu0
  %v133 = vadd.f32 %v78, %v132
  %v134 = vpop.f32.mrb[0].mxu0
  %135 = vdwg.mxu0
  %v136 = vld [vmem:[%s50] sm:$0xf]
  %v137 = vld [vmem:[%s50 + $0x4] sm:$0xf]
  %s138 = scalar_lea.vmem %s2, 8
  %v139 = vld [vmem:[%s138] sm:$0xf]
  %v140 = vld [vmem:[%s138 + $0x4] sm:$0xf]
  %s141 = scalar_lea.vmem %s3, 1
  %v142 = vld [vmem:[%s141] sm:$0x1]
  %v144 = vlaneseq
  %v145 = vshrl.u32 %v144, 7
  %v146 = vsub.s32 0, %v145
  %v147 = vrot.slane %v142, %v146
  %v151 = vunpack.c.l.b16 %v136
  %v152 = vunpack.c.l.b16 %v137
  %v153 = vpack.c.b16 %v152, %v151
  %v156 = vunpack.c.l.b16 %v139
  %v157 = vunpack.c.l.b16 %v140
  %v158 = vpack.c.b16 %v157, %v156
  %v161 = vsel %vm91, %v153, 0
  %163 = vmatprep.subr.bf16.mxu0 0
  %164 = vmatpush1.bf16.msra.mxu0 %v158
  %165 = vmatprep.subr.bf16.mxu0 0
  %166 = vmatpush1.bf16.msra.mxu0 0
  %167 = vmatprep.subr.bf16.mxu0 0
  %168 = vmatpush1.bf16.msra.mxu0 0
  %169 = vmatprep.subr.bf16.mxu0 0
  %170 = vmatpush1.bf16.msra.mxu0 0
  %171 = vmatprep.subr.bf16.mxu0 0
  %172 = vmatpush1.bf16.msra.mxu0 0
  %173 = vmatprep.subr.bf16.mxu0 0
  %174 = vmatpush1.bf16.msra.mxu0 0
  %175 = vmatprep.subr.bf16.mxu0 0
  %176 = vmatpush1.bf16.msra.mxu0 0
  %177 = vmatprep.subr.bf16.mxu0 0
  %178 = vmatpush1.bf16.msra.mxu0 0
  %179 = vmatprep.subr.bf16.mxu0 0
  %180 = vmatpush1.bf16.msra.mxu0 0
  %181 = vmatprep.subr.bf16.mxu0 0
  %182 = vmatpush1.bf16.msra.mxu0 0
  %183 = vmatprep.subr.bf16.mxu0 0
  %184 = vmatpush1.bf16.msra.mxu0 0
  %185 = vmatprep.subr.bf16.mxu0 0
  %186 = vmatpush1.bf16.msra.mxu0 0
  %187 = vmatprep.subr.bf16.mxu0 0
  %188 = vmatpush1.bf16.msra.mxu0 0
  %189 = vmatprep.subr.bf16.mxu0 0
  %190 = vmatpush1.bf16.msra.mxu0 0
  %191 = vmatprep.subr.bf16.mxu0 0
  %192 = vmatpush1.bf16.msra.mxu0 0
  %193 = vmatprep.subr.bf16.mxu0 0
  %194 = vmatpush1.bf16.msra.mxu0 0
  %195 = vmatprep.mubr.bf16.mxu0 0
  %196 = vmatmul.mubr.bf16.gmra.mrb[0].mxu0 %v161
  %v197 = vpop.f32.mrb[0].mxu0
  %v198 = vadd.f32 %v147, %v197
  %v199 = vpop.f32.mrb[0].mxu0
  %v200 = vpop.f32.mrb[0].mxu0
  %v201 = vadd.f32 %v147, %v200
  %v202 = vpop.f32.mrb[0].mxu0
  %203 = vdwg.mxu0
  %v204 = vld [vmem:[%s4] sm:$0xf]
  %v205 = vld [vmem:[%s4 + $0x4] sm:$0xf]
  %v206 = vld [vmem:[%s4 + $0x8] sm:$0xf]
  %v207 = vld [vmem:[%s4 + $0xc] sm:$0xf]
  %s208 = scalar_lea.vmem %s4, 16
  %v209 = vld [vmem:[%s208] sm:$0xf]
  %v210 = vld [vmem:[%s208 + $0x4] sm:$0xf]
  %v211 = vld [vmem:[%s208 + $0x8] sm:$0xf]
  %v212 = vld [vmem:[%s208 + $0xc] sm:$0xf]
  %v213 = vld [vmem:[%s5] sm:$0x1]
  %s214 = scalar_lea.vmem %s5, 1
  %v215 = vld [vmem:[%s214] sm:$0x1]
  %v216 = vld [vmem:[#allocation2] sm:$0x3]
  %v217 = vld [vmem:[#allocation3] sm:$0x3]
  %v218 = vpack.c.bf16 %v216, %v216
  %v223 = vunpack.c.l.b16 %v204
  %v224 = vunpack.c.l.b16 %v205
  %v225 = vunpack.c.l.b16 %v206
  %v226 = vunpack.c.l.b16 %v207
  %v227 = vpack.c.b16 %v224, %v223
  %v228 = vpack.c.b16 %v226, %v225
  %vm231 = vcmask 261120
  %v233 = vsel %vm231, %v218, 0
  %235 = vmatprep.subr.bf16.mxu0 0
  %236 = vmatpush1.bf16.msra.mxu0 %v227
  %237 = vmatprep.subr.bf16.mxu0 0
  %238 = vmatpush1.bf16.msra.mxu0 %v228
  %239 = vmatprep.subr.bf16.mxu0 0
  %240 = vmatpush1.bf16.msra.mxu0 0
  %241 = vmatprep.subr.bf16.mxu0 0
  %242 = vmatpush1.bf16.msra.mxu0 0
  %243 = vmatprep.subr.bf16.mxu0 0
  %244 = vmatpush1.bf16.msra.mxu0 0
  %245 = vmatprep.subr.bf16.mxu0 0
  %246 = vmatpush1.bf16.msra.mxu0 0
  %247 = vmatprep.subr.bf16.mxu0 0
  %248 = vmatpush1.bf16.msra.mxu0 0
  %249 = vmatprep.subr.bf16.mxu0 0
  %250 = vmatpush1.bf16.msra.mxu0 0
  %251 = vmatprep.subr.bf16.mxu0 0
  %252 = vmatpush1.bf16.msra.mxu0 0
  %253 = vmatprep.subr.bf16.mxu0 0
  %254 = vmatpush1.bf16.msra.mxu0 0
  %255 = vmatprep.subr.bf16.mxu0 0
  %256 = vmatpush1.bf16.msra.mxu0 0
  %257 = vmatprep.subr.bf16.mxu0 0
  %258 = vmatpush1.bf16.msra.mxu0 0
  %259 = vmatprep.subr.bf16.mxu0 0
  %260 = vmatpush1.bf16.msra.mxu0 0
  %261 = vmatprep.subr.bf16.mxu0 0
  %262 = vmatpush1.bf16.msra.mxu0 0
  %263 = vmatprep.subr.bf16.mxu0 0
  %264 = vmatpush1.bf16.msra.mxu0 0
  %265 = vmatprep.subr.bf16.mxu0 0
  %266 = vmatpush1.bf16.msra.mxu0 0
  %267 = vmatprep.mubr.bf16.mxu0 0
  %268 = vmatmul.mubr.bf16.gmra.mrb[0].mxu0 %v233
  %v269 = vpop.f32.mrb[0].mxu0
  %v270 = vadd.f32 0.0, %v269
  %v271 = vpop.f32.mrb[0].mxu0
  %v272 = vpop.f32.mrb[0].mxu0
  %v273 = vpop.f32.mrb[0].mxu0
  %274 = vdwg.mxu0
  %v275 = vadd.f32 %v130, %v270
  %v276 = vxor.u32 %v275, 2147483648
  %v277 = vmul.f32 %v276, 1.442695
  %v278 = vpow.pop %v277
  %v279 = vadd.f32 %v278, 1.0
  %v280 = vrcp.pop %v279
  %v281 = vmul.f32 1.0, %v280
  %v283 = vlaneseq
  %v284 = vshrl.u32 %v283, 7
  %v285 = vsub.s32 0, %v284
  %v286 = vrot.slane %v213, %v285
  %287 = vrot.lane.b32.xlu0 %v286, 64
  %v288 = vpop.permute.xlu0 %287
  %v290 = vadd.f32 %v270, %v288
  %292 = vrot.lane.b32.xlu0 %v290, 64
  %v293 = vpop.permute.xlu0 %292
  %v295 = vmul.f32 %v281, %v293
  %297 = vrot.lane.b32.xlu0 %v295, 64
  %v298 = vpop.permute.xlu0 %297
  %v300 = vadd.f32 %v130, %v298
  %v301 = vtanh.pop %v300
  %v302 = vsub.f32 1.0, %v281
  %304 = vrot.lane.b32.xlu0 %v301, 96
  %v305 = vpop.permute.xlu0 %304
  %v307 = vmul.f32 %v302, %v305
  %309 = vrot.lane.b32.xlu0 %v216, 32
  %v310 = vpop.permute.xlu0 %309
  %v312 = vmul.f32 %v281, %v310
  %v313 = vadd.f32 %v307, %v312
  %v314 = vpack.c.bf16 %v217, %v217
  %v319 = vunpack.c.l.b16 %v209
  %v320 = vunpack.c.l.b16 %v210
  %v321 = vunpack.c.l.b16 %v211
  %v322 = vunpack.c.l.b16 %v212
  %v323 = vpack.c.b16 %v320, %v319
  %v324 = vpack.c.b16 %v322, %v321
  %v328 = vsel %vm231, %v314, 0
  %330 = vmatprep.subr.bf16.mxu0 0
  %331 = vmatpush1.bf16.msra.mxu0 %v323
  %332 = vmatprep.subr.bf16.mxu0 0
  %333 = vmatpush1.bf16.msra.mxu0 %v324
  %334 = vmatprep.subr.bf16.mxu0 0
  %335 = vmatpush1.bf16.msra.mxu0 0
  %336 = vmatprep.subr.bf16.mxu0 0
  %337 = vmatpush1.bf16.msra.mxu0 0
  %338 = vmatprep.subr.bf16.mxu0 0
  %339 = vmatpush1.bf16.msra.mxu0 0
  %340 = vmatprep.subr.bf16.mxu0 0
  %341 = vmatpush1.bf16.msra.mxu0 0
  %342 = vmatprep.subr.bf16.mxu0 0
  %343 = vmatpush1.bf16.msra.mxu0 0
  %344 = vmatprep.subr.bf16.mxu0 0
  %345 = vmatpush1.bf16.msra.mxu0 0
  %346 = vmatprep.subr.bf16.mxu0 0
  %347 = vmatpush1.bf16.msra.mxu0 0
  %348 = vmatprep.subr.bf16.mxu0 0
  %349 = vmatpush1.bf16.msra.mxu0 0
  %350 = vmatprep.subr.bf16.mxu0 0
  %351 = vmatpush1.bf16.msra.mxu0 0
  %352 = vmatprep.subr.bf16.mxu0 0
  %353 = vmatpush1.bf16.msra.mxu0 0
  %354 = vmatprep.subr.bf16.mxu0 0
  %355 = vmatpush1.bf16.msra.mxu0 0
  %356 = vmatprep.subr.bf16.mxu0 0
  %357 = vmatpush1.bf16.msra.mxu0 0
  %358 = vmatprep.subr.bf16.mxu0 0
  %359 = vmatpush1.bf16.msra.mxu0 0
  %360 = vmatprep.subr.bf16.mxu0 0
  %361 = vmatpush1.bf16.msra.mxu0 0
  %362 = vmatprep.mubr.bf16.mxu0 0
  %363 = vmatmul.mubr.bf16.gmra.mrb[0].mxu0 %v328
  %v364 = vpop.f32.mrb[0].mxu0
  %v365 = vadd.f32 0.0, %v364
  %v366 = vpop.f32.mrb[0].mxu0
  %v367 = vpop.f32.mrb[0].mxu0
  %v368 = vpop.f32.mrb[0].mxu0
  %369 = vdwg.mxu0
  %v371 = vrot.slane %v365, 2
  %v373 = vadd.f32 %v201, %v371
  %v374 = vxor.u32 %v373, 2147483648
  %v375 = vmul.f32 %v374, 1.442695
  %v376 = vpow.pop %v375
  %v377 = vadd.f32 %v376, 1.0
  %v378 = vrcp.pop %v377
  %v379 = vmul.f32 1.0, %v378
  %v381 = vlaneseq
  %v382 = vshrl.u32 %v381, 7
  %v383 = vsub.s32 0, %v382
  %v384 = vrot.slane %v215, %v383
  %385 = vrot.lane.b32.xlu0 %v384, 64
  %v386 = vpop.permute.xlu0 %385
  %v388 = vadd.f32 %v365, %v386
  %v390 = vrot.slane %v388, 2
  %391 = vrot.lane.b32.xlu0 %v390, 64
  %v392 = vpop.permute.xlu0 %391
  %v394 = vmul.f32 %v379, %v392
  %396 = vrot.lane.b32.xlu0 %v394, 64
  %v397 = vpop.permute.xlu0 %396
  %v399 = vadd.f32 %v201, %v397
  %v400 = vtanh.pop %v399
  %v401 = vsub.f32 1.0, %v379
  %403 = vrot.lane.b32.xlu0 %v400, 96
  %v404 = vpop.permute.xlu0 %403
  %v406 = vmul.f32 %v401, %v404
  %v408 = vrot.slane %v217, 2
  %409 = vrot.lane.b32.xlu0 %v408, 32
  %v410 = vpop.permute.xlu0 %409
  %v412 = vmul.f32 %v379, %v410
  %v413 = vadd.f32 %v406, %v412
  %v414 = vpack.c.bf16 %v313, %v313
  %v416 = vunpack.c.l.b16 %v414
  %v417 = vpack.c.b16 %v416, %v416
  %418 = vrot.lane.b32.xlu0 %v417, 96
  %v419 = vpop.permute.xlu0 %418
  %vm421 = vcmask 253952
  %422 = vst.msk [vmem:[%s6] sm:$0x1] %vm421, %v419
  %v423 = vpack.c.bf16 %v413, %v413
  %v425 = vunpack.c.l.b16 %v423
  %v426 = vpack.c.b16 %v425, %v425
  %427 = vrot.lane.b32.xlu0 %v426, 96
  %v428 = vpop.permute.xlu0 %427
  %vm430 = vcmask 257027
  %431 = vst.msk [vmem:[%s58 + $0x4] sm:$0x8] %vm430, %v428
  %432 = vrot.lane.b32.xlu0 %v414, 96
  %v433 = vpop.permute.xlu0 %432
  %v435 = vsel %vm231, %v433, 0
  %437 = vmatprep.subr.bf16.mxu0 0
  %438 = vmatpush1.bf16.msra.mxu0 %v227
  %439 = vmatprep.subr.bf16.mxu0 0
  %440 = vmatpush1.bf16.msra.mxu0 %v228
  %441 = vmatprep.subr.bf16.mxu0 0
  %442 = vmatpush1.bf16.msra.mxu0 0
  %443 = vmatprep.subr.bf16.mxu0 0
  %444 = vmatpush1.bf16.msra.mxu0 0
  %445 = vmatprep.subr.bf16.mxu0 0
  %446 = vmatpush1.bf16.msra.mxu0 0
  %447 = vmatprep.subr.bf16.mxu0 0
  %448 = vmatpush1.bf16.msra.mxu0 0
  %449 = vmatprep.subr.bf16.mxu0 0
  %450 = vmatpush1.bf16.msra.mxu0 0
  %451 = vmatprep.subr.bf16.mxu0 0
  %452 = vmatpush1.bf16.msra.mxu0 0
  %453 = vmatprep.subr.bf16.mxu0 0
  %454 = vmatpush1.bf16.msra.mxu0 0
  %455 = vmatprep.subr.bf16.mxu0 0
  %456 = vmatpush1.bf16.msra.mxu0 0
  %457 = vmatprep.subr.bf16.mxu0 0
  %458 = vmatpush1.bf16.msra.mxu0 0
  %459 = vmatprep.subr.bf16.mxu0 0
  %460 = vmatpush1.bf16.msra.mxu0 0
  %461 = vmatprep.subr.bf16.mxu0 0
  %462 = vmatpush1.bf16.msra.mxu0 0
  %463 = vmatprep.subr.bf16.mxu0 0
  %464 = vmatpush1.bf16.msra.mxu0 0
  %465 = vmatprep.subr.bf16.mxu0 0
  %466 = vmatpush1.bf16.msra.mxu0 0
  %467 = vmatprep.subr.bf16.mxu0 0
  %468 = vmatpush1.bf16.msra.mxu0 0
  %469 = vmatprep.mubr.bf16.mxu0 0
  %470 = vmatmul.mubr.bf16.gmra.mrb[0].mxu0 %v435
  %v471 = vpop.f32.mrb[0].mxu0
  %v472 = vadd.f32 0.0, %v471
  %v473 = vpop.f32.mrb[0].mxu0
  %v474 = vpop.f32.mrb[0].mxu0
  %v475 = vpop.f32.mrb[0].mxu0
  %476 = vdwg.mxu0
  %v478 = vrot.slane %v472, 6
  %v480 = vadd.f32 %v130, %v478
  %v481 = vxor.u32 %v480, 2147483648
  %v482 = vmul.f32 %v481, 1.442695
  %v483 = vpow.pop %v482
  %v484 = vadd.f32 %v483, 1.0
  %v485 = vrcp.pop %v484
  %v486 = vmul.f32 1.0, %v485
  %v487 = vadd.f32 %v472, %v288
  %v489 = vrot.slane %v487, 6
  %490 = vrot.lane.b32.xlu0 %v489, 64
  %v491 = vpop.permute.xlu0 %490
  %v493 = vmul.f32 %v486, %v491
  %495 = vrot.lane.b32.xlu0 %v493, 64
  %v496 = vpop.permute.xlu0 %495
  %v498 = vadd.f32 %v130, %v496
  %v499 = vtanh.pop %v498
  %v500 = vsub.f32 1.0, %v486
  %502 = vrot.lane.b32.xlu0 %v499, 96
  %v503 = vpop.permute.xlu0 %502
  %v505 = vmul.f32 %v500, %v503
  %v507 = vrot.slane %v313, 6
  %v509 = vmul.f32 %v486, %v507
  %v510 = vadd.f32 %v505, %v509
  %v511 = vrot.slane %v423, 3
  %512 = vrot.lane.b32.xlu0 %v511, 96
  %v513 = vpop.permute.xlu0 %512
  %v515 = vsel %vm231, %v513, 0
  %517 = vmatprep.subr.bf16.mxu0 0
  %518 = vmatpush1.bf16.msra.mxu0 %v323
  %519 = vmatprep.subr.bf16.mxu0 0
  %520 = vmatpush1.bf16.msra.mxu0 %v324
  %521 = vmatprep.subr.bf16.mxu0 0
  %522 = vmatpush1.bf16.msra.mxu0 0
  %523 = vmatprep.subr.bf16.mxu0 0
  %524 = vmatpush1.bf16.msra.mxu0 0
  %525 = vmatprep.subr.bf16.mxu0 0
  %526 = vmatpush1.bf16.msra.mxu0 0
  %527 = vmatprep.subr.bf16.mxu0 0
  %528 = vmatpush1.bf16.msra.mxu0 0
  %529 = vmatprep.subr.bf16.mxu0 0
  %530 = vmatpush1.bf16.msra.mxu0 0
  %531 = vmatprep.subr.bf16.mxu0 0
  %532 = vmatpush1.bf16.msra.mxu0 0
  %533 = vmatprep.subr.bf16.mxu0 0
  %534 = vmatpush1.bf16.msra.mxu0 0
  %535 = vmatprep.subr.bf16.mxu0 0
  %536 = vmatpush1.bf16.msra.mxu0 0
  %537 = vmatprep.subr.bf16.mxu0 0
  %538 = vmatpush1.bf16.msra.mxu0 0
  %539 = vmatprep.subr.bf16.mxu0 0
  %540 = vmatpush1.bf16.msra.mxu0 0
  %541 = vmatprep.subr.bf16.mxu0 0
  %542 = vmatpush1.bf16.msra.mxu0 0
  %543 = vmatprep.subr.bf16.mxu0 0
  %544 = vmatpush1.bf16.msra.mxu0 0
  %545 = vmatprep.subr.bf16.mxu0 0
  %546 = vmatpush1.bf16.msra.mxu0 0
  %547 = vmatprep.subr.bf16.mxu0 0
  %548 = vmatpush1.bf16.msra.mxu0 0
  %549 = vmatprep.mubr.bf16.mxu0 0
  %550 = vmatmul.mubr.bf16.gmra.mrb[0].mxu0 %v515
  %v551 = vpop.f32.mrb[0].mxu0
  %v552 = vadd.f32 0.0, %v551
  %v553 = vpop.f32.mrb[0].mxu0
  %v554 = vpop.f32.mrb[0].mxu0
  %v555 = vpop.f32.mrb[0].mxu0
  %556 = vdwg.mxu0
  %v558 = vrot.slane %v552, 4
  %v560 = vadd.f32 %v201, %v558
  %v561 = vxor.u32 %v560, 2147483648
  %v562 = vmul.f32 %v561, 1.442695
  %v563 = vpow.pop %v562
  %v564 = vadd.f32 %v563, 1.0
  %v565 = vrcp.pop %v564
  %v566 = vmul.f32 1.0, %v565
  %v567 = vadd.f32 %v552, %v386
  %v569 = vrot.slane %v567, 4
  %570 = vrot.lane.b32.xlu0 %v569, 64
  %v571 = vpop.permute.xlu0 %570
  %v573 = vmul.f32 %v566, %v571
  %575 = vrot.lane.b32.xlu0 %v573, 64
  %v576 = vpop.permute.xlu0 %575
  %v578 = vadd.f32 %v201, %v576
  %v579 = vtanh.pop %v578
  %v580 = vsub.f32 1.0, %v566
  %582 = vrot.lane.b32.xlu0 %v579, 96
  %v583 = vpop.permute.xlu0 %582
  %v585 = vmul.f32 %v580, %v583
  %v587 = vrot.slane %v413, 2
  %v589 = vmul.f32 %v566, %v587
  %v590 = vadd.f32 %v585, %v589
  %v591 = vpack.c.bf16 %v510, %v510
  %v593 = vunpack.c.l.b16 %v591
  %v594 = vpack.c.b16 %v593, %v593
  %595 = vrot.lane.b32.xlu0 %v594, 96
  %v596 = vpop.permute.xlu0 %595
  %vm598 = vcmask 254977
  %599 = vst.msk [vmem:[%s6] sm:$0x2] %vm598, %v596
  %v600 = vpack.c.bf16 %v590, %v590
  %v602 = vunpack.c.l.b16 %v600
  %v603 = vpack.c.b16 %v602, %v602
  %604 = vrot.lane.b32.xlu0 %v603, 96
  %v605 = vpop.permute.xlu0 %604
  %vm607 = vcmask 256002
  %608 = vst.msk [vmem:[%s58 + $0x4] sm:$0x4] %vm607, %v605
  %v609 = vrot.slane %v591, 1
  %610 = vrot.lane.b32.xlu0 %v609, 96
  %v611 = vpop.permute.xlu0 %610
  %v613 = vsel %vm231, %v611, 0
  %615 = vmatprep.subr.bf16.mxu0 0
  %616 = vmatpush1.bf16.msra.mxu0 %v227
  %617 = vmatprep.subr.bf16.mxu0 0
  %618 = vmatpush1.bf16.msra.mxu0 %v228
  %619 = vmatprep.subr.bf16.mxu0 0
  %620 = vmatpush1.bf16.msra.mxu0 0
  %621 = vmatprep.subr.bf16.mxu0 0
  %622 = vmatpush1.bf16.msra.mxu0 0
  %623 = vmatprep.subr.bf16.mxu0 0
  %624 = vmatpush1.bf16.msra.mxu0 0
  %625 = vmatprep.subr.bf16.mxu0 0
  %626 = vmatpush1.bf16.msra.mxu0 0
  %627 = vmatprep.subr.bf16.mxu0 0
  %628 = vmatpush1.bf16.msra.mxu0 0
  %629 = vmatprep.subr.bf16.mxu0 0
  %630 = vmatpush1.bf16.msra.mxu0 0
  %631 = vmatprep.subr.bf16.mxu0 0
  %632 = vmatpush1.bf16.msra.mxu0 0
  %633 = vmatprep.subr.bf16.mxu0 0
  %634 = vmatpush1.bf16.msra.mxu0 0
  %635 = vmatprep.subr.bf16.mxu0 0
  %636 = vmatpush1.bf16.msra.mxu0 0
  %637 = vmatprep.subr.bf16.mxu0 0
  %638 = vmatpush1.bf16.msra.mxu0 0
  %639 = vmatprep.subr.bf16.mxu0 0
  %640 = vmatpush1.bf16.msra.mxu0 0
  %641 = vmatprep.subr.bf16.mxu0 0
  %642 = vmatpush1.bf16.msra.mxu0 0
  %643 = vmatprep.subr.bf16.mxu0 0
  %644 = vmatpush1.bf16.msra.mxu0 0
  %645 = vmatprep.subr.bf16.mxu0 0
  %646 = vmatpush1.bf16.msra.mxu0 0
  %647 = vmatprep.mubr.bf16.mxu0 0
  %648 = vmatmul.mubr.bf16.gmra.mrb[0].mxu0 %v613
  %v649 = vpop.f32.mrb[0].mxu0
  %v650 = vadd.f32 0.0, %v649
  %v651 = vpop.f32.mrb[0].mxu0
  %v652 = vpop.f32.mrb[0].mxu0
  %v653 = vpop.f32.mrb[0].mxu0
  %654 = vdwg.mxu0
  %v656 = vrot.slane %v650, 4
  %v658 = vadd.f32 %v130, %v656
  %v659 = vxor.u32 %v658, 2147483648
  %v660 = vmul.f32 %v659, 1.442695
  %v661 = vpow.pop %v660
  %v662 = vadd.f32 %v661, 1.0
  %v663 = vrcp.pop %v662
  %v664 = vmul.f32 1.0, %v663
  %v665 = vadd.f32 %v650, %v288
  %v667 = vrot.slane %v665, 4
  %668 = vrot.lane.b32.xlu0 %v667, 64
  %v669 = vpop.permute.xlu0 %668
  %v671 = vmul.f32 %v664, %v669
  %673 = vrot.lane.b32.xlu0 %v671, 64
  %v674 = vpop.permute.xlu0 %673
  %v676 = vadd.f32 %v130, %v674
  %v677 = vtanh.pop %v676
  %v678 = vsub.f32 1.0, %v664
  %680 = vrot.lane.b32.xlu0 %v677, 96
  %v681 = vpop.permute.xlu0 %680
  %v683 = vmul.f32 %v678, %v681
  %v685 = vrot.slane %v510, 6
  %v687 = vmul.f32 %v664, %v685
  %v688 = vadd.f32 %v683, %v687
  %v689 = vrot.slane %v600, 2
  %690 = vrot.lane.b32.xlu0 %v689, 96
  %v691 = vpop.permute.xlu0 %690
  %v693 = vsel %vm231, %v691, 0
  %695 = vmatprep.subr.bf16.mxu0 0
  %696 = vmatpush1.bf16.msra.mxu0 %v323
  %697 = vmatprep.subr.bf16.mxu0 0
  %698 = vmatpush1.bf16.msra.mxu0 %v324
  %699 = vmatprep.subr.bf16.mxu0 0
  %700 = vmatpush1.bf16.msra.mxu0 0
  %701 = vmatprep.subr.bf16.mxu0 0
  %702 = vmatpush1.bf16.msra.mxu0 0
  %703 = vmatprep.subr.bf16.mxu0 0
  %704 = vmatpush1.bf16.msra.mxu0 0
  %705 = vmatprep.subr.bf16.mxu0 0
  %706 = vmatpush1.bf16.msra.mxu0 0
  %707 = vmatprep.subr.bf16.mxu0 0
  %708 = vmatpush1.bf16.msra.mxu0 0
  %709 = vmatprep.subr.bf16.mxu0 0
  %710 = vmatpush1.bf16.msra.mxu0 0
  %711 = vmatprep.subr.bf16.mxu0 0
  %712 = vmatpush1.bf16.msra.mxu0 0
  %713 = vmatprep.subr.bf16.mxu0 0
  %714 = vmatpush1.bf16.msra.mxu0 0
  %715 = vmatprep.subr.bf16.mxu0 0
  %716 = vmatpush1.bf16.msra.mxu0 0
  %717 = vmatprep.subr.bf16.mxu0 0
  %718 = vmatpush1.bf16.msra.mxu0 0
  %719 = vmatprep.subr.bf16.mxu0 0
  %720 = vmatpush1.bf16.msra.mxu0 0
  %721 = vmatprep.subr.bf16.mxu0 0
  %722 = vmatpush1.bf16.msra.mxu0 0
  %723 = vmatprep.subr.bf16.mxu0 0
  %724 = vmatpush1.bf16.msra.mxu0 0
  %725 = vmatprep.subr.bf16.mxu0 0
  %726 = vmatpush1.bf16.msra.mxu0 0
  %727 = vmatprep.mubr.bf16.mxu0 0
  %728 = vmatmul.mubr.bf16.gmra.mrb[0].mxu0 %v693
  %v729 = vpop.f32.mrb[0].mxu0
  %v730 = vadd.f32 0.0, %v729
  %v731 = vpop.f32.mrb[0].mxu0
  %v732 = vpop.f32.mrb[0].mxu0
  %v733 = vpop.f32.mrb[0].mxu0
  %734 = vdwg.mxu0
  %v736 = vrot.slane %v730, 6
  %v738 = vadd.f32 %v201, %v736
  %v739 = vxor.u32 %v738, 2147483648
  %v740 = vmul.f32 %v739, 1.442695
  %v741 = vpow.pop %v740
  %v742 = vadd.f32 %v741, 1.0
  %v743 = vrcp.pop %v742
  %v744 = vmul.f32 1.0, %v743
  %v745 = vadd.f32 %v730, %v386
  %v747 = vrot.slane %v745, 6
  %748 = vrot.lane.b32.xlu0 %v747, 64
  %v749 = vpop.permute.xlu0 %748
  %v751 = vmul.f32 %v744, %v749
  %753 = vrot.lane.b32.xlu0 %v751, 64
  %v754 = vpop.permute.xlu0 %753
  %v756 = vadd.f32 %v201, %v754
  %v757 = vtanh.pop %v756
  %v758 = vsub.f32 1.0, %v744
  %760 = vrot.lane.b32.xlu0 %v757, 96
  %v761 = vpop.permute.xlu0 %760
  %v763 = vmul.f32 %v758, %v761
  %v765 = vrot.slane %v590, 2
  %v767 = vmul.f32 %v744, %v765
  %v768 = vadd.f32 %v763, %v767
  %v769 = vpack.c.bf16 %v688, %v688
  %v771 = vunpack.c.l.b16 %v769
  %v772 = vpack.c.b16 %v771, %v771
  %773 = vrot.lane.b32.xlu0 %v772, 96
  %v774 = vpop.permute.xlu0 %773
  %776 = vst.msk [vmem:[%s6] sm:$0x4] %vm607, %v774
  %v777 = vpack.c.bf16 %v768, %v768
  %v779 = vunpack.c.l.b16 %v777
  %v780 = vpack.c.b16 %v779, %v779
  %781 = vrot.lane.b32.xlu0 %v780, 96
  %v782 = vpop.permute.xlu0 %781
  %784 = vst.msk [vmem:[%s58 + $0x4] sm:$0x2] %vm598, %v782
  %v785 = vrot.slane %v769, 2
  %786 = vrot.lane.b32.xlu0 %v785, 96
  %v787 = vpop.permute.xlu0 %786
  %v789 = vsel %vm231, %v787, 0
  %791 = vmatprep.subr.bf16.mxu0 0
  %792 = vmatpush1.bf16.msra.mxu0 %v227
  %793 = vmatprep.subr.bf16.mxu0 0
  %794 = vmatpush1.bf16.msra.mxu0 %v228
  %795 = vmatprep.subr.bf16.mxu0 0
  %796 = vmatpush1.bf16.msra.mxu0 0
  %797 = vmatprep.subr.bf16.mxu0 0
  %798 = vmatpush1.bf16.msra.mxu0 0
  %799 = vmatprep.subr.bf16.mxu0 0
  %800 = vmatpush1.bf16.msra.mxu0 0
  %801 = vmatprep.subr.bf16.mxu0 0
  %802 = vmatpush1.bf16.msra.mxu0 0
  %803 = vmatprep.subr.bf16.mxu0 0
  %804 = vmatpush1.bf16.msra.mxu0 0
  %805 = vmatprep.subr.bf16.mxu0 0
  %806 = vmatpush1.bf16.msra.mxu0 0
  %807 = vmatprep.subr.bf16.mxu0 0
  %808 = vmatpush1.bf16.msra.mxu0 0
  %809 = vmatprep.subr.bf16.mxu0 0
  %810 = vmatpush1.bf16.msra.mxu0 0
  %811 = vmatprep.subr.bf16.mxu0 0
  %812 = vmatpush1.bf16.msra.mxu0 0
  %813 = vmatprep.subr.bf16.mxu0 0
  %814 = vmatpush1.bf16.msra.mxu0 0
  %815 = vmatprep.subr.bf16.mxu0 0
  %816 = vmatpush1.bf16.msra.mxu0 0
  %817 = vmatprep.subr.bf16.mxu0 0
  %818 = vmatpush1.bf16.msra.mxu0 0
  %819 = vmatprep.subr.bf16.mxu0 0
  %820 = vmatpush1.bf16.msra.mxu0 0
  %821 = vmatprep.subr.bf16.mxu0 0
  %822 = vmatpush1.bf16.msra.mxu0 0
  %823 = vmatprep.mubr.bf16.mxu0 0
  %824 = vmatmul.mubr.bf16.gmra.mrb[0].mxu0 %v789
  %v825 = vpop.f32.mrb[0].mxu0
  %v826 = vadd.f32 0.0, %v825
  %v827 = vpop.f32.mrb[0].mxu0
  %v828 = vpop.f32.mrb[0].mxu0
  %v829 = vpop.f32.mrb[0].mxu0
  %830 = vdwg.mxu0
  %v832 = vrot.slane %v826, 2
  %v834 = vadd.f32 %v130, %v832
  %v835 = vxor.u32 %v834, 2147483648
  %v836 = vmul.f32 %v835, 1.442695
  %v837 = vpow.pop %v836
  %v838 = vadd.f32 %v837, 1.0
  %v839 = vrcp.pop %v838
  %v840 = vmul.f32 1.0, %v839
  %v841 = vadd.f32 %v826, %v288
  %v843 = vrot.slane %v841, 2
  %844 = vrot.lane.b32.xlu0 %v843, 64
  %v845 = vpop.permute.xlu0 %844
  %v847 = vmul.f32 %v840, %v845
  %849 = vrot.lane.b32.xlu0 %v847, 64
  %v850 = vpop.permute.xlu0 %849
  %v852 = vadd.f32 %v130, %v850
  %v853 = vtanh.pop %v852
  %v854 = vsub.f32 1.0, %v840
  %856 = vrot.lane.b32.xlu0 %v853, 96
  %v857 = vpop.permute.xlu0 %856
  %v859 = vmul.f32 %v854, %v857
  %v861 = vrot.slane %v688, 6
  %v863 = vmul.f32 %v840, %v861
  %v864 = vadd.f32 %v859, %v863
  %v865 = vrot.slane %v777, 1
  %866 = vrot.lane.b32.xlu0 %v865, 96
  %v867 = vpop.permute.xlu0 %866
  %v869 = vsel %vm231, %v867, 0
  %871 = vmatprep.subr.bf16.mxu0 0
  %872 = vmatpush1.bf16.msra.mxu0 %v323
  %873 = vmatprep.subr.bf16.mxu0 0
  %874 = vmatpush1.bf16.msra.mxu0 %v324
  %875 = vmatprep.subr.bf16.mxu0 0
  %876 = vmatpush1.bf16.msra.mxu0 0
  %877 = vmatprep.subr.bf16.mxu0 0
  %878 = vmatpush1.bf16.msra.mxu0 0
  %879 = vmatprep.subr.bf16.mxu0 0
  %880 = vmatpush1.bf16.msra.mxu0 0
  %881 = vmatprep.subr.bf16.mxu0 0
  %882 = vmatpush1.bf16.msra.mxu0 0
  %883 = vmatprep.subr.bf16.mxu0 0
  %884 = vmatpush1.bf16.msra.mxu0 0
  %885 = vmatprep.subr.bf16.mxu0 0
  %886 = vmatpush1.bf16.msra.mxu0 0
  %887 = vmatprep.subr.bf16.mxu0 0
  %888 = vmatpush1.bf16.msra.mxu0 0
  %889 = vmatprep.subr.bf16.mxu0 0
  %890 = vmatpush1.bf16.msra.mxu0 0
  %891 = vmatprep.subr.bf16.mxu0 0
  %892 = vmatpush1.bf16.msra.mxu0 0
  %893 = vmatprep.subr.bf16.mxu0 0
  %894 = vmatpush1.bf16.msra.mxu0 0
  %895 = vmatprep.subr.bf16.mxu0 0
  %896 = vmatpush1.bf16.msra.mxu0 0
  %897 = vmatprep.subr.bf16.mxu0 0
  %898 = vmatpush1.bf16.msra.mxu0 0
  %899 = vmatprep.subr.bf16.mxu0 0
  %900 = vmatpush1.bf16.msra.mxu0 0
  %901 = vmatprep.subr.bf16.mxu0 0
  %902 = vmatpush1.bf16.msra.mxu0 0
  %903 = vmatprep.mubr.bf16.mxu0 0
  %904 = vmatmul.mubr.bf16.gmra.mrb[0].mxu0 %v869
  %v905 = vpop.f32.mrb[0].mxu0
  %v906 = vadd.f32 0.0, %v905
  %v907 = vpop.f32.mrb[0].mxu0
  %v908 = vpop.f32.mrb[0].mxu0
  %v909 = vpop.f32.mrb[0].mxu0
  %910 = vdwg.mxu0
  %v911 = vadd.f32 %v201, %v906
  %v912 = vxor.u32 %v911, 2147483648
  %v913 = vmul.f32 %v912, 1.442695
  %v914 = vpow.pop %v913
  %v915 = vadd.f32 %v914, 1.0
  %v916 = vrcp.pop %v915
  %v917 = vmul.f32 1.0, %v916
  %v918 = vadd.f32 %v906, %v386
  %920 = vrot.lane.b32.xlu0 %v918, 64
  %v921 = vpop.permute.xlu0 %920
  %v923 = vmul.f32 %v917, %v921
  %925 = vrot.lane.b32.xlu0 %v923, 64
  %v926 = vpop.permute.xlu0 %925
  %v928 = vadd.f32 %v201, %v926
  %v929 = vtanh.pop %v928
  %v930 = vsub.f32 1.0, %v917
  %932 = vrot.lane.b32.xlu0 %v929, 96
  %v933 = vpop.permute.xlu0 %932
  %v935 = vmul.f32 %v930, %v933
  %v937 = vrot.slane %v768, 2
  %v939 = vmul.f32 %v917, %v937
  %v940 = vadd.f32 %v935, %v939
  %v941 = vpack.c.bf16 %v864, %v864
  %v943 = vunpack.c.l.b16 %v941
  %v944 = vpack.c.b16 %v943, %v943
  %945 = vrot.lane.b32.xlu0 %v944, 96
  %v946 = vpop.permute.xlu0 %945
  %948 = vst.msk [vmem:[%s6] sm:$0x8] %vm430, %v946
  %v949 = vpack.c.bf16 %v940, %v940
  %v951 = vunpack.c.l.b16 %v949
  %v952 = vpack.c.b16 %v951, %v951
  %953 = vrot.lane.b32.xlu0 %v952, 96
  %v954 = vpop.permute.xlu0 %953
  %956 = vst.msk [vmem:[%s58 + $0x4] sm:$0x1] %vm421, %v954
  %v957 = vrot.slane %v941, 3
  %958 = vrot.lane.b32.xlu0 %v957, 96
  %v959 = vpop.permute.xlu0 %958
  %v961 = vsel %vm231, %v959, 0
  %963 = vmatprep.subr.bf16.mxu0 0
  %964 = vmatpush1.bf16.msra.mxu0 %v227
  %965 = vmatprep.subr.bf16.mxu0 0
  %966 = vmatpush1.bf16.msra.mxu0 %v228
  %967 = vmatprep.subr.bf16.mxu0 0
  %968 = vmatpush1.bf16.msra.mxu0 0
  %969 = vmatprep.subr.bf16.mxu0 0
  %970 = vmatpush1.bf16.msra.mxu0 0
  %971 = vmatprep.subr.bf16.mxu0 0
  %972 = vmatpush1.bf16.msra.mxu0 0
  %973 = vmatprep.subr.bf16.mxu0 0
  %974 = vmatpush1.bf16.msra.mxu0 0
  %975 = vmatprep.subr.bf16.mxu0 0
  %976 = vmatpush1.bf16.msra.mxu0 0
  %977 = vmatprep.subr.bf16.mxu0 0
  %978 = vmatpush1.bf16.msra.mxu0 0
  %979 = vmatprep.subr.bf16.mxu0 0
  %980 = vmatpush1.bf16.msra.mxu0 0
  %981 = vmatprep.subr.bf16.mxu0 0
  %982 = vmatpush1.bf16.msra.mxu0 0
  %983 = vmatprep.subr.bf16.mxu0 0
  %984 = vmatpush1.bf16.msra.mxu0 0
  %985 = vmatprep.subr.bf16.mxu0 0
  %986 = vmatpush1.bf16.msra.mxu0 0
  %987 = vmatprep.subr.bf16.mxu0 0
  %988 = vmatpush1.bf16.msra.mxu0 0
  %989 = vmatprep.subr.bf16.mxu0 0
  %990 = vmatpush1.bf16.msra.mxu0 0
  %991 = vmatprep.subr.bf16.mxu0 0
  %992 = vmatpush1.bf16.msra.mxu0 0
  %993 = vmatprep.subr.bf16.mxu0 0
  %994 = vmatpush1.bf16.msra.mxu0 0
  %995 = vmatprep.mubr.bf16.mxu0 0
  %996 = vmatmul.mubr.bf16.gmra.mrb[0].mxu0 %v961
  %v997 = vpop.f32.mrb[0].mxu0
  %v998 = vadd.f32 0.0, %v997
  %v999 = vpop.f32.mrb[0].mxu0
  %v1000 = vpop.f32.mrb[0].mxu0
  %v1001 = vpop.f32.mrb[0].mxu0
  %1002 = vdwg.mxu0
  %v1003 = vadd.f32 %v133, %v998
  %v1004 = vxor.u32 %v1003, 2147483648
  %v1005 = vmul.f32 %v1004, 1.442695
  %v1006 = vpow.pop %v1005
  %v1007 = vadd.f32 %v1006, 1.0
  %v1008 = vrcp.pop %v1007
  %v1009 = vmul.f32 1.0, %v1008
  %v1010 = vadd.f32 %v998, %v288
  %1012 = vrot.lane.b32.xlu0 %v1010, 64
  %v1013 = vpop.permute.xlu0 %1012
  %v1015 = vmul.f32 %v1009, %v1013
  %1017 = vrot.lane.b32.xlu0 %v1015, 64
  %v1018 = vpop.permute.xlu0 %1017
  %v1020 = vadd.f32 %v133, %v1018
  %v1021 = vtanh.pop %v1020
  %v1022 = vsub.f32 1.0, %v1009
  %1024 = vrot.lane.b32.xlu0 %v1021, 96
  %v1025 = vpop.permute.xlu0 %1024
  %v1027 = vmul.f32 %v1022, %v1025
  %v1029 = vrot.slane %v864, 6
  %v1031 = vmul.f32 %v1009, %v1029
  %v1032 = vadd.f32 %v1027, %v1031
  %1033 = vrot.lane.b32.xlu0 %v949, 96
  %v1034 = vpop.permute.xlu0 %1033
  %v1036 = vsel %vm231, %v1034, 0
  %1038 = vmatprep.subr.bf16.mxu0 0
  %1039 = vmatpush1.bf16.msra.mxu0 %v323
  %1040 = vmatprep.subr.bf16.mxu0 0
  %1041 = vmatpush1.bf16.msra.mxu0 %v324
  %1042 = vmatprep.subr.bf16.mxu0 0
  %1043 = vmatpush1.bf16.msra.mxu0 0
  %1044 = vmatprep.subr.bf16.mxu0 0
  %1045 = vmatpush1.bf16.msra.mxu0 0
  %1046 = vmatprep.subr.bf16.mxu0 0
  %1047 = vmatpush1.bf16.msra.mxu0 0
  %1048 = vmatprep.subr.bf16.mxu0 0
  %1049 = vmatpush1.bf16.msra.mxu0 0
  %1050 = vmatprep.subr.bf16.mxu0 0
  %1051 = vmatpush1.bf16.msra.mxu0 0
  %1052 = vmatprep.subr.bf16.mxu0 0
  %1053 = vmatpush1.bf16.msra.mxu0 0
  %1054 = vmatprep.subr.bf16.mxu0 0
  %1055 = vmatpush1.bf16.msra.mxu0 0
  %1056 = vmatprep.subr.bf16.mxu0 0
  %1057 = vmatpush1.bf16.msra.mxu0 0
  %1058 = vmatprep.subr.bf16.mxu0 0
  %1059 = vmatpush1.bf16.msra.mxu0 0
  %1060 = vmatprep.subr.bf16.mxu0 0
  %1061 = vmatpush1.bf16.msra.mxu0 0
  %1062 = vmatprep.subr.bf16.mxu0 0
  %1063 = vmatpush1.bf16.msra.mxu0 0
  %1064 = vmatprep.subr.bf16.mxu0 0
  %1065 = vmatpush1.bf16.msra.mxu0 0
  %1066 = vmatprep.subr.bf16.mxu0 0
  %1067 = vmatpush1.bf16.msra.mxu0 0
  %1068 = vmatprep.subr.bf16.mxu0 0
  %1069 = vmatpush1.bf16.msra.mxu0 0
  %1070 = vmatprep.mubr.bf16.mxu0 0
  %1071 = vmatmul.mubr.bf16.gmra.mrb[0].mxu0 %v1036
  %v1072 = vpop.f32.mrb[0].mxu0
  %v1073 = vadd.f32 0.0, %v1072
  %v1074 = vpop.f32.mrb[0].mxu0
  %v1075 = vpop.f32.mrb[0].mxu0
  %v1076 = vpop.f32.mrb[0].mxu0
  %1077 = vdwg.mxu0
  %v1079 = vrot.slane %v1073, 2
  %v1081 = vadd.f32 %v198, %v1079
  %v1082 = vxor.u32 %v1081, 2147483648
  %v1083 = vmul.f32 %v1082, 1.442695
  %v1084 = vpow.pop %v1083
  %v1085 = vadd.f32 %v1084, 1.0
  %v1086 = vrcp.pop %v1085
  %v1087 = vmul.f32 1.0, %v1086
  %v1088 = vadd.f32 %v1073, %v386
  %v1090 = vrot.slane %v1088, 2
  %1091 = vrot.lane.b32.xlu0 %v1090, 64
  %v1092 = vpop.permute.xlu0 %1091
  %v1094 = vmul.f32 %v1087, %v1092
  %1096 = vrot.lane.b32.xlu0 %v1094, 64
  %v1097 = vpop.permute.xlu0 %1096
  %v1099 = vadd.f32 %v198, %v1097
  %v1100 = vtanh.pop %v1099
  %v1101 = vsub.f32 1.0, %v1087
  %1103 = vrot.lane.b32.xlu0 %v1100, 96
  %v1104 = vpop.permute.xlu0 %1103
  %v1106 = vmul.f32 %v1101, %v1104
  %v1108 = vrot.slane %v940, 2
  %v1110 = vmul.f32 %v1087, %v1108
  %v1111 = vadd.f32 %v1106, %v1110
  %v1112 = vpack.c.bf16 %v1032, %v1032
  %v1114 = vunpack.c.l.b16 %v1112
  %v1115 = vpack.c.b16 %v1114, %v1114
  %1116 = vrot.lane.b32.xlu0 %v1115, 96
  %v1117 = vpop.permute.xlu0 %1116
  %1119 = vst.msk [vmem:[%s6 + $0x4] sm:$0x1] %vm421, %v1117
  %v1120 = vpack.c.bf16 %v1111, %v1111
  %v1122 = vunpack.c.l.b16 %v1120
  %v1123 = vpack.c.b16 %v1122, %v1122
  %1124 = vrot.lane.b32.xlu0 %v1123, 96
  %v1125 = vpop.permute.xlu0 %1124
  %1127 = vst.msk [vmem:[%s58] sm:$0x8] %vm430, %v1125
  %1128 = vrot.lane.b32.xlu0 %v1112, 96
  %v1129 = vpop.permute.xlu0 %1128
  %v1131 = vsel %vm231, %v1129, 0
  %1133 = vmatprep.subr.bf16.mxu0 0
  %1134 = vmatpush1.bf16.msra.mxu0 %v227
  %1135 = vmatprep.subr.bf16.mxu0 0
  %1136 = vmatpush1.bf16.msra.mxu0 %v228
  %1137 = vmatprep.subr.bf16.mxu0 0
  %1138 = vmatpush1.bf16.msra.mxu0 0
  %1139 = vmatprep.subr.bf16.mxu0 0
  %1140 = vmatpush1.bf16.msra.mxu0 0
  %1141 = vmatprep.subr.bf16.mxu0 0
  %1142 = vmatpush1.bf16.msra.mxu0 0
  %1143 = vmatprep.subr.bf16.mxu0 0
  %1144 = vmatpush1.bf16.msra.mxu0 0
  %1145 = vmatprep.subr.bf16.mxu0 0
  %1146 = vmatpush1.bf16.msra.mxu0 0
  %1147 = vmatprep.subr.bf16.mxu0 0
  %1148 = vmatpush1.bf16.msra.mxu0 0
  %1149 = vmatprep.subr.bf16.mxu0 0
  %1150 = vmatpush1.bf16.msra.mxu0 0
  %1151 = vmatprep.subr.bf16.mxu0 0
  %1152 = vmatpush1.bf16.msra.mxu0 0
  %1153 = vmatprep.subr.bf16.mxu0 0
  %1154 = vmatpush1.bf16.msra.mxu0 0
  %1155 = vmatprep.subr.bf16.mxu0 0
  %1156 = vmatpush1.bf16.msra.mxu0 0
  %1157 = vmatprep.subr.bf16.mxu0 0
  %1158 = vmatpush1.bf16.msra.mxu0 0
  %1159 = vmatprep.subr.bf16.mxu0 0
  %1160 = vmatpush1.bf16.msra.mxu0 0
  %1161 = vmatprep.subr.bf16.mxu0 0
  %1162 = vmatpush1.bf16.msra.mxu0 0
  %1163 = vmatprep.subr.bf16.mxu0 0
  %1164 = vmatpush1.bf16.msra.mxu0 0
  %1165 = vmatprep.mubr.bf16.mxu0 0
  %1166 = vmatmul.mubr.bf16.gmra.mrb[0].mxu0 %v1131
  %v1167 = vpop.f32.mrb[0].mxu0
  %v1168 = vadd.f32 0.0, %v1167
  %v1169 = vpop.f32.mrb[0].mxu0
  %v1170 = vpop.f32.mrb[0].mxu0
  %v1171 = vpop.f32.mrb[0].mxu0
  %1172 = vdwg.mxu0
  %v1174 = vrot.slane %v1168, 6
  %v1176 = vadd.f32 %v133, %v1174
  %v1177 = vxor.u32 %v1176, 2147483648
  %v1178 = vmul.f32 %v1177, 1.442695
  %v1179 = vpow.pop %v1178
  %v1180 = vadd.f32 %v1179, 1.0
  %v1181 = vrcp.pop %v1180
  %v1182 = vmul.f32 1.0, %v1181
  %v1183 = vadd.f32 %v1168, %v288
  %v1185 = vrot.slane %v1183, 6
  %1186 = vrot.lane.b32.xlu0 %v1185, 64
  %v1187 = vpop.permute.xlu0 %1186
  %v1189 = vmul.f32 %v1182, %v1187
  %1191 = vrot.lane.b32.xlu0 %v1189, 64
  %v1192 = vpop.permute.xlu0 %1191
  %v1194 = vadd.f32 %v133, %v1192
  %v1195 = vtanh.pop %v1194
  %v1196 = vsub.f32 1.0, %v1182
  %1198 = vrot.lane.b32.xlu0 %v1195, 96
  %v1199 = vpop.permute.xlu0 %1198
  %v1201 = vmul.f32 %v1196, %v1199
  %v1203 = vrot.slane %v1032, 6
  %v1205 = vmul.f32 %v1182, %v1203
  %v1206 = vadd.f32 %v1201, %v1205
  %v1207 = vrot.slane %v1120, 3
  %1208 = vrot.lane.b32.xlu0 %v1207, 96
  %v1209 = vpop.permute.xlu0 %1208
  %v1211 = vsel %vm231, %v1209, 0
  %1213 = vmatprep.subr.bf16.mxu0 0
  %1214 = vmatpush1.bf16.msra.mxu0 %v323
  %1215 = vmatprep.subr.bf16.mxu0 0
  %1216 = vmatpush1.bf16.msra.mxu0 %v324
  %1217 = vmatprep.subr.bf16.mxu0 0
  %1218 = vmatpush1.bf16.msra.mxu0 0
  %1219 = vmatprep.subr.bf16.mxu0 0
  %1220 = vmatpush1.bf16.msra.mxu0 0
  %1221 = vmatprep.subr.bf16.mxu0 0
  %1222 = vmatpush1.bf16.msra.mxu0 0
  %1223 = vmatprep.subr.bf16.mxu0 0
  %1224 = vmatpush1.bf16.msra.mxu0 0
  %1225 = vmatprep.subr.bf16.mxu0 0
  %1226 = vmatpush1.bf16.msra.mxu0 0
  %1227 = vmatprep.subr.bf16.mxu0 0
  %1228 = vmatpush1.bf16.msra.mxu0 0
  %1229 = vmatprep.subr.bf16.mxu0 0
  %1230 = vmatpush1.bf16.msra.mxu0 0
  %1231 = vmatprep.subr.bf16.mxu0 0
  %1232 = vmatpush1.bf16.msra.mxu0 0
  %1233 = vmatprep.subr.bf16.mxu0 0
  %1234 = vmatpush1.bf16.msra.mxu0 0
  %1235 = vmatprep.subr.bf16.mxu0 0
  %1236 = vmatpush1.bf16.msra.mxu0 0
  %1237 = vmatprep.subr.bf16.mxu0 0
  %1238 = vmatpush1.bf16.msra.mxu0 0
  %1239 = vmatprep.subr.bf16.mxu0 0
  %1240 = vmatpush1.bf16.msra.mxu0 0
  %1241 = vmatprep.subr.bf16.mxu0 0
  %1242 = vmatpush1.bf16.msra.mxu0 0
  %1243 = vmatprep.subr.bf16.mxu0 0
  %1244 = vmatpush1.bf16.msra.mxu0 0
  %1245 = vmatprep.mubr.bf16.mxu0 0
  %1246 = vmatmul.mubr.bf16.gmra.mrb[0].mxu0 %v1211
  %v1247 = vpop.f32.mrb[0].mxu0
  %v1248 = vadd.f32 0.0, %v1247
  %v1249 = vpop.f32.mrb[0].mxu0
  %v1250 = vpop.f32.mrb[0].mxu0
  %v1251 = vpop.f32.mrb[0].mxu0
  %1252 = vdwg.mxu0
  %v1254 = vrot.slane %v1248, 4
  %v1256 = vadd.f32 %v198, %v1254
  %v1257 = vxor.u32 %v1256, 2147483648
  %v1258 = vmul.f32 %v1257, 1.442695
  %v1259 = vpow.pop %v1258
  %v1260 = vadd.f32 %v1259, 1.0
  %v1261 = vrcp.pop %v1260
  %v1262 = vmul.f32 1.0, %v1261
  %v1263 = vadd.f32 %v1248, %v386
  %v1265 = vrot.slane %v1263, 4
  %1266 = vrot.lane.b32.xlu0 %v1265, 64
  %v1267 = vpop.permute.xlu0 %1266
  %v1269 = vmul.f32 %v1262, %v1267
  %1271 = vrot.lane.b32.xlu0 %v1269, 64
  %v1272 = vpop.permute.xlu0 %1271
  %v1274 = vadd.f32 %v198, %v1272
  %v1275 = vtanh.pop %v1274
  %v1276 = vsub.f32 1.0, %v1262
  %1278 = vrot.lane.b32.xlu0 %v1275, 96
  %v1279 = vpop.permute.xlu0 %1278
  %v1281 = vmul.f32 %v1276, %v1279
  %v1283 = vrot.slane %v1111, 2
  %v1285 = vmul.f32 %v1262, %v1283
  %v1286 = vadd.f32 %v1281, %v1285
  %v1287 = vpack.c.bf16 %v1206, %v1206
  %v1289 = vunpack.c.l.b16 %v1287
  %v1290 = vpack.c.b16 %v1289, %v1289
  %1291 = vrot.lane.b32.xlu0 %v1290, 96
  %v1292 = vpop.permute.xlu0 %1291
  %1294 = vst.msk [vmem:[%s6 + $0x4] sm:$0x2] %vm598, %v1292
  %v1295 = vpack.c.bf16 %v1286, %v1286
  %v1297 = vunpack.c.l.b16 %v1295
  %v1298 = vpack.c.b16 %v1297, %v1297
  %1299 = vrot.lane.b32.xlu0 %v1298, 96
  %v1300 = vpop.permute.xlu0 %1299
  %1302 = vst.msk [vmem:[%s58] sm:$0x4] %vm607, %v1300
  %v1303 = vrot.slane %v1287, 1
  %1304 = vrot.lane.b32.xlu0 %v1303, 96
  %v1305 = vpop.permute.xlu0 %1304
  %v1307 = vsel %vm231, %v1305, 0
  %1309 = vmatprep.subr.bf16.mxu0 0
  %1310 = vmatpush1.bf16.msra.mxu0 %v227
  %1311 = vmatprep.subr.bf16.mxu0 0
  %1312 = vmatpush1.bf16.msra.mxu0 %v228
  %1313 = vmatprep.subr.bf16.mxu0 0
  %1314 = vmatpush1.bf16.msra.mxu0 0
  %1315 = vmatprep.subr.bf16.mxu0 0
  %1316 = vmatpush1.bf16.msra.mxu0 0
  %1317 = vmatprep.subr.bf16.mxu0 0
  %1318 = vmatpush1.bf16.msra.mxu0 0
  %1319 = vmatprep.subr.bf16.mxu0 0
  %1320 = vmatpush1.bf16.msra.mxu0 0
  %1321 = vmatprep.subr.bf16.mxu0 0
  %1322 = vmatpush1.bf16.msra.mxu0 0
  %1323 = vmatprep.subr.bf16.mxu0 0
  %1324 = vmatpush1.bf16.msra.mxu0 0
  %1325 = vmatprep.subr.bf16.mxu0 0
  %1326 = vmatpush1.bf16.msra.mxu0 0
  %1327 = vmatprep.subr.bf16.mxu0 0
  %1328 = vmatpush1.bf16.msra.mxu0 0
  %1329 = vmatprep.subr.bf16.mxu0 0
  %1330 = vmatpush1.bf16.msra.mxu0 0
  %1331 = vmatprep.subr.bf16.mxu0 0
  %1332 = vmatpush1.bf16.msra.mxu0 0
  %1333 = vmatprep.subr.bf16.mxu0 0
  %1334 = vmatpush1.bf16.msra.mxu0 0
  %1335 = vmatprep.subr.bf16.mxu0 0
  %1336 = vmatpush1.bf16.msra.mxu0 0
  %1337 = vmatprep.subr.bf16.mxu0 0
  %1338 = vmatpush1.bf16.msra.mxu0 0
  %1339 = vmatprep.subr.bf16.mxu0 0
  %1340 = vmatpush1.bf16.msra.mxu0 0
  %1341 = vmatprep.mubr.bf16.mxu0 0
  %1342 = vmatmul.mubr.bf16.gmra.mrb[0].mxu0 %v1307
  %v1343 = vpop.f32.mrb[0].mxu0
  %v1344 = vadd.f32 0.0, %v1343
  %v1345 = vpop.f32.mrb[0].mxu0
  %v1346 = vpop.f32.mrb[0].mxu0
  %v1347 = vpop.f32.mrb[0].mxu0
  %1348 = vdwg.mxu0
  %v1350 = vrot.slane %v1344, 4
  %v1352 = vadd.f32 %v133, %v1350
  %v1353 = vxor.u32 %v1352, 2147483648
  %v1354 = vmul.f32 %v1353, 1.442695
  %v1355 = vpow.pop %v1354
  %v1356 = vadd.f32 %v1355, 1.0
  %v1357 = vrcp.pop %v1356
  %v1358 = vmul.f32 1.0, %v1357
  %v1359 = vadd.f32 %v1344, %v288
  %v1361 = vrot.slane %v1359, 4
  %1362 = vrot.lane.b32.xlu0 %v1361, 64
  %v1363 = vpop.permute.xlu0 %1362
  %v1365 = vmul.f32 %v1358, %v1363
  %1367 = vrot.lane.b32.xlu0 %v1365, 64
  %v1368 = vpop.permute.xlu0 %1367
  %v1370 = vadd.f32 %v133, %v1368
  %v1371 = vtanh.pop %v1370
  %v1372 = vsub.f32 1.0, %v1358
  %1374 = vrot.lane.b32.xlu0 %v1371, 96
  %v1375 = vpop.permute.xlu0 %1374
  %v1377 = vmul.f32 %v1372, %v1375
  %v1379 = vrot.slane %v1206, 6
  %v1381 = vmul.f32 %v1358, %v1379
  %v1382 = vadd.f32 %v1377, %v1381
  %v1383 = vrot.slane %v1295, 2
  %1384 = vrot.lane.b32.xlu0 %v1383, 96
  %v1385 = vpop.permute.xlu0 %1384
  %v1387 = vsel %vm231, %v1385, 0
  %1389 = vmatprep.subr.bf16.mxu0 0
  %1390 = vmatpush1.bf16.msra.mxu0 %v323
  %1391 = vmatprep.subr.bf16.mxu0 0
  %1392 = vmatpush1.bf16.msra.mxu0 %v324
  %1393 = vmatprep.subr.bf16.mxu0 0
  %1394 = vmatpush1.bf16.msra.mxu0 0
  %1395 = vmatprep.subr.bf16.mxu0 0
  %1396 = vmatpush1.bf16.msra.mxu0 0
  %1397 = vmatprep.subr.bf16.mxu0 0
  %1398 = vmatpush1.bf16.msra.mxu0 0
  %1399 = vmatprep.subr.bf16.mxu0 0
  %1400 = vmatpush1.bf16.msra.mxu0 0
  %1401 = vmatprep.subr.bf16.mxu0 0
  %1402 = vmatpush1.bf16.msra.mxu0 0
  %1403 = vmatprep.subr.bf16.mxu0 0
  %1404 = vmatpush1.bf16.msra.mxu0 0
  %1405 = vmatprep.subr.bf16.mxu0 0
  %1406 = vmatpush1.bf16.msra.mxu0 0
  %1407 = vmatprep.subr.bf16.mxu0 0
  %1408 = vmatpush1.bf16.msra.mxu0 0
  %1409 = vmatprep.subr.bf16.mxu0 0
  %1410 = vmatpush1.bf16.msra.mxu0 0
  %1411 = vmatprep.subr.bf16.mxu0 0
  %1412 = vmatpush1.bf16.msra.mxu0 0
  %1413 = vmatprep.subr.bf16.mxu0 0
  %1414 = vmatpush1.bf16.msra.mxu0 0
  %1415 = vmatprep.subr.bf16.mxu0 0
  %1416 = vmatpush1.bf16.msra.mxu0 0
  %1417 = vmatprep.subr.bf16.mxu0 0
  %1418 = vmatpush1.bf16.msra.mxu0 0
  %1419 = vmatprep.subr.bf16.mxu0 0
  %1420 = vmatpush1.bf16.msra.mxu0 0
  %1421 = vmatprep.mubr.bf16.mxu0 0
  %1422 = vmatmul.mubr.bf16.gmra.mrb[0].mxu0 %v1387
  %v1423 = vpop.f32.mrb[0].mxu0
  %v1424 = vadd.f32 0.0, %v1423
  %v1425 = vpop.f32.mrb[0].mxu0
  %v1426 = vpop.f32.mrb[0].mxu0
  %v1427 = vpop.f32.mrb[0].mxu0
  %1428 = vdwg.mxu0
  %v1430 = vrot.slane %v1424, 6
  %v1432 = vadd.f32 %v198, %v1430
  %v1433 = vxor.u32 %v1432, 2147483648
  %v1434 = vmul.f32 %v1433, 1.442695
  %v1435 = vpow.pop %v1434
  %v1436 = vadd.f32 %v1435, 1.0
  %v1437 = vrcp.pop %v1436
  %v1438 = vmul.f32 1.0, %v1437
  %v1439 = vadd.f32 %v1424, %v386
  %v1441 = vrot.slane %v1439, 6
  %1442 = vrot.lane.b32.xlu0 %v1441, 64
  %v1443 = vpop.permute.xlu0 %1442
  %v1445 = vmul.f32 %v1438, %v1443
  %1447 = vrot.lane.b32.xlu0 %v1445, 64
  %v1448 = vpop.permute.xlu0 %1447
  %v1450 = vadd.f32 %v198, %v1448
  %v1451 = vtanh.pop %v1450
  %v1452 = vsub.f32 1.0, %v1438
  %1454 = vrot.lane.b32.xlu0 %v1451, 96
  %v1455 = vpop.permute.xlu0 %1454
  %v1457 = vmul.f32 %v1452, %v1455
  %v1459 = vrot.slane %v1286, 2
  %v1461 = vmul.f32 %v1438, %v1459
  %v1462 = vadd.f32 %v1457, %v1461
  %v1463 = vpack.c.bf16 %v1382, %v1382
  %v1465 = vunpack.c.l.b16 %v1463
  %v1466 = vpack.c.b16 %v1465, %v1465
  %1467 = vrot.lane.b32.xlu0 %v1466, 96
  %v1468 = vpop.permute.xlu0 %1467
  %1470 = vst.msk [vmem:[%s6 + $0x4] sm:$0x4] %vm607, %v1468
  %v1471 = vpack.c.bf16 %v1462, %v1462
  %v1473 = vunpack.c.l.b16 %v1471
  %v1474 = vpack.c.b16 %v1473, %v1473
  %1475 = vrot.lane.b32.xlu0 %v1474, 96
  %v1476 = vpop.permute.xlu0 %1475
  %1478 = vst.msk [vmem:[%s58] sm:$0x2] %vm598, %v1476
  %v1479 = vrot.slane %v1463, 2
  %1480 = vrot.lane.b32.xlu0 %v1479, 96
  %v1481 = vpop.permute.xlu0 %1480
  %v1483 = vsel %vm231, %v1481, 0
  %1485 = vmatprep.subr.bf16.mxu0 0
  %1486 = vmatpush1.bf16.msra.mxu0 %v227
  %1487 = vmatprep.subr.bf16.mxu0 0
  %1488 = vmatpush1.bf16.msra.mxu0 %v228
  %1489 = vmatprep.subr.bf16.mxu0 0
  %1490 = vmatpush1.bf16.msra.mxu0 0
  %1491 = vmatprep.subr.bf16.mxu0 0
  %1492 = vmatpush1.bf16.msra.mxu0 0
  %1493 = vmatprep.subr.bf16.mxu0 0
  %1494 = vmatpush1.bf16.msra.mxu0 0
  %1495 = vmatprep.subr.bf16.mxu0 0
  %1496 = vmatpush1.bf16.msra.mxu0 0
  %1497 = vmatprep.subr.bf16.mxu0 0
  %1498 = vmatpush1.bf16.msra.mxu0 0
  %1499 = vmatprep.subr.bf16.mxu0 0
  %1500 = vmatpush1.bf16.msra.mxu0 0
  %1501 = vmatprep.subr.bf16.mxu0 0
  %1502 = vmatpush1.bf16.msra.mxu0 0
  %1503 = vmatprep.subr.bf16.mxu0 0
  %1504 = vmatpush1.bf16.msra.mxu0 0
  %1505 = vmatprep.subr.bf16.mxu0 0
  %1506 = vmatpush1.bf16.msra.mxu0 0
  %1507 = vmatprep.subr.bf16.mxu0 0
  %1508 = vmatpush1.bf16.msra.mxu0 0
  %1509 = vmatprep.subr.bf16.mxu0 0
  %1510 = vmatpush1.bf16.msra.mxu0 0
  %1511 = vmatprep.subr.bf16.mxu0 0
  %1512 = vmatpush1.bf16.msra.mxu0 0
  %1513 = vmatprep.subr.bf16.mxu0 0
  %1514 = vmatpush1.bf16.msra.mxu0 0
  %1515 = vmatprep.subr.bf16.mxu0 0
  %1516 = vmatpush1.bf16.msra.mxu0 0
  %1517 = vmatprep.mubr.bf16.mxu0 0
  %1518 = vmatmul.mubr.bf16.gmra.mrb[0].mxu0 %v1483
  %v1519 = vpop.f32.mrb[0].mxu0
  %v1520 = vadd.f32 0.0, %v1519
  %v1521 = vpop.f32.mrb[0].mxu0
  %v1522 = vpop.f32.mrb[0].mxu0
  %v1523 = vpop.f32.mrb[0].mxu0
  %1524 = vdwg.mxu0
  %v1526 = vrot.slane %v1520, 2
  %v1528 = vadd.f32 %v133, %v1526
  %v1529 = vxor.u32 %v1528, 2147483648
  %v1530 = vmul.f32 %v1529, 1.442695
  %v1531 = vpow.pop %v1530
  %v1532 = vadd.f32 %v1531, 1.0
  %v1533 = vrcp.pop %v1532
  %v1534 = vmul.f32 1.0, %v1533
  %v1535 = vadd.f32 %v1520, %v288
  %v1537 = vrot.slane %v1535, 2
  %1538 = vrot.lane.b32.xlu0 %v1537, 64
  %v1539 = vpop.permute.xlu0 %1538
  %v1541 = vmul.f32 %v1534, %v1539
  %1543 = vrot.lane.b32.xlu0 %v1541, 64
  %v1544 = vpop.permute.xlu0 %1543
  %v1546 = vadd.f32 %v133, %v1544
  %v1547 = vtanh.pop %v1546
  %v1548 = vsub.f32 1.0, %v1534
  %1550 = vrot.lane.b32.xlu0 %v1547, 96
  %v1551 = vpop.permute.xlu0 %1550
  %v1553 = vmul.f32 %v1548, %v1551
  %v1555 = vrot.slane %v1382, 6
  %v1557 = vmul.f32 %v1534, %v1555
  %v1558 = vadd.f32 %v1553, %v1557
  %v1559 = vrot.slane %v1471, 1
  %1560 = vrot.lane.b32.xlu0 %v1559, 96
  %v1561 = vpop.permute.xlu0 %1560
  %v1563 = vsel %vm231, %v1561, 0
  %1565 = vmatprep.subr.bf16.mxu0 0
  %1566 = vmatpush1.bf16.msra.mxu0 %v323
  %1567 = vmatprep.subr.bf16.mxu0 0
  %1568 = vmatpush1.bf16.msra.mxu0 %v324
  %1569 = vmatprep.subr.bf16.mxu0 0
  %1570 = vmatpush1.bf16.msra.mxu0 0
  %1571 = vmatprep.subr.bf16.mxu0 0
  %1572 = vmatpush1.bf16.msra.mxu0 0
  %1573 = vmatprep.subr.bf16.mxu0 0
  %1574 = vmatpush1.bf16.msra.mxu0 0
  %1575 = vmatprep.subr.bf16.mxu0 0
  %1576 = vmatpush1.bf16.msra.mxu0 0
  %1577 = vmatprep.subr.bf16.mxu0 0
  %1578 = vmatpush1.bf16.msra.mxu0 0
  %1579 = vmatprep.subr.bf16.mxu0 0
  %1580 = vmatpush1.bf16.msra.mxu0 0
  %1581 = vmatprep.subr.bf16.mxu0 0
  %1582 = vmatpush1.bf16.msra.mxu0 0
  %1583 = vmatprep.subr.bf16.mxu0 0
  %1584 = vmatpush1.bf16.msra.mxu0 0
  %1585 = vmatprep.subr.bf16.mxu0 0
  %1586 = vmatpush1.bf16.msra.mxu0 0
  %1587 = vmatprep.subr.bf16.mxu0 0
  %1588 = vmatpush1.bf16.msra.mxu0 0
  %1589 = vmatprep.subr.bf16.mxu0 0
  %1590 = vmatpush1.bf16.msra.mxu0 0
  %1591 = vmatprep.subr.bf16.mxu0 0
  %1592 = vmatpush1.bf16.msra.mxu0 0
  %1593 = vmatprep.subr.bf16.mxu0 0
  %1594 = vmatpush1.bf16.msra.mxu0 0
  %1595 = vmatprep.subr.bf16.mxu0 0
  %1596 = vmatpush1.bf16.msra.mxu0 0
  %1597 = vmatprep.mubr.bf16.mxu0 0
  %1598 = vmatmul.mubr.bf16.gmra.mrb[0].mxu0 %v1563
  %v1599 = vpop.f32.mrb[0].mxu0
  %v1600 = vadd.f32 0.0, %v1599
  %v1601 = vpop.f32.mrb[0].mxu0
  %v1602 = vpop.f32.mrb[0].mxu0
  %v1603 = vpop.f32.mrb[0].mxu0
  %1604 = vdwg.mxu0
  %v1605 = vadd.f32 %v198, %v1600
  %v1606 = vxor.u32 %v1605, 2147483648
  %v1607 = vmul.f32 %v1606, 1.442695
  %v1608 = vpow.pop %v1607
  %v1609 = vadd.f32 %v1608, 1.0
  %v1610 = vrcp.pop %v1609
  %v1611 = vmul.f32 1.0, %v1610
  %v1612 = vadd.f32 %v1600, %v386
  %1614 = vrot.lane.b32.xlu0 %v1612, 64
  %v1615 = vpop.permute.xlu0 %1614
  %v1617 = vmul.f32 %v1611, %v1615
  %1619 = vrot.lane.b32.xlu0 %v1617, 64
  %v1620 = vpop.permute.xlu0 %1619
  %v1622 = vadd.f32 %v198, %v1620
  %v1623 = vtanh.pop %v1622
  %v1624 = vsub.f32 1.0, %v1611
  %1626 = vrot.lane.b32.xlu0 %v1623, 96
  %v1627 = vpop.permute.xlu0 %1626
  %v1629 = vmul.f32 %v1624, %v1627
  %v1631 = vrot.slane %v1462, 2
  %v1633 = vmul.f32 %v1611, %v1631
  %v1634 = vadd.f32 %v1629, %v1633
  %v1635 = vpack.c.bf16 %v1558, %v1558
  %v1637 = vunpack.c.l.b16 %v1635
  %v1638 = vpack.c.b16 %v1637, %v1637
  %1639 = vrot.lane.b32.xlu0 %v1638, 96
  %v1640 = vpop.permute.xlu0 %1639
  %1642 = vst.msk [vmem:[%s6 + $0x4] sm:$0x8] %vm430, %v1640
  %v1643 = vpack.c.bf16 %v1634, %v1634
  %v1645 = vunpack.c.l.b16 %v1643
  %v1646 = vpack.c.b16 %v1645, %v1645
  %1647 = vrot.lane.b32.xlu0 %v1646, 96
  %v1648 = vpop.permute.xlu0 %1647
  %1650 = vst.msk [vmem:[%s58] sm:$0x1] %vm421, %v1648
  %1652 = vrot.lane.b32.xlu0 %v1558, 96
  %v1653 = vpop.permute.xlu0 %1652
  %vm1655 = vcmask 261126
  %1656 = vst.msk [vmem:[#allocation2 - $0x6] sm:$0xc0] %vm1655, %v1653
  %1658 = vrot.lane.b32.xlu0 %v1634, 96
  %v1659 = vpop.permute.xlu0 %1658
  %vm1661 = vcmask 254976
  %1662 = vst.msk [vmem:[#allocation3] sm:$0x3] %vm1661, %v1659
  %s1663 = ssub.s32 0, 0
  %s1664 = smul.u32 2, %s1663
  %p1665 = scmp.lt.s32.totalorder %s1664, 1
  %s1666 = scalar_select %p1665, %s1664, 1
  %s1667 = smul.addr %s1666, 4
  %s1668 = scalar_lea.vmem %s7, %s1667
  // Predicated region
  $region30: #{gru_classifier_forward.3} parent=0 // pred_check
    _
  $region31: #{gru_classifier_forward.3} parent=0 // pred_check_branch
    %1670 = sbr.rel (0) target = $region33
  $region32: #{gru_classifier_forward.3} parent=0 // pred_region
    _
  $region33: #{gru_classifier_forward.3} parent=0 // pred_fallthru
    _
  // Predicated region
  $region34: #{gru_classifier_forward.3} parent=0 // pred_check
    _
  $region35: #{gru_classifier_forward.3} parent=0 // pred_check_branch
    %1672 = sbr.rel (0) target = $region37
  $region36: #{gru_classifier_forward.3} parent=0 // pred_region
    %s1673 = ssub.s32 0, 0
    %s1674 = smul.u32 2, %s1673
  $region37: #{gru_classifier_forward.3} parent=0 // pred_fallthru
    _
  // Predicated region
  $region38: #{gru_classifier_forward.3} parent=0 // pred_check
    _
  $region39: #{gru_classifier_forward.3} parent=0 // pred_check_branch
    %1676 = sbr.rel (0) target = $region41
  $region40: #{gru_classifier_forward.3} parent=0 // pred_region
    _
  $region41: #{gru_classifier_forward.3} parent=0 // pred_fallthru
    _
  // Predicated region
  $region42: #{gru_classifier_forward.3} parent=0 // pred_check
    _
  $region43: #{gru_classifier_forward.3} parent=0 // pred_check_branch
    %1678 = sbr.rel (0) target = $region45
  $region44: #{gru_classifier_forward.3} parent=0 // pred_region
    %s1679 = ssub.s32 0, 0
    %s1680 = smul.u32 2, %s1679
    %p1681 = scmp.lt.s32.totalorder %s1680, 1
    %s1682 = scalar_select %p1681, %s1680, 1
    %s1683 = smul.addr %s1682, 4
    %s1684 = scalar_lea.vmem %s7, %s1683
  $region45: #{gru_classifier_forward.3} parent=0 // pred_fallthru
    _

</llo_original>
